<compile_context>
chip_gen: v6e
topology: v6e:2x2x1
jax: 0.10.0
libtpu: 0.0.40
codegen_flags: <defaults>
</compile_context>

<pallas_src>
import functools
import math

import jax
import jax.numpy as jnp
from jax.experimental import pallas as pl
from jax.experimental.pallas import tpu as pltpu


# ----------------------------------------------------------------------------
# helpers
# ----------------------------------------------------------------------------
def _pick_tile(dim, cap):
    """Largest divisor of `dim` that is <= cap, preferring multiples of 128,
    then of 8.  (Non-128-friendly dims should be padded by the caller; a
    degenerate divisor is numerically correct but slow.)"""
    if dim <= cap:
        return dim
    best, best8 = 1, 0
    for t in range(cap, 0, -1):
        if dim % t == 0:
            if t % 128 == 0:
                return t
            if t % 8 == 0 and best8 == 0:
                best8 = t
            if best == 1:
                best = t
    return best8 if best8 else best


def _heads_per_block(num_heads, head_dim):
    """Smallest group of heads whose packed lane width is a multiple of 128
    (lane-dense blocks); falls back to all heads (full-dim block)."""
    for g in range(1, num_heads + 1):
        if num_heads % g == 0 and (g * head_dim) % 128 == 0:
            return g
    return num_heads


_VMEM_LIMIT = 32 * 1024 * 1024  # safe on v5e (128M), v6e (128M) and v7x (64M)


# ----------------------------------------------------------------------------
# strided-roll availability probe (used for the in-kernel rel-shift)
# ----------------------------------------------------------------------------
def _roll_probe_kernel(x_ref, o_ref):
    o_ref[...] = pltpu.roll(x_ref[...], 120, 1, stride=1, stride_axis=0)


_STRIDED_ROLL_OK = None


def _strided_roll_ok():
    """Check once that the strided XLU rotate lowers and matches np.roll
    semantics (per-row amount = shift + row * stride, wrapping past the size);
    otherwise the kernels use a guaranteed-correct fallback."""
    global _STRIDED_ROLL_OK
    if _STRIDED_ROLL_OK is None:
        try:
            x = jnp.arange(16 * 128, dtype=jnp.float32).reshape(16, 128)
            got = pl.pallas_call(
                _roll_probe_kernel,
                out_shape=jax.ShapeDtypeStruct((16, 128), jnp.float32))(x)
            want = jnp.stack([jnp.roll(x[i], 120 + i) for i in range(16)])
            _STRIDED_ROLL_OK = bool(jnp.all(got == want))
        except Exception:
            _STRIDED_ROLL_OK = False
    return _STRIDED_ROLL_OK


def _shift_rel_scores(x, shift_base, use_strided_roll):
    """Transformer-XL relative shift on an in-VMEM (S, T) score slab.

    Produces out[s, t] = x[s, (t + S - 1 - s) mod T], i.e. a right-roll of row
    s by (shift_base + s) with shift_base = P + 1.  Wrapped entries land on
    positions that are removed by the causal mask.
    """
    S, T = x.shape
    if use_strided_roll:
        # Single XLU op (free slot relative to the MXU/VPU path).
        return pltpu.roll(x, shift_base, 1, stride=1, stride_axis=0)
    # Fallback: binary decomposition of the per-row roll amount into masked
    # constant rolls (plain jnp slicing/concat/select semantics).
    row = jax.lax.broadcasted_iota(jnp.int32, (S, 1), 0)
    amount = (row + shift_base) % T
    out = x
    for b in range(max(1, (T - 1).bit_length())):
        step = 1 << b
        rolled = jnp.roll(out, step, axis=1)
        out = jnp.where(((amount >> b) & 1) == 1, rolled, out)
    return out


# ----------------------------------------------------------------------------
# tiled linear kernel (bf16 operands, f32 accumulator, optional bias/ReLU)
# ----------------------------------------------------------------------------
def _linear_kernel(x_ref, w_ref, *rest, relu, has_bias):
    if has_bias:
        b_ref, o_ref, acc_ref = rest
    else:
        b_ref = None
        o_ref, acc_ref = rest

    k = pl.program_id(2)

    @pl.when(k == 0)
    def _():
        acc_ref[...] = jnp.zeros_like(acc_ref)

    acc_ref[...] += jnp.dot(x_ref[...], w_ref[...],
                            preferred_element_type=jnp.float32)

    @pl.when(k == pl.num_programs(2) - 1)
    def _():
        y = acc_ref[...]
        if has_bias:
            y = y + b_ref[...]
        if relu:
            y = jnp.maximum(y, 0.0)
        o_ref[...] = y.astype(o_ref.dtype)


def linear(x2d, w, b=None, relu=False, out_dtype=jnp.float32,
           tm_cap=512, tn_cap=512, tk_cap=1024):
    """y = x2d @ w (+ b), optional ReLU.  x2d: (M, K), w: (K, N).

    Matmul operands are cast to bf16 at the pallas_call boundary; accumulation
    and the bias/ReLU epilogue run in f32; the result is stored as out_dtype
    (bf16 for tensors that are consumed in bf16 anyway).
    """
    M, K = x2d.shape
    N = w.shape[1]
    tm, tn, tk = _pick_tile(M, tm_cap), _pick_tile(N, tn_cap), _pick_tile(K, tk_cap)
    grid = (M // tm, N // tn, K // tk)

    in_specs = [pl.BlockSpec((tm, tk), lambda i, j, k: (i, k)),
                pl.BlockSpec((tk, tn), lambda i, j, k: (k, j))]
    inputs = [x2d.astype(jnp.bfloat16), w.astype(jnp.bfloat16)]

    has_bias = b is not None
    if has_bias:
        in_specs.append(pl.BlockSpec((1, tn), lambda i, j, k: (0, j)))
        inputs.append(b.reshape(1, N).astype(jnp.float32))

    return pl.pallas_call(
        functools.partial(_linear_kernel, relu=relu, has_bias=has_bias),
        out_shape=jax.ShapeDtypeStruct((M, N), out_dtype),
        grid=grid,
        in_specs=in_specs,
        out_specs=pl.BlockSpec((tm, tn), lambda i, j, k: (i, j)),
        scratch_shapes=[pltpu.VMEM((tm, tn), jnp.float32)],
        compiler_params=pltpu.CompilerParams(
            dimension_semantics=("parallel", "parallel", "arbitrary"),
            vmem_limit_bytes=_VMEM_LIMIT),
    )(*inputs)


# ----------------------------------------------------------------------------
# LayerNorm(x + residual), row-tiled (f32 residual stream)
# ----------------------------------------------------------------------------
def _ln_res_kernel(x_ref, r_ref, g_ref, b_ref, o_ref, *, eps):
    h = x_ref[...] + r_ref[...]
    mu = jnp.mean(h, axis=-1, keepdims=True)
    var = jnp.mean((h - mu) * (h - mu), axis=-1, keepdims=True)
    o_ref[...] = (h - mu) * jax.lax.rsqrt(var + eps) * g_ref[...] + b_ref[...]


def layernorm_residual(x2d, res2d, gamma, beta, eps=1e-5, tm_cap=256):
    M, E = x2d.shape
    tm = _pick_tile(M, tm_cap)
    return pl.pallas_call(
        functools.partial(_ln_res_kernel, eps=eps),
        out_shape=jax.ShapeDtypeStruct((M, E), jnp.float32),
        grid=(M // tm,),
        in_specs=[pl.BlockSpec((tm, E), lambda i: (i, 0)),
                  pl.BlockSpec((tm, E), lambda i: (i, 0)),
                  pl.BlockSpec((1, E), lambda i: (0, 0)),
                  pl.BlockSpec((1, E), lambda i: (0, 0))],
        out_specs=pl.BlockSpec((tm, E), lambda i: (i, 0)),
        compiler_params=pltpu.CompilerParams(dimension_semantics=("parallel",)),
    )(x2d, res2d, gamma.reshape(1, E), beta.reshape(1, E))


# ----------------------------------------------------------------------------
# fused relative multi-head attention
#   grid = (batch, head_block); per head:
#     AC = (q+u) k^T and BD_hat = (q+v) P^T on the MXU, rel-shift on the XLU,
#     additive mask, softmax with approx reciprocal, PV on the MXU.
# ----------------------------------------------------------------------------
def _rel_attn_kernel(q_ref, k_ref, v_ref, p_ref, u_ref, vb_ref, mask_ref, o_ref,
                     *, heads_per_block, head_dim, scale, shift_base,
                     use_strided_roll):
    mask_add = mask_ref[...]                                   # (S, T) f32, 0 / -1e30
    # NOTE: heads_per_block is small (1-2 for 128-friendly head layouts); each
    # head's result is stored before the next head's temporaries are created.
    for i in range(heads_per_block):
        sl = slice(i * head_dim, (i + 1) * head_dim)
        q = q_ref[0, :, sl]                                    # (S, D) bf16
        k = k_ref[0, :, sl]                                    # (T, D) bf16
        v = v_ref[0, :, sl]                                    # (T, D) bf16
        r = p_ref[:, sl]                                       # (T, D) bf16

        qu = (q + u_ref[:, sl]) * scale                        # content-biased query
        qv = (q + vb_ref[:, sl]) * scale                       # position-biased query

        ac = jax.lax.dot_general(
            qu, k, (((1,), (1,)), ((), ())),
            preferred_element_type=jnp.float32)                # (S, T)
        bd_hat = jax.lax.dot_general(
            qv, r, (((1,), (1,)), ((), ())),
            preferred_element_type=jnp.float32)                # (S, T)
        bd = _shift_rel_scores(bd_hat, shift_base, use_strided_roll)

        score = ac + bd + mask_add
        score = score - jnp.max(score, axis=-1, keepdims=True)
        prob = jnp.exp(score)
        prob = prob * pl.reciprocal(jnp.sum(prob, axis=-1, keepdims=True),
                                    approx=True)

        o_ref[0, :, sl] = jnp.dot(prob.astype(jnp.bfloat16), v,
                                  preferred_element_type=jnp.float32
                                  ).astype(o_ref.dtype)


def rel_attention(q3, kv3, p2d, u_flat, v_flat, mask_add, *,
                  num_heads, head_dim, scale, shift_base):
    """q3: (B, S, H*D) bf16; kv3: (B, T, 2*H*D) bf16 (K columns then V columns);
    p2d: (T, H*D) bf16; u_flat/v_flat: (1, H*D) bf16; mask_add: (S, T) f32.
    Returns (B, S, H*D) bf16."""
    B, S, HD = q3.shape
    T = kv3.shape[1]
    H, D = num_heads, head_dim
    g = _heads_per_block(H, D)
    nb = H // g
    blk = g * D

    packed_ok = blk % 128 == 0
    if packed_ok:
        # Read K / V straight out of the packed kv projection (two views of
        # the same array, no slice copies in HBM).
        k_in, v_in = kv3, kv3
        k_map = lambda b, h: (b, 0, h)
        v_map = lambda b, h: (b, 0, nb + h)
    else:
        # Awkward head width: fall back to explicit K / V slices (full-dim
        # blocks keep the BlockSpec legal).
        k_in = kv3[:, :, :HD]
        v_in = kv3[:, :, HD:]
        k_map = lambda b, h: (b, 0, h)
        v_map = lambda b, h: (b, 0, h)

    kernel = functools.partial(
        _rel_attn_kernel, heads_per_block=g, head_dim=D, scale=scale,
        shift_base=shift_base, use_strided_roll=_strided_roll_ok())

    return pl.pallas_call(
        kernel,
        out_shape=jax.ShapeDtypeStruct((B, S, HD), jnp.bfloat16),
        grid=(B, nb),
        in_specs=[
            pl.BlockSpec((1, S, blk), lambda b, h: (b, 0, h)),
            pl.BlockSpec((1, T, blk), k_map),
            pl.BlockSpec((1, T, blk), v_map),
            pl.BlockSpec((T, blk), lambda b, h: (0, h)),
            pl.BlockSpec((1, blk), lambda b, h: (0, h)),
            pl.BlockSpec((1, blk), lambda b, h: (0, h)),
            pl.BlockSpec((S, T), lambda b, h: (0, 0)),
        ],
        out_specs=pl.BlockSpec((1, S, blk), lambda b, h: (b, 0, h)),
        compiler_params=pltpu.CompilerParams(
            dimension_semantics=("parallel", "parallel"),
            vmem_limit_bytes=_VMEM_LIMIT),
    )(q3.astype(jnp.bfloat16), k_in.astype(jnp.bfloat16),
      v_in.astype(jnp.bfloat16), p2d.astype(jnp.bfloat16),
      u_flat.astype(jnp.bfloat16), v_flat.astype(jnp.bfloat16),
      mask_add.astype(jnp.float32))


# ----------------------------------------------------------------------------
# tied output projection fused with cross-entropy (online LSE over the vocab)
# ----------------------------------------------------------------------------
def _proj_ce_kernel(x_ref, w_ref, b_ref, t_ref, logits_ref, nll_ref,
                    acc_ref, m_ref, l_ref, pick_ref, *, tv):
    j = pl.program_id(1)
    k = pl.program_id(2)

    @pl.when((j == 0) & (k == 0))
    def _():
        m_ref[...] = jnp.full_like(m_ref, -1e30)
        l_ref[...] = jnp.zeros_like(l_ref)
        pick_ref[...] = jnp.zeros_like(pick_ref)

    @pl.when(k == 0)
    def _():
        acc_ref[...] = jnp.zeros_like(acc_ref)

    # logits tile: x (tm, tk) contracted with emb (tv, tk) along features
    acc_ref[...] += jax.lax.dot_general(
        x_ref[...], w_ref[...], (((1,), (1,)), ((), ())),
        preferred_element_type=jnp.float32)

    @pl.when(k == pl.num_programs(2) - 1)
    def _():
        logits = acc_ref[...] + b_ref[...]                      # (tm, tv) f32
        logits_ref[...] = logits.astype(logits_ref.dtype)

        col = j * tv + jax.lax.broadcasted_iota(jnp.int32, logits.shape, 1)
        hit = col == t_ref[...]
        pick_ref[...] += jnp.sum(jnp.where(hit, logits, 0.0), axis=-1,
                                 keepdims=True)

        m_new = jnp.maximum(m_ref[...], jnp.max(logits, axis=-1, keepdims=True))
        l_ref[...] = (l_ref[...] * jnp.exp(m_ref[...] - m_new)
                      + jnp.sum(jnp.exp(logits - m_new), axis=-1, keepdims=True))
        m_ref[...] = m_new

    @pl.when((j == pl.num_programs(1) - 1) & (k == pl.num_programs(2) - 1))
    def _():
        nll_ref[...] = m_ref[...] + jnp.log(l_ref[...]) - pick_ref[...]


def project_and_loss(x2d, emb, bias, targets,
                     tm_cap=256, tv_cap=512, tk_cap=512):
    """logits = x2d @ emb^T + bias (tied weights, no emb.T materialized) and
    per-row cross-entropy NLL computed in the same pass (no logits re-read)."""
    M, E = x2d.shape
    V = emb.shape[0]
    tm, tv, tk = _pick_tile(M, tm_cap), _pick_tile(V, tv_cap), _pick_tile(E, tk_cap)
    grid = (M // tm, V // tv, E // tk)
    return pl.pallas_call(
        functools.partial(_proj_ce_kernel, tv=tv),
        out_shape=(jax.ShapeDtypeStruct((M, V), jnp.float32),
                   jax.ShapeDtypeStruct((M, 1), jnp.float32)),
        grid=grid,
        in_specs=[pl.BlockSpec((tm, tk), lambda i, j, k: (i, k)),
                  pl.BlockSpec((tv, tk), lambda i, j, k: (j, k)),
                  pl.BlockSpec((1, tv), lambda i, j, k: (0, j)),
                  pl.BlockSpec((tm, 1), lambda i, j, k: (i, 0))],
        out_specs=(pl.BlockSpec((tm, tv), lambda i, j, k: (i, j)),
                   pl.BlockSpec((tm, 1), lambda i, j, k: (i, 0))),
        scratch_shapes=[pltpu.VMEM((tm, tv), jnp.float32),
                        pltpu.VMEM((tm, 1), jnp.float32),
                        pltpu.VMEM((tm, 1), jnp.float32),
                        pltpu.VMEM((tm, 1), jnp.float32)],
        compiler_params=pltpu.CompilerParams(
            dimension_semantics=("parallel", "arbitrary", "arbitrary"),
            vmem_limit_bytes=_VMEM_LIMIT),
    )(x2d.astype(jnp.bfloat16), emb.astype(jnp.bfloat16),
      bias.reshape(1, V).astype(jnp.float32),
      targets.reshape(M, 1).astype(jnp.int32))


# ----------------------------------------------------------------------------
# Parameters (deterministic synthetic init, mirrors the PyTorch module shapes)
# ----------------------------------------------------------------------------
def init_params(key, vocab, num_layers, num_heads, model_dim, mha_inner, ff_inner):
    E, H, D = model_dim, num_heads, mha_inner
    keys = iter(jax.random.split(key, 4 + 8 * num_layers))

    def nrm(shape, s=0.05):
        return s * jax.random.normal(next(keys), shape, dtype=jnp.float32)

    params = {
        "emb": nrm((vocab, E)),            # word embedding (tied output proj)
        "out_bias": jnp.zeros((vocab,), jnp.float32),
        "u": nrm((H, D)),                  # global content bias
        "v": nrm((H, D)),                  # global position bias
        "layers": [],
    }
    for _ in range(num_layers):
        params["layers"].append({
            "wq": nrm((E, H * D)),         # linear_q  (no bias)
            "wkv": nrm((E, 2 * H * D)),    # linear_kv (no bias)
            "wp": nrm((E, H * D)),         # linear_p  (no bias)
            "wo": nrm((H * D, E)),         # output projection (no bias)
            "ln1_g": jnp.ones((E,), jnp.float32),
            "ln1_b": jnp.zeros((E,), jnp.float32),
            "w1": nrm((E, ff_inner)),
            "b1": jnp.zeros((ff_inner,), jnp.float32),
            "w2": nrm((ff_inner, E)),
            "b2": jnp.zeros((E,), jnp.float32),
            "ln2_g": jnp.ones((E,), jnp.float32),
            "ln2_b": jnp.zeros((E,), jnp.float32),
        })
    return params


# ----------------------------------------------------------------------------
# TransformerXL forward (glue = reshapes / gathers; hot path = Pallas kernels)
# ----------------------------------------------------------------------------
def transformer_xl_forward(params, indices, target, memory, cfg):
    S, B = indices.shape
    E, H, D = cfg["model_dim"], cfg["num_heads"], cfg["mha_inner"]
    HD = H * D
    vocab = cfg["vocab"]
    P = memory[0].shape[0]
    T = P + S
    scale = 1.0 / math.sqrt(D)

    # word embedding gather (glue), scaled as in StandardWordEmbedding;
    # activations are kept batch-major (B, S, E) for the whole stack.
    word_emb = jnp.take(params["emb"], jnp.transpose(indices).reshape(-1), axis=0)
    word_emb = word_emb.reshape(B, S, E) * math.sqrt(E)

    # per-layer memory to batch-major once (module boundary is (P, B, E))
    memory_b = [jnp.transpose(m, (1, 0, 2)) for m in memory]

    # sinusoidal relative positional embedding for positions T-1 .. 0
    pos = jnp.arange(T - 1, -1, -1, dtype=jnp.float32)
    inv_freq = 1.0 / (10000.0 ** (jnp.arange(0, E, 2, dtype=jnp.float32) / E))
    sinus = pos[:, None] * inv_freq[None, :]
    rel_pos = jnp.concatenate([jnp.sin(sinus), jnp.cos(sinus)], axis=-1)  # (T,E)

    # additive causal mask (0 keep / -1e30 drop), identical for all heads/batch
    rows = jnp.arange(S)[:, None]
    cols = jnp.arange(T)[None, :]
    mask_add = jnp.where(cols > rows + P, jnp.float32(-1e30), jnp.float32(0.0))

    u_flat = params["u"].reshape(1, HD).astype(jnp.bfloat16)
    v_flat = params["v"].reshape(1, HD).astype(jnp.bfloat16)

    hidden_states = [word_emb]
    x = word_emb                                                      # (B,S,E) f32
    for l, lp in enumerate(params["layers"]):
        mem = memory_b[l]
        x_cat = x if P == 0 else jnp.concatenate([mem, x], axis=1)    # (B,T,E)
        x2d = x.reshape(B * S, E)

        q2d = linear(x2d, lp["wq"], out_dtype=jnp.bfloat16)           # (B*S, HD)
        kv2d = linear(x_cat.reshape(B * T, E), lp["wkv"],
                      out_dtype=jnp.bfloat16)                         # (B*T, 2HD)
        p2d = linear(rel_pos, lp["wp"], out_dtype=jnp.bfloat16)       # (T, HD)

        attn = rel_attention(q2d.reshape(B, S, HD),
                             kv2d.reshape(B, T, 2 * HD),
                             p2d, u_flat, v_flat, mask_add,
                             num_heads=H, head_dim=D, scale=scale,
                             shift_base=P + 1)                        # (B,S,HD) bf16

        attn_out = linear(attn.reshape(B * S, HD), lp["wo"])          # (B*S, E) f32
        mha_out = layernorm_residual(attn_out, x2d, lp["ln1_g"], lp["ln1_b"])
        h1 = linear(mha_out, lp["w1"], lp["b1"], relu=True,
                    out_dtype=jnp.bfloat16)
        h2 = linear(h1, lp["w2"], lp["b2"])
        x = layernorm_residual(h2, mha_out,
                               lp["ln2_g"], lp["ln2_b"]).reshape(B, S, E)
        hidden_states.append(x)

    # tied output projection + cross entropy, logits kept in (S, B, V) order
    x_seq = jnp.transpose(x, (1, 0, 2)).reshape(S * B, E)
    logits2d, per_row_nll = project_and_loss(x_seq, params["emb"],
                                             params["out_bias"],
                                             target.reshape(-1))
    logits = logits2d.reshape(S, B, vocab)
    loss = jnp.mean(per_row_nll)

    # updateMemory semantics (batch-major internally, (M, B, E) at the boundary)
    new_memory = []
    i_end = P + S
    i_begin = max(0, i_end - cfg["memory_len"])
    for mem, hid in zip(memory_b, hidden_states):
        cat = hid if P == 0 else jnp.concatenate([mem, hid], axis=1)
        new_memory.append(jax.lax.stop_gradient(
            jnp.transpose(cat[:, i_begin:i_end], (1, 0, 2))))

    return {"loss": loss, "logits": logits, "memory": new_memory}


# ----------------------------------------------------------------------------
# plain-JAX reference for the fused attention kernel (used for a self-check)
# ----------------------------------------------------------------------------
def _attention_reference(q, kv, p, u, vb, mask_add, H, D, scale):
    B, S, HD = q.shape
    T = kv.shape[1]
    qf = q.astype(jnp.float32).reshape(B, S, H, D)
    kf = kv[:, :, :HD].astype(jnp.float32).reshape(B, T, H, D)
    vf = kv[:, :, HD:].astype(jnp.float32).reshape(B, T, H, D)
    pf = p.astype(jnp.float32).reshape(T, H, D)
    uf = u.astype(jnp.float32).reshape(H, D)
    vbf = vb.astype(jnp.float32).reshape(H, D)
    ac = jnp.einsum("bshd,bthd->bhst", qf + uf, kf)
    bd_hat = jnp.einsum("bshd,thd->bhst", qf + vbf, pf)
    gather = jnp.clip(jnp.arange(T)[None, :] + (S - 1) - jnp.arange(S)[:, None],
                      0, T - 1)
    gather = jnp.broadcast_to(gather[None, None], (B, H, S, T))
    bd = jnp.take_along_axis(bd_hat, gather, axis=-1)
    prob = jax.nn.softmax((ac + bd) * scale + mask_add[None, None], axis=-1)
    out = jnp.einsum("bhst,bthd->bshd", prob, vf)
    return out.reshape(B, S, HD)


# ----------------------------------------------------------------------------
if __name__ == "__main__":
    vocab, num_layers, num_heads = 512, 2, 2
    model_dim, mha_inner, ff_inner = 128, 128, 256
    S, B, memory_len = 128, 4, 128

    cfg = dict(vocab=vocab, num_heads=num_heads, model_dim=model_dim,
               mha_inner=mha_inner, memory_len=memory_len)

    key = jax.random.PRNGKey(0)
    kp, ki, kt = jax.random.split(key, 3)
    params = init_params(kp, vocab, num_layers, num_heads,
                         model_dim, mha_inner, ff_inner)

    # --- targeted self-check of the fused attention kernel (incl. in-kernel
    # --- rel-shift) against a plain-JAX reference at the forward's shapes.
    H, D, HD = num_heads, mha_inner, num_heads * mha_inner
    T = S  # P == 0 on the first forward call
    kq, kkv, kp2, ku, kv2 = jax.random.split(jax.random.PRNGKey(1), 5)
    q_t = (0.5 * jax.random.normal(kq, (B, S, HD))).astype(jnp.bfloat16)
    kv_t = (0.5 * jax.random.normal(kkv, (B, T, 2 * HD))).astype(jnp.bfloat16)
    p_t = (0.5 * jax.random.normal(kp2, (T, HD))).astype(jnp.bfloat16)
    u_t = (0.1 * jax.random.normal(ku, (1, HD))).astype(jnp.bfloat16)
    vb_t = (0.1 * jax.random.normal(kv2, (1, HD))).astype(jnp.bfloat16)
    m_rows = jnp.arange(S)[:, None]
    m_cols = jnp.arange(T)[None, :]
    mask_t = jnp.where(m_cols > m_rows, jnp.float32(-1e30), jnp.float32(0.0))
    att_scale = 1.0 / math.sqrt(D)
    got = rel_attention(q_t, kv_t, p_t, u_t, vb_t, mask_t, num_heads=H,
                        head_dim=D, scale=att_scale, shift_base=1)
    want = _attention_reference(q_t, kv_t, p_t, u_t, vb_t, mask_t, H, D,
                                att_scale)
    assert jnp.allclose(got.astype(jnp.float32), want, rtol=5e-2, atol=2e-2), \
        "fused relative attention deviates from reference"

    # --- full forward pass (memory=None path: empty per-layer memories, P=0)
    indices = jax.random.randint(ki, (S, B), 0, vocab, dtype=jnp.int32)
    target = jax.random.randint(kt, (S, B), 0, vocab, dtype=jnp.int32)
    memory = [jnp.zeros((0, B, model_dim), jnp.float32)
              for _ in range(num_layers + 1)]

    out = transformer_xl_forward(params, indices, target, memory, cfg)
    jax.block_until_ready(out["loss"])
    jax.block_until_ready(out["logits"])
    for m in out["memory"]:
        jax.block_until_ready(m)

    assert out["logits"].shape == (S, B, vocab)
    assert all(m.shape == (min(memory_len, S), B, model_dim)
               for m in out["memory"])
    assert bool(jnp.isfinite(out["loss"]))
    print("KERNEL_OK")
</pallas_src>

<mosaic_0001>
module attributes {stable_mosaic.version = 11 : i64} {
  func.func @_roll_probe_kernel(%arg0: memref<16x128xf32, #tpu.memory_space<vmem>>, %arg1: memref<16x128xf32, #tpu.memory_space<vmem>>) attributes {dimension_semantics = [], scalar_prefetch = 0 : i64, scratch_operands = 0 : i64, tpu.core_type = #tpu.core_type<tc>} {
    %c0 = arith.constant 0 : index
    %c0_0 = arith.constant 0 : index
    %0 = vector.load %arg0[%c0, %c0_0] : memref<16x128xf32, #tpu.memory_space<vmem>>, vector<16x128xf32>
    %c120_i32 = arith.constant 120 : i32
    %1 = tpu.dynamic_rotate %0 by %c120_i32 dim 1 {stride = 1 : si32, stride_dimension = 0 : si32} : vector<16x128xf32>, i32 -> vector<16x128xf32>
    %c0_1 = arith.constant 0 : index
    %c0_2 = arith.constant 0 : index
    %2 = vector.load %arg1[%c0_1, %c0_2] : memref<16x128xf32, #tpu.memory_space<vmem>>, vector<16x128xf32>
    tpu.vector_store %arg1[%c0_1, %c0_2], %1 {strides = array<i32>} : memref<16x128xf32, #tpu.memory_space<vmem>>, vector<16x128xf32>,
    return
  }
}

module attributes {stable_mosaic.version = 11 : i64} {
  func.func @_rel_attn_kernel(%arg0: i32, %arg1: i32, %arg2: memref<1x128x128xbf16, #tpu.memory_space<vmem>>, %arg3: memref<1x128x128xbf16, #tpu.memory_space<vmem>>, %arg4: memref<1x128x128xbf16, #tpu.memory_space<vmem>>, %arg5: memref<128x128xbf16, #tpu.memory_space<vmem>>, %arg6: memref<1x128xbf16, #tpu.memory_space<vmem>>, %arg7: memref<1x128xbf16, #tpu.memory_space<vmem>>, %arg8: memref<128x128xf32, #tpu.memory_space<vmem>>, %arg9: memref<1x128x128xbf16, #tpu.memory_space<vmem>>) attributes {dimension_semantics = [#tpu.dimension_semantics<parallel>, #tpu.dimension_semantics<parallel>], iteration_bounds = array<i64: 4, 2>, scalar_prefetch = 0 : i64, scratch_operands = 0 : i64, tpu.core_type = #tpu.core_type<tc>, window_params = [{transform_indices = @transform_0, window_bounds = array<i64: 1, 128, 128>}, {transform_indices = @transform_1, window_bounds = array<i64: 1, 128, 128>}, {transform_indices = @transform_2, window_bounds = array<i64: 1, 128, 128>}, {transform_indices = @transform_3, window_bounds = array<i64: 128, 128>}, {transform_indices = @transform_4, window_bounds = array<i64: 1, 128>}, {transform_indices = @transform_5, window_bounds = array<i64: 1, 128>}, {pipeline_mode = #tpu.pipeline_mode<synchronous>, transform_indices = @transform_6, window_bounds = array<i64: 128, 128>}, {transform_indices = @transform_7, window_bounds = array<i64: 1, 128, 128>}]} {
    %c0 = arith.constant 0 : index
    %c0_0 = arith.constant 0 : index
    %0 = vector.load %arg8[%c0, %c0_0] : memref<128x128xf32, #tpu.memory_space<vmem>>, vector<128x128xf32>
    %c0_1 = arith.constant 0 : index
    %c0_2 = arith.constant 0 : index
    %c0_3 = arith.constant 0 : index
    %1 = vector.load %arg2[%c0_1, %c0_2, %c0_3] : memref<1x128x128xbf16, #tpu.memory_space<vmem>>, vector<1x128x128xbf16>
    %2 = vector.shape_cast %1 : vector<1x128x128xbf16> to vector<128x128xbf16>
    %c0_4 = arith.constant 0 : index
    %c0_5 = arith.constant 0 : index
    %c0_6 = arith.constant 0 : index
    %3 = vector.load %arg3[%c0_4, %c0_5, %c0_6] : memref<1x128x128xbf16, #tpu.memory_space<vmem>>, vector<1x128x128xbf16>
    %4 = vector.shape_cast %3 : vector<1x128x128xbf16> to vector<128x128xbf16>
    %c0_7 = arith.constant 0 : index
    %c0_8 = arith.constant 0 : index
    %c0_9 = arith.constant 0 : index
    %5 = vector.load %arg4[%c0_7, %c0_8, %c0_9] : memref<1x128x128xbf16, #tpu.memory_space<vmem>>, vector<1x128x128xbf16>
    %6 = vector.shape_cast %5 : vector<1x128x128xbf16> to vector<128x128xbf16>
    %c0_10 = arith.constant 0 : index
    %c0_11 = arith.constant 0 : index
    %7 = vector.load %arg5[%c0_10, %c0_11] : memref<128x128xbf16, #tpu.memory_space<vmem>>, vector<128x128xbf16>
    %c0_12 = arith.constant 0 : index
    %c0_13 = arith.constant 0 : index
    %8 = vector.load %arg6[%c0_12, %c0_13] : memref<1x128xbf16, #tpu.memory_space<vmem>>, vector<1x128xbf16>
    %9 = vector.broadcast %8 : vector<1x128xbf16> to vector<128x128xbf16>
    %10 = arith.addf %2, %9 : vector<128x128xbf16>
    %cst = arith.constant 8.837890e-02 : bf16
    %11 = vector.broadcast %cst : bf16 to vector<128x128xbf16>
    %12 = arith.mulf %10, %11 : vector<128x128xbf16>
    %c0_14 = arith.constant 0 : index
    %c0_15 = arith.constant 0 : index
    %13 = vector.load %arg7[%c0_14, %c0_15] : memref<1x128xbf16, #tpu.memory_space<vmem>>, vector<1x128xbf16>
    %14 = vector.broadcast %13 : vector<1x128xbf16> to vector<128x128xbf16>
    %15 = arith.addf %2, %14 : vector<128x128xbf16>
    %cst_16 = arith.constant 8.837890e-02 : bf16
    %16 = vector.broadcast %cst_16 : bf16 to vector<128x128xbf16>
    %17 = arith.mulf %15, %16 : vector<128x128xbf16>
    %cst_17 = arith.constant dense<0.000000e+00> : vector<128x128xf32>
    %18 = tpu.matmul %12, %4, %cst_17 {dimension_numbers = #tpu.dot_dimension_numbers<[1], [1], [0], [0], [0, 0, 1, 0], [], []>} : vector<128x128xbf16>, vector<128x128xbf16>, vector<128x128xf32> -> vector<128x128xf32>
    %cst_18 = arith.constant dense<0.000000e+00> : vector<128x128xf32>
    %19 = tpu.matmul %17, %7, %cst_18 {dimension_numbers = #tpu.dot_dimension_numbers<[1], [1], [0], [0], [0, 0, 1, 0], [], []>} : vector<128x128xbf16>, vector<128x128xbf16>, vector<128x128xf32> -> vector<128x128xf32>
    %20 = tpu.iota {dimensions = array<i32: 0>} : vector<128x1xi32>
    %c1_i32 = arith.constant 1 : i32
    %21 = vector.broadcast %c1_i32 : i32 to vector<128x1xi32>
    %22 = arith.addi %20, %21 : vector<128x1xi32>
    %c128_i32 = arith.constant 128 : i32
    %c0_i32 = arith.constant 0 : i32
    %23 = arith.cmpi eq, %c128_i32, %c0_i32 : i32
    %c1_i32_19 = arith.constant 1 : i32
    %24 = arith.select %23, %c1_i32_19, %c128_i32 : i32
    %25 = vector.broadcast %24 : i32 to vector<128x1xi32>
    %26 = arith.remsi %22, %25 : vector<128x1xi32>
    %c0_i32_20 = arith.constant 0 : i32
    %27 = vector.broadcast %c0_i32_20 : i32 to vector<128x1xi32>
    %28 = arith.cmpi ne, %26, %27 : vector<128x1xi32>
    %c0_i32_21 = arith.constant 0 : i32
    %29 = vector.broadcast %c0_i32_21 : i32 to vector<128x1xi32>
    %30 = arith.cmpi slt, %26, %29 : vector<128x1xi32>
    %c0_i32_22 = arith.constant 0 : i32
    %31 = arith.cmpi slt, %24, %c0_i32_22 : i32
    %32 = vector.broadcast %31 : i1 to vector<128x1xi1>
    %33 = vector.broadcast %32 : vector<128x1xi1> to vector<128x1xi1>
    %34 = arith.xori %30, %33 : vector<128x1xi1>
    %35 = arith.andi %34, %28 : vector<128x1xi1>
    %36 = vector.broadcast %24 : i32 to vector<128x1xi32>
    %37 = arith.addi %26, %36 : vector<128x1xi32>
    %38 = arith.select %35, %37, %26 : vector<128x1xi1>, vector<128x1xi32>
    %39 = vector.extract_strided_slice %19 {offsets = [0, 127], sizes = [128, 1], strides = [1, 1]} : vector<128x128xf32> to vector<128x1xf32>
    %40 = vector.extract_strided_slice %19 {offsets = [0, 0], sizes = [128, 127], strides = [1, 1]} : vector<128x128xf32> to vector<128x127xf32>
    %41 = tpu.concatenate %39, %40 in 1 : vector<128x1xf32>, vector<128x127xf32> -> vector<128x128xf32>
    %c0_i32_23 = arith.constant 0 : i32
    %42 = vector.broadcast %c0_i32_23 : i32 to vector<128x1xi32>
    %43 = arith.shrsi %38, %42 : vector<128x1xi32>
    %c1_i32_24 = arith.constant 1 : i32
    %44 = vector.broadcast %c1_i32_24 : i32 to vector<128x1xi32>
    %45 = arith.andi %43, %44 : vector<128x1xi32>
    %c1_i32_25 = arith.constant 1 : i32
    %46 = vector.broadcast %c1_i32_25 : i32 to vector<128x1xi32>
    %47 = arith.cmpi eq, %45, %46 : vector<128x1xi32>
    %48 = vector.shape_cast %47 : vector<128x1xi1> to vector<128x1xi1>
    %49 = vector.broadcast %48 : vector<128x1xi1> to vector<128x128xi1>
    %50 = arith.select %49, %41, %19 : vector<128x128xi1>, vector<128x128xf32>
    %51 = vector.extract_strided_slice %50 {offsets = [0, 126], sizes = [128, 2], strides = [1, 1]} : vector<128x128xf32> to vector<128x2xf32>
    %52 = vector.extract_strided_slice %50 {offsets = [0, 0], sizes = [128, 126], strides = [1, 1]} : vector<128x128xf32> to vector<128x126xf32>
    %53 = tpu.concatenate %51, %52 in 1 : vector<128x2xf32>, vector<128x126xf32> -> vector<128x128xf32>
    %c1_i32_26 = arith.constant 1 : i32
    %54 = vector.broadcast %c1_i32_26 : i32 to vector<128x1xi32>
    %55 = arith.shrsi %38, %54 : vector<128x1xi32>
    %c1_i32_27 = arith.constant 1 : i32
    %56 = vector.broadcast %c1_i32_27 : i32 to vector<128x1xi32>
    %57 = arith.andi %55, %56 : vector<128x1xi32>
    %c1_i32_28 = arith.constant 1 : i32
    %58 = vector.broadcast %c1_i32_28 : i32 to vector<128x1xi32>
    %59 = arith.cmpi eq, %57, %58 : vector<128x1xi32>
    %60 = vector.shape_cast %59 : vector<128x1xi1> to vector<128x1xi1>
    %61 = vector.broadcast %60 : vector<128x1xi1> to vector<128x128xi1>
    %62 = arith.select %61, %53, %50 : vector<128x128xi1>, vector<128x128xf32>
    %63 = vector.extract_strided_slice %62 {offsets = [0, 124], sizes = [128, 4], strides = [1, 1]} : vector<128x128xf32> to vector<128x4xf32>
    %64 = vector.extract_strided_slice %62 {offsets = [0, 0], sizes = [128, 124], strides = [1, 1]} : vector<128x128xf32> to vector<128x124xf32>
    %65 = tpu.concatenate %63, %64 in 1 : vector<128x4xf32>, vector<128x124xf32> -> vector<128x128xf32>
    %c2_i32 = arith.constant 2 : i32
    %66 = vector.broadcast %c2_i32 : i32 to vector<128x1xi32>
    %67 = arith.shrsi %38, %66 : vector<128x1xi32>
    %c1_i32_29 = arith.constant 1 : i32
    %68 = vector.broadcast %c1_i32_29 : i32 to vector<128x1xi32>
    %69 = arith.andi %67, %68 : vector<128x1xi32>
    %c1_i32_30 = arith.constant 1 : i32
    %70 = vector.broadcast %c1_i32_30 : i32 to vector<128x1xi32>
    %71 = arith.cmpi eq, %69, %70 : vector<128x1xi32>
    %72 = vector.shape_cast %71 : vector<128x1xi1> to vector<128x1xi1>
    %73 = vector.broadcast %72 : vector<128x1xi1> to vector<128x128xi1>
    %74 = arith.select %73, %65, %62 : vector<128x128xi1>, vector<128x128xf32>
    %75 = vector.extract_strided_slice %74 {offsets = [0, 120], sizes = [128, 8], strides = [1, 1]} : vector<128x128xf32> to vector<128x8xf32>
    %76 = vector.extract_strided_slice %74 {offsets = [0, 0], sizes = [128, 120], strides = [1, 1]} : vector<128x128xf32> to vector<128x120xf32>
    %77 = tpu.concatenate %75, %76 in 1 : vector<128x8xf32>, vector<128x120xf32> -> vector<128x128xf32>
    %c3_i32 = arith.constant 3 : i32
    %78 = vector.broadcast %c3_i32 : i32 to vector<128x1xi32>
    %79 = arith.shrsi %38, %78 : vector<128x1xi32>
    %c1_i32_31 = arith.constant 1 : i32
    %80 = vector.broadcast %c1_i32_31 : i32 to vector<128x1xi32>
    %81 = arith.andi %79, %80 : vector<128x1xi32>
    %c1_i32_32 = arith.constant 1 : i32
    %82 = vector.broadcast %c1_i32_32 : i32 to vector<128x1xi32>
    %83 = arith.cmpi eq, %81, %82 : vector<128x1xi32>
    %84 = vector.shape_cast %83 : vector<128x1xi1> to vector<128x1xi1>
    %85 = vector.broadcast %84 : vector<128x1xi1> to vector<128x128xi1>
    %86 = arith.select %85, %77, %74 : vector<128x128xi1>, vector<128x128xf32>
    %87 = vector.extract_strided_slice %86 {offsets = [0, 112], sizes = [128, 16], strides = [1, 1]} : vector<128x128xf32> to vector<128x16xf32>
    %88 = vector.extract_strided_slice %86 {offsets = [0, 0], sizes = [128, 112], strides = [1, 1]} : vector<128x128xf32> to vector<128x112xf32>
    %89 = tpu.concatenate %87, %88 in 1 : vector<128x16xf32>, vector<128x112xf32> -> vector<128x128xf32>
    %c4_i32 = arith.constant 4 : i32
    %90 = vector.broadcast %c4_i32 : i32 to vector<128x1xi32>
    %91 = arith.shrsi %38, %90 : vector<128x1xi32>
    %c1_i32_33 = arith.constant 1 : i32
    %92 = vector.broadcast %c1_i32_33 : i32 to vector<128x1xi32>
    %93 = arith.andi %91, %92 : vector<128x1xi32>
    %c1_i32_34 = arith.constant 1 : i32
    %94 = vector.broadcast %c1_i32_34 : i32 to vector<128x1xi32>
    %95 = arith.cmpi eq, %93, %94 : vector<128x1xi32>
    %96 = vector.shape_cast %95 : vector<128x1xi1> to vector<128x1xi1>
    %97 = vector.broadcast %96 : vector<128x1xi1> to vector<128x128xi1>
    %98 = arith.select %97, %89, %86 : vector<128x128xi1>, vector<128x128xf32>
    %99 = vector.extract_strided_slice %98 {offsets = [0, 96], sizes = [128, 32], strides = [1, 1]} : vector<128x128xf32> to vector<128x32xf32>
    %100 = vector.extract_strided_slice %98 {offsets = [0, 0], sizes = [128, 96], strides = [1, 1]} : vector<128x128xf32> to vector<128x96xf32>
    %101 = tpu.concatenate %99, %100 in 1 : vector<128x32xf32>, vector<128x96xf32> -> vector<128x128xf32>
    %c5_i32 = arith.constant 5 : i32
    %102 = vector.broadcast %c5_i32 : i32 to vector<128x1xi32>
    %103 = arith.shrsi %38, %102 : vector<128x1xi32>
    %c1_i32_35 = arith.constant 1 : i32
    %104 = vector.broadcast %c1_i32_35 : i32 to vector<128x1xi32>
    %105 = arith.andi %103, %104 : vector<128x1xi32>
    %c1_i32_36 = arith.constant 1 : i32
    %106 = vector.broadcast %c1_i32_36 : i32 to vector<128x1xi32>
    %107 = arith.cmpi eq, %105, %106 : vector<128x1xi32>
    %108 = vector.shape_cast %107 : vector<128x1xi1> to vector<128x1xi1>
    %109 = vector.broadcast %108 : vector<128x1xi1> to vector<128x128xi1>
    %110 = arith.select %109, %101, %98 : vector<128x128xi1>, vector<128x128xf32>
    %111 = vector.extract_strided_slice %110 {offsets = [0, 64], sizes = [128, 64], strides = [1, 1]} : vector<128x128xf32> to vector<128x64xf32>
    %112 = vector.extract_strided_slice %110 {offsets = [0, 0], sizes = [128, 64], strides = [1, 1]} : vector<128x128xf32> to vector<128x64xf32>
    %113 = tpu.concatenate %111, %112 in 1 : vector<128x64xf32>, vector<128x64xf32> -> vector<128x128xf32>
    %c6_i32 = arith.constant 6 : i32
    %114 = vector.broadcast %c6_i32 : i32 to vector<128x1xi32>
    %115 = arith.shrsi %38, %114 : vector<128x1xi32>
    %c1_i32_37 = arith.constant 1 : i32
    %116 = vector.broadcast %c1_i32_37 : i32 to vector<128x1xi32>
    %117 = arith.andi %115, %116 : vector<128x1xi32>
    %c1_i32_38 = arith.constant 1 : i32
    %118 = vector.broadcast %c1_i32_38 : i32 to vector<128x1xi32>
    %119 = arith.cmpi eq, %117, %118 : vector<128x1xi32>
    %120 = vector.shape_cast %119 : vector<128x1xi1> to vector<128x1xi1>
    %121 = vector.broadcast %120 : vector<128x1xi1> to vector<128x128xi1>
    %122 = arith.select %121, %113, %110 : vector<128x128xi1>, vector<128x128xf32>
    %123 = arith.addf %18, %122 : vector<128x128xf32>
    %124 = arith.addf %123, %0 : vector<128x128xf32>
    %cst_39 = arith.constant dense<0xFF800000> : vector<128xf32>
    %125 = vector.multi_reduction <maximumf>, %124, %cst_39 [1] : vector<128x128xf32> to vector<128xf32>
    %126 = vector.shape_cast %125 : vector<128xf32> to vector<128x1xf32>
    %127 = vector.broadcast %126 : vector<128x1xf32> to vector<128x128xf32>
    %128 = arith.subf %124, %127 : vector<128x128xf32>
    %129 = math.exp %128 : vector<128x128xf32>
    %cst_40 = arith.constant dense<0.000000e+00> : vector<128xf32>
    %130 = vector.multi_reduction <add>, %129, %cst_40 [1] : vector<128x128xf32> to vector<128xf32>
    %131 = vector.shape_cast %130 : vector<128xf32> to vector<128x1xf32>
    %132 = tpu.reciprocal %131 {approx = true} : vector<128x1xf32> -> vector<128x1xf32>
    %133 = vector.broadcast %132 : vector<128x1xf32> to vector<128x128xf32>
    %134 = arith.mulf %129, %133 : vector<128x128xf32>
    %135 = arith.truncf %134 : vector<128x128xf32> to vector<128x128xbf16>
    %cst_41 = arith.constant dense<0.000000e+00> : vector<128x128xf32>
    %136 = tpu.matmul %135, %6, %cst_41 {dimension_numbers = #tpu.dot_dimension_numbers<[1], [0], [0], [1], [0, 0, 1, 1], [], []>} : vector<128x128xbf16>, vector<128x128xbf16>, vector<128x128xf32> -> vector<128x128xf32>
    %137 = arith.truncf %136 : vector<128x128xf32> to vector<128x128xbf16>
    %c0_42 = arith.constant 0 : index
    %c0_43 = arith.constant 0 : index
    %c0_44 = arith.constant 0 : index
    %138 = vector.load %arg9[%c0_42, %c0_43, %c0_44] : memref<1x128x128xbf16, #tpu.memory_space<vmem>>, vector<1x128x128xbf16>
    %139 = vector.shape_cast %138 : vector<1x128x128xbf16> to vector<128x128xbf16>
    %140 = vector.shape_cast %137 : vector<128x128xbf16> to vector<1x128x128xbf16>
    tpu.vector_store %arg9[%c0_42, %c0_43, %c0_44], %140 {strides = array<i32>} : memref<1x128x128xbf16, #tpu.memory_space<vmem>>, vector<1x128x128xbf16>,
    return
  }
  func.func @transform_0(%arg0: i32, %arg1: i32) -> (i32, i32, i32) {
    %c0_i32 = arith.constant 0 : i32
    %c0_i32_0 = arith.constant 0 : i32
    return %arg0, %c0_i32, %arg1 : i32, i32, i32
  }
  func.func @transform_1(%arg0: i32, %arg1: i32) -> (i32, i32, i32) {
    %c0_i32 = arith.constant 0 : i32
    %c0_i32_0 = arith.constant 0 : i32
    return %arg0, %c0_i32, %arg1 : i32, i32, i32
  }
  func.func @transform_2(%arg0: i32, %arg1: i32) -> (i32, i32, i32) {
    %c2_i32 = arith.constant 2 : i32
    %0 = arith.addi %c2_i32, %arg1 : i32
    %c0_i32 = arith.constant 0 : i32
    %c0_i32_0 = arith.constant 0 : i32
    return %arg0, %c0_i32, %0 : i32, i32, i32
  }
  func.func @transform_3(%arg0: i32, %arg1: i32) -> (i32, i32) {
    %c0_i32 = arith.constant 0 : i32
    %c0_i32_0 = arith.constant 0 : i32
    return %c0_i32, %arg1 : i32, i32
  }
  func.func @transform_4(%arg0: i32, %arg1: i32) -> (i32, i32) {
    %c0_i32 = arith.constant 0 : i32
    %c0_i32_0 = arith.constant 0 : i32
    return %c0_i32, %arg1 : i32, i32
  }
  func.func @transform_5(%arg0: i32, %arg1: i32) -> (i32, i32) {
    %c0_i32 = arith.constant 0 : i32
    %c0_i32_0 = arith.constant 0 : i32
    return %c0_i32, %arg1 : i32, i32
  }
  func.func @transform_6(%arg0: i32, %arg1: i32) -> (i32, i32) {
    %c0_i32 = arith.constant 0 : i32
    %c0_i32_0 = arith.constant 0 : i32
    %c0_i32_1 = arith.constant 0 : i32
    return %c0_i32, %c0_i32_0 : i32, i32
  }
  func.func @transform_7(%arg0: i32, %arg1: i32) -> (i32, i32, i32) {
    %c0_i32 = arith.constant 0 : i32
    %c0_i32_0 = arith.constant 0 : i32
    return %arg0, %c0_i32, %arg1 : i32, i32, i32
  }
}

</mosaic_0001>

<llo_original>
// kernel: tpu_custom_call.1
$region0: #{tpu_custom_call.1}
  #allocation0 [shape = 'u32[]', space=smem, size = 0x4, offset = 0x4, fixed_abs, tag = 'smem constant byte address 0x4 - core index']
  #allocation1 [shape = 'u32[144,128]{1,0:T(1,128)}', space=vmem, size = 0x12000, scoped, tag = 'internal scratch']
  %s0 = inlined_call_operand.hbm [shape: f32[16,128], index: 0, kind: input, shape index: {}]
  %s1 = inlined_call_operand.hbm [shape: f32[16,128], index: 1, kind: output, shape index: {}]
  %s2 = sld [smem:[#allocation0]]
  $region18: #{tpu_custom_call.1} parent=0
    _
  %s4 = ssub.s32 1, %s2
  %s5 = scalar_select 0, %s4, %s2
  $region1: #{tpu_custom_call.1} parent=0
    #allocation2 [shape = 'u8[8192]{0}', space=vmem, size = 0x2000, scoped, tag = 'input window, operand 0, single buffered']
    #allocation3 [shape = 's32[1]{0}', space=sflag, size = 0x4, scoped, tag = 'scoped memory for tpu_custom_call.1']
    #allocation4 [shape = 's32[1]{0}', space=sflag, size = 0x4, scoped, tag = 'scoped memory for tpu_custom_call.1']
    #allocation5 [shape = 'u8[8192]{0}', space=vmem, size = 0x2000, scoped, tag = 'output window, operand 0, single buffered']
    %6 = vsyncpa [#allocation3], 0
    %7 = vsyncpa [#allocation4], 0
    // Predicated region
    $region2: #{tpu_custom_call.1} parent=1 // pred_check
      _
    $region3: #{tpu_custom_call.1} parent=1 // pred_check_branch
      %9 = sbr.rel (0) target = $region5
    $region4: #{tpu_custom_call.1} parent=1 // pred_region
      %s11 = ssub.s32 256, 256
      %12 = vsyncadd [#allocation3], %s11
      %s13 = sshll.u32 [#allocation2], 4
      %s14 = int_to_ptr.vmem [resolvable:$true] %s13
      %19 = dma.hbm_to_vmem [thread:$0]  %s0, 256, %s14, [#allocation3], 128, 128, 8
    $region5: #{tpu_custom_call.1} parent=1 // pred_fallthru
      _
    // Predicated region
    $region6: #{tpu_custom_call.1} parent=1 // pred_check
      _
    $region7: #{tpu_custom_call.1} parent=1 // pred_check_branch
      %21 = sbr.rel (0) target = $region9
    $region8: #{tpu_custom_call.1} parent=1 // pred_region
      %22 = dma.done [#allocation3], 256
    $region9: #{tpu_custom_call.1} parent=1 // pred_fallthru
      _
    %v23 = vld [vmem:[#allocation2] sm:$0xff]
    %v24 = vld [vmem:[#allocation2 + $0x8] sm:$0xff]
    %s26 = sor.u32 256, 120
    %27 = vrot.lane.b32.xlu0 %v23, %s26
    %v28 = vpop.permute.xlu0 %27
    %30 = vrot.lane.b32.xlu0 %v24, 256
    %v31 = vpop.permute.xlu0 %30
    %32 = vst [vmem:[#allocation5] sm:$0xff] %v28
    %33 = vst [vmem:[#allocation5 + $0x8] sm:$0xff] %v31
    // Predicated region
    $region10: #{tpu_custom_call.1} parent=1 // pred_check
      _
    $region11: #{tpu_custom_call.1} parent=1 // pred_check_branch
      %35 = sbr.rel (0) target = $region13
    $region12: #{tpu_custom_call.1} parent=1 // pred_region
      %s37 = ssub.s32 256, 256
      %38 = vsyncadd [#allocation4], %s37
      %s39 = sshll.u32 [#allocation5], 4
      %s40 = int_to_ptr.vmem [resolvable:$true] %s39
      %45 = dma.vmem_to_hbm [thread:$0]  %s40, 256, %s1, [#allocation4], 128, 128, 8
    $region13: #{tpu_custom_call.1} parent=1 // pred_fallthru
      _
    // Predicated region
    $region14: #{tpu_custom_call.1} parent=1 // pred_check
      _
    $region15: #{tpu_custom_call.1} parent=1 // pred_check_branch
      %47 = sbr.rel (0) target = $region17
    $region16: #{tpu_custom_call.1} parent=1 // pred_region
      %48 = dma.done [#allocation4], 256
    $region17: #{tpu_custom_call.1} parent=1 // pred_fallthru
      _
    %49 = vsyncpa [#allocation3], 1
    %50 = vsyncpa [#allocation4], 1

// kernel: tpu_custom_call.1
$region0: #{tpu_custom_call.1}
  #allocation0 [shape = 'u32[]', space=smem, size = 0x4, offset = 0x4, fixed_abs, tag = 'smem constant byte address 0x4 - core index']
  #allocation1 [shape = 'u32[144,128]{1,0:T(1,128)}', space=vmem, size = 0x12000, scoped, tag = 'internal scratch']
  %s0 = inlined_call_operand.hbm [shape: bf16[4,128,256], index: 0, kind: input, shape index: {}]
  %s1 = inlined_call_operand.hbm [shape: bf16[4,128,512], index: 1, kind: input, shape index: {}]
  %s2 = inlined_call_operand.hbm [shape: bf16[4,128,512], index: 2, kind: input, shape index: {}]
  %s3 = inlined_call_operand.hbm [shape: bf16[128,256], index: 3, kind: input, shape index: {}]
  %s4 = inlined_call_operand.vmem [shape: bf16[1,256], index: 4, kind: input, shape index: {}]
  %s5 = inlined_call_operand.vmem [shape: bf16[1,256], index: 5, kind: input, shape index: {}]
  %s6 = inlined_call_operand.hbm [shape: f32[128,128], index: 6, kind: input, shape index: {}]
  %s7 = inlined_call_operand.hbm [shape: bf16[4,128,256], index: 7, kind: output, shape index: {}]
  %s8 = sld [smem:[#allocation0]]
  $region81: #{tpu_custom_call.1} parent=0
    _
  %s10 = ssub.s32 1, %s8
  %s11 = scalar_select 0, %s10, %s8
  $region1: #{tpu_custom_call.1} parent=0
    #allocation2 [shape = 'u8[65536]{0}', space=vmem, size = 0x10000, scoped, tag = 'input window, operand 0']
    #allocation3 [shape = 's32[2]{0}', space=sflag, size = 0x8, scoped, tag = 'scoped memory for tpu_custom_call.1']
    #allocation4 [shape = 's32[2]{0}', space=sflag, size = 0x8, scoped, tag = 'scoped memory for tpu_custom_call.1']
    #allocation5 [shape = 'u8[65536]{0}', space=vmem, size = 0x10000, scoped, tag = 'input window, operand 1']
    #allocation6 [shape = 's32[2]{0}', space=sflag, size = 0x8, scoped, tag = 'scoped memory for tpu_custom_call.1']
    #allocation7 [shape = 'u8[65536]{0}', space=vmem, size = 0x10000, scoped, tag = 'input window, operand 2']
    #allocation8 [shape = 'u8[65536]{0}', space=vmem, size = 0x10000, scoped, tag = 'input window, operand 3']
    #allocation9 [shape = 's32[2]{0}', space=sflag, size = 0x8, scoped, tag = 'scoped memory for tpu_custom_call.1']
    #allocation10 [shape = 'u8[65536]{0}', space=vmem, size = 0x10000, scoped, tag = 'input window, operand 6, single buffered']
    #allocation11 [shape = 'u8[65536]{0}', space=vmem, size = 0x10000, scoped, tag = 'output window, operand 0']
    %12 = vsyncpa [#allocation3], 0
    %s13 = scalar_lea.sflag [#allocation3], 1
    %14 = vsyncpa %s13, 0
    %15 = vsyncpa [#allocation6], 0
    %s16 = scalar_lea.sflag [#allocation6], 1
    %17 = vsyncpa %s16, 0
    %18 = vsyncpa [#allocation9], 0
    %s19 = scalar_lea.sflag [#allocation9], 1
    %20 = vsyncpa %s19, 0
    %21 = vsyncpa [#allocation4], 0
    %s22 = scalar_lea.sflag [#allocation4], 1
    %23 = vsyncpa %s22, 0
    loop: start=0, step=1, limit=10
    $region2: #{tpu_custom_call.1} parent=1 // loop_pre_header
      _
    $region3: #{tpu_custom_call.1} parent=1 // loop_header
      %s25 = sphi 0, %s29
      %p26 = scmp.ge.s32.totalorder %s25, 10
      %s32 = sphi 0, %s44
      %s33 = sphi 0, %s40
      %s34 = sphi 0, %s32
      %s35 = sphi 0, %s33
      %s36 = sphi 0, %s34
      %s37 = sphi 0, %s35
      %s49 = sphi 0, %s51
      %s52 = sphi 0, %s49
      %s53 = sphi 0, %s52
      %s69 = sphi 0, %s53
      %s77 = sphi 0, %s79
      %s80 = sphi 0, %s77
      %s81 = sphi 0, %s80
      %s97 = sphi 0, %s81
      %s107 = sphi 0, %s109
      %s110 = sphi 0, %s107
      %s111 = sphi 0, %s110
      %s127 = sphi 0, %s111
      %s133 = sphi 0, %s135
      %s136 = sphi 0, %s133
      %s137 = sphi 0, %s136
      %s153 = sphi 0, %s137
      %s159 = sphi 0, %s161
      %s162 = sphi 0, %s159
      %s163 = sphi 0, %s162
      %s179 = sphi 0, %s163
      %s185 = sphi 0, %s187
      %s188 = sphi 0, %s185
      %s189 = sphi 0, %s188
      %s205 = sphi 0, %s189
      %s209 = sphi 0, %s209
      %s211 = sphi 0, %s209
      %s212 = sphi 0, %s211
      %s226 = sphi 0, %s212
      %s234 = sphi 0, %s236
      %s237 = sphi 0, %s234
      %s238 = sphi 0, %s237
      %s254 = sphi 0, %s238
    $region4: #{tpu_custom_call.1} parent=1 // loop_header_branch
      %28 = sbr.rel (%p26) target = $region8
    $region5: #{tpu_custom_call.1} parent=1 // loop_body
      %s30 = ssub.s32 %s25, 1
      %s31 = ssub.s32 %s25, 2
      %s38 = sadd.s32 1, %s33
      %p39 = scmp.ge.s32.totalorder %s38, 2
      %s40 = scalar_select %p39, 0, %s38
      %s41 = sadd.s32 1, %s32
      %s42 = scalar_select %p39, %s41, %s32
      %p43 = scmp.ge.s32.totalorder %s42, 4
      %s44 = scalar_select %p43, 0, %s42
      %s45 = ssub.s32 %s32, %s44
      %s46 = ssub.s32 %s33, %s40
      %s47 = sor.u32 %s45, %s46
      %p48 = scmp.eq.s32.totalorder %s47, 0
      %s50 = sadd.s32 %s49, 1
      %s51 = scalar_select %p48, %s49, %s50
      %p54 = pneg %p48
      %p55 = scmp.eq.s32.totalorder %s25, 7
      %p56 = por %p54, %p55
      %p57 = scmp.ne.s32.totalorder %s49, %s52
      %p58 = scmp.eq.s32.totalorder %s25, 0
      %p59 = por %p57, %p58
      %p60 = scmp.ne.s32.totalorder %s49, %s52
      %p61 = scmp.eq.s32.totalorder %s30, 7
      %p62 = por %p60, %p61
      %p63 = scmp.ne.s32.totalorder %s52, %s53
      %p64 = scmp.eq.s32.totalorder %s30, 0
      %p65 = por %p63, %p64
      %p66 = scmp.ne.s32.totalorder %s52, %s53
      %p67 = scmp.eq.s32.totalorder %s31, 7
      %p68 = por %p66, %p67
      %p70 = scmp.ne.s32.totalorder %s53, %s69
      %p71 = scmp.eq.s32.totalorder %s31, 0
      %p72 = por %p70, %p71
      %s73 = ssub.s32 %s32, %s44
      %s74 = ssub.s32 %s33, %s40
      %s75 = sor.u32 %s73, %s74
      %p76 = scmp.eq.s32.totalorder %s75, 0
      %s78 = sadd.s32 %s77, 1
      %s79 = scalar_select %p76, %s77, %s78
      %p82 = pneg %p76
      %p83 = scmp.eq.s32.totalorder %s25, 7
      %p84 = por %p82, %p83
      %p85 = scmp.ne.s32.totalorder %s77, %s80
      %p86 = scmp.eq.s32.totalorder %s25, 0
      %p87 = por %p85, %p86
      %p88 = scmp.ne.s32.totalorder %s77, %s80
      %p89 = scmp.eq.s32.totalorder %s30, 7
      %p90 = por %p88, %p89
      %p91 = scmp.ne.s32.totalorder %s80, %s81
      %p92 = scmp.eq.s32.totalorder %s30, 0
      %p93 = por %p91, %p92
      %p94 = scmp.ne.s32.totalorder %s80, %s81
      %p95 = scmp.eq.s32.totalorder %s31, 7
      %p96 = por %p94, %p95
      %p98 = scmp.ne.s32.totalorder %s81, %s97
      %p99 = scmp.eq.s32.totalorder %s31, 0
      %p100 = por %p98, %p99
      %s101 = sadd.s32 %s33, 2
      %s102 = sadd.s32 %s40, 2
      %s103 = ssub.s32 %s32, %s44
      %s104 = ssub.s32 %s101, %s102
      %s105 = sor.u32 %s103, %s104
      %p106 = scmp.eq.s32.totalorder %s105, 0
      %s108 = sadd.s32 %s107, 1
      %s109 = scalar_select %p106, %s107, %s108
      %p112 = pneg %p106
      %p113 = scmp.eq.s32.totalorder %s25, 7
      %p114 = por %p112, %p113
      %p115 = scmp.ne.s32.totalorder %s107, %s110
      %p116 = scmp.eq.s32.totalorder %s25, 0
      %p117 = por %p115, %p116
      %p118 = scmp.ne.s32.totalorder %s107, %s110
      %p119 = scmp.eq.s32.totalorder %s30, 7
      %p120 = por %p118, %p119
      %p121 = scmp.ne.s32.totalorder %s110, %s111
      %p122 = scmp.eq.s32.totalorder %s30, 0
      %p123 = por %p121, %p122
      %p124 = scmp.ne.s32.totalorder %s110, %s111
      %p125 = scmp.eq.s32.totalorder %s31, 7
      %p126 = por %p124, %p125
      %p128 = scmp.ne.s32.totalorder %s111, %s127
      %p129 = scmp.eq.s32.totalorder %s31, 0
      %p130 = por %p128, %p129
      %s131 = ssub.s32 %s33, %s40
      %p132 = scmp.eq.s32.totalorder %s131, 0
      %s134 = sadd.s32 %s133, 1
      %s135 = scalar_select %p132, %s133, %s134
      %p138 = pneg %p132
      %p139 = scmp.eq.s32.totalorder %s25, 7
      %p140 = por %p138, %p139
      %p141 = scmp.ne.s32.totalorder %s133, %s136
      %p142 = scmp.eq.s32.totalorder %s25, 0
      %p143 = por %p141, %p142
      %p144 = scmp.ne.s32.totalorder %s133, %s136
      %p145 = scmp.eq.s32.totalorder %s30, 7
      %p146 = por %p144, %p145
      %p147 = scmp.ne.s32.totalorder %s136, %s137
      %p148 = scmp.eq.s32.totalorder %s30, 0
      %p149 = por %p147, %p148
      %p150 = scmp.ne.s32.totalorder %s136, %s137
      %p151 = scmp.eq.s32.totalorder %s31, 7
      %p152 = por %p150, %p151
      %p154 = scmp.ne.s32.totalorder %s137, %s153
      %p155 = scmp.eq.s32.totalorder %s31, 0
      %p156 = por %p154, %p155
      %s157 = ssub.s32 %s33, %s40
      %p158 = scmp.eq.s32.totalorder %s157, 0
      %s160 = sadd.s32 %s159, 1
      %s161 = scalar_select %p158, %s159, %s160
      %p164 = pneg %p158
      %p165 = scmp.eq.s32.totalorder %s25, 7
      %p166 = por %p164, %p165
      %p167 = scmp.ne.s32.totalorder %s159, %s162
      %p168 = scmp.eq.s32.totalorder %s25, 0
      %p169 = por %p167, %p168
      %p170 = scmp.ne.s32.totalorder %s159, %s162
      %p171 = scmp.eq.s32.totalorder %s30, 7
      %p172 = por %p170, %p171
      %p173 = scmp.ne.s32.totalorder %s162, %s163
      %p174 = scmp.eq.s32.totalorder %s30, 0
      %p175 = por %p173, %p174
      %p176 = scmp.ne.s32.totalorder %s162, %s163
      %p177 = scmp.eq.s32.totalorder %s31, 7
      %p178 = por %p176, %p177
      %p180 = scmp.ne.s32.totalorder %s163, %s179
      %p181 = scmp.eq.s32.totalorder %s31, 0
      %p182 = por %p180, %p181
      %s183 = ssub.s32 %s33, %s40
      %p184 = scmp.eq.s32.totalorder %s183, 0
      %s186 = sadd.s32 %s185, 1
      %s187 = scalar_select %p184, %s185, %s186
      %p190 = pneg %p184
      %p191 = scmp.eq.s32.totalorder %s25, 7
      %p192 = por %p190, %p191
      %p193 = scmp.ne.s32.totalorder %s185, %s188
      %p194 = scmp.eq.s32.totalorder %s25, 0
      %p195 = por %p193, %p194
      %p196 = scmp.ne.s32.totalorder %s185, %s188
      %p197 = scmp.eq.s32.totalorder %s30, 7
      %p198 = por %p196, %p197
      %p199 = scmp.ne.s32.totalorder %s188, %s189
      %p200 = scmp.eq.s32.totalorder %s30, 0
      %p201 = por %p199, %p200
      %p202 = scmp.ne.s32.totalorder %s188, %s189
      %p203 = scmp.eq.s32.totalorder %s31, 7
      %p204 = por %p202, %p203
      %p206 = scmp.ne.s32.totalorder %s189, %s205
      %p207 = scmp.eq.s32.totalorder %s31, 0
      %p208 = por %p206, %p207
      %s210 = sadd.s32 %s209, 1
      %p213 = scmp.eq.s32.totalorder %s25, 7
      %p214 = scmp.ne.s32.totalorder %s209, %s211
      %p215 = scmp.eq.s32.totalorder %s25, 0
      %p216 = por %p214, %p215
      %p217 = scmp.ne.s32.totalorder %s209, %s211
      %p218 = scmp.eq.s32.totalorder %s30, 7
      %p219 = por %p217, %p218
      %p220 = scmp.ne.s32.totalorder %s211, %s212
      %p221 = scmp.eq.s32.totalorder %s30, 0
      %p222 = por %p220, %p221
      %p223 = scmp.ne.s32.totalorder %s211, %s212
      %p224 = scmp.eq.s32.totalorder %s31, 7
      %p225 = por %p223, %p224
      %p227 = scmp.ne.s32.totalorder %s212, %s226
      %p228 = scmp.eq.s32.totalorder %s31, 0
      %p229 = por %p227, %p228
      %s230 = ssub.s32 %s32, %s44
      %s231 = ssub.s32 %s33, %s40
      %s232 = sor.u32 %s230, %s231
      %p233 = scmp.eq.s32.totalorder %s232, 0
      %s235 = sadd.s32 %s234, 1
      %s236 = scalar_select %p233, %s234, %s235
      %p239 = pneg %p233
      %p240 = scmp.eq.s32.totalorder %s25, 7
      %p241 = por %p239, %p240
      %p242 = scmp.ne.s32.totalorder %s234, %s237
      %p243 = scmp.eq.s32.totalorder %s25, 0
      %p244 = por %p242, %p243
      %p245 = scmp.ne.s32.totalorder %s234, %s237
      %p246 = scmp.eq.s32.totalorder %s30, 7
      %p247 = por %p245, %p246
      %p248 = scmp.ne.s32.totalorder %s237, %s238
      %p249 = scmp.eq.s32.totalorder %s30, 0
      %p250 = por %p248, %p249
      %p251 = scmp.ne.s32.totalorder %s237, %s238
      %p252 = scmp.eq.s32.totalorder %s31, 7
      %p253 = por %p251, %p252
      %p255 = scmp.ne.s32.totalorder %s238, %s254
      %p256 = scmp.eq.s32.totalorder %s31, 0
      %p257 = por %p255, %p256
      %p258 = scmp.le.s32.totalorder 1, %s25
      %p259 = scmp.lt.s32.totalorder %s25, 9
      %p260 = pnand %p258, %p259
      %p261 = pneg %p260
      // Predicated region
      $region9: #{tpu_custom_call.1} parent=5 // pred_check
        _
      $region10: #{tpu_custom_call.1} parent=5 // pred_check_branch
        %263 = sbr.rel (%p260) target = $region12
      $region11: #{tpu_custom_call.1} parent=5 // pred_region
        %s264 = ssub.s32 %s25, 1
        // Predicated region
        $region13: #{tpu_custom_call.1} parent=11 // pred_check
          %p265 = pneg %p222
        $region14: #{tpu_custom_call.1} parent=11 // pred_check_branch
          %267 = sbr.rel (%p265) target = $region16
        $region15: #{tpu_custom_call.1} parent=11 // pred_region
          %s269 = ssub.s32 2048, 2048
          %270 = vsyncadd [#allocation9], %s269
          %s271 = sshll.u32 [#allocation10], 4
          %s272 = int_to_ptr.vmem [resolvable:$true] %s271
          %277 = dma.hbm_to_vmem [thread:$0]  %s6, 2048, %s272, [#allocation9], 128, 128, 8
        $region16: #{tpu_custom_call.1} parent=11 // pred_fallthru
          _
      $region12: #{tpu_custom_call.1} parent=5 // pred_fallthru
        _
      %p278 = scmp.lt.s32.totalorder %s25, 8
      // Predicated region
      $region17: #{tpu_custom_call.1} parent=5 // pred_check
        %p279 = pneg %p278
      $region18: #{tpu_custom_call.1} parent=5 // pred_check_branch
        %281 = sbr.rel (%p279) target = $region20
      $region19: #{tpu_custom_call.1} parent=5 // pred_region
        // Predicated region
        $region21: #{tpu_custom_call.1} parent=19 // pred_check
          %p282 = pneg %p59
        $region22: #{tpu_custom_call.1} parent=19 // pred_check_branch
          %284 = sbr.rel (%p282) target = $region24
        $region23: #{tpu_custom_call.1} parent=19 // pred_region
          %s285 = sand.u32 %s49, 1
          %s286 = scalar_lea.sflag [#allocation3], %s285
          %s287 = sand.u32 %s49, 1
          %s288 = smul.addr %s287, 64
          %s289 = scalar_lea.vmem [#allocation2], %s288
          %s291 = ssub.s32 1024, 1024
          %292 = vsyncadd %s286, %s291
          %s293 = smul.addr %s32, 32
          %s294 = sadd.s32 %s33, %s293
          %s295 = smul.addr %s294, 64
          %s296 = scalar_lea.hbm %s0, %s295
          %s297 = sshll.u32 %s289, 4
          %s298 = int_to_ptr.vmem [resolvable:$true] %s297
          %303 = dma.hbm_to_vmem [thread:$0]  %s296, 1024, %s298, %s286, 128, 64, 4
        $region24: #{tpu_custom_call.1} parent=19 // pred_fallthru
          _
        // Predicated region
        $region25: #{tpu_custom_call.1} parent=19 // pred_check
          %p304 = pneg %p87
        $region26: #{tpu_custom_call.1} parent=19 // pred_check_branch
          %306 = sbr.rel (%p304) target = $region28
        $region27: #{tpu_custom_call.1} parent=19 // pred_region
          %s307 = sand.u32 %s25, 1
          %s308 = scalar_lea.sflag [#allocation6], %s307
          %s309 = sand.u32 %s77, 1
          %s310 = smul.addr %s309, 64
          %s311 = scalar_lea.vmem [#allocation5], %s310
          %s313 = ssub.s32 1024, 1024
          %314 = vsyncadd %s308, %s313
          %s315 = smul.addr %s32, 64
          %s316 = sadd.s32 %s33, %s315
          %s317 = smul.addr %s316, 64
          %s318 = scalar_lea.hbm %s1, %s317
          %s319 = sshll.u32 %s311, 4
          %s320 = int_to_ptr.vmem [resolvable:$true] %s319
          %325 = dma.hbm_to_vmem [thread:$0]  %s318, 1024, %s320, %s308, 256, 64, 4
        $region28: #{tpu_custom_call.1} parent=19 // pred_fallthru
          _
        // Predicated region
        $region29: #{tpu_custom_call.1} parent=19 // pred_check
          %p326 = pneg %p117
        $region30: #{tpu_custom_call.1} parent=19 // pred_check_branch
          %328 = sbr.rel (%p326) target = $region32
        $region31: #{tpu_custom_call.1} parent=19 // pred_region
          %s329 = sand.u32 %s25, 1
          %s330 = scalar_lea.sflag [#allocation6], %s329
          %s331 = sand.u32 %s107, 1
          %s332 = smul.addr %s331, 64
          %s333 = scalar_lea.vmem [#allocation7], %s332
          %s334 = sadd.s32 %s33, 2
          %s336 = ssub.s32 1024, 1024
          %337 = vsyncadd %s330, %s336
          %s338 = smul.addr %s32, 64
          %s339 = sadd.s32 %s334, %s338
          %s340 = smul.addr %s339, 64
          %s341 = scalar_lea.hbm %s2, %s340
          %s342 = sshll.u32 %s333, 4
          %s343 = int_to_ptr.vmem [resolvable:$true] %s342
          %348 = dma.hbm_to_vmem [thread:$0]  %s341, 1024, %s343, %s330, 256, 64, 4
        $region32: #{tpu_custom_call.1} parent=19 // pred_fallthru
          _
        // Predicated region
        $region33: #{tpu_custom_call.1} parent=19 // pred_check
          %p349 = pneg %p143
        $region34: #{tpu_custom_call.1} parent=19 // pred_check_branch
          %351 = sbr.rel (%p349) target = $region36
        $region35: #{tpu_custom_call.1} parent=19 // pred_region
          %s352 = sand.u32 %s25, 1
          %s353 = scalar_lea.sflag [#allocation9], %s352
          %s354 = sand.u32 %s133, 1
          %s355 = smul.addr %s354, 64
          %s356 = scalar_lea.vmem [#allocation8], %s355
          %s358 = ssub.s32 1024, 1024
          %359 = vsyncadd %s353, %s358
          %s360 = smul.addr %s33, 64
          %s361 = scalar_lea.hbm %s3, %s360
          %s362 = sshll.u32 %s356, 4
          %s363 = int_to_ptr.vmem [resolvable:$true] %s362
          %368 = dma.hbm_to_vmem [thread:$0]  %s361, 1024, %s363, %s353, 128, 64, 4
        $region36: #{tpu_custom_call.1} parent=19 // pred_fallthru
          _
        // Predicated region
        $region37: #{tpu_custom_call.1} parent=19 // pred_check
          %p369 = pneg %p169
        $region38: #{tpu_custom_call.1} parent=19 // pred_check_branch
          %371 = sbr.rel (%p369) target = $region40
        $region39: #{tpu_custom_call.1} parent=19 // pred_region
          %p372 = scmp.lt.s32.totalorder %s33, 1
          %s373 = scalar_select %p372, %s33, 1
          %s374 = scalar_lea.vmem %s4, %s373
        $region40: #{tpu_custom_call.1} parent=19 // pred_fallthru
          _
        // Predicated region
        $region41: #{tpu_custom_call.1} parent=19 // pred_check
          %p375 = pneg %p195
        $region42: #{tpu_custom_call.1} parent=19 // pred_check_branch
          %377 = sbr.rel (%p375) target = $region44
        $region43: #{tpu_custom_call.1} parent=19 // pred_region
          %p378 = scmp.lt.s32.totalorder %s33, 1
          %s379 = scalar_select %p378, %s33, 1
          %s380 = scalar_lea.vmem %s5, %s379
        $region44: #{tpu_custom_call.1} parent=19 // pred_fallthru
          _
      $region20: #{tpu_custom_call.1} parent=5 // pred_fallthru
        _
      %p381 = scmp.le.s32.totalorder 1, %s25
      %p382 = scmp.lt.s32.totalorder %s25, 9
      %p383 = pnand %p381, %p382
      %p384 = pneg %p383
      // Predicated region
      $region45: #{tpu_custom_call.1} parent=5 // pred_check
        _
      $region46: #{tpu_custom_call.1} parent=5 // pred_check_branch
        %386 = sbr.rel (%p383) target = $region48
      $region47: #{tpu_custom_call.1} parent=5 // pred_region
        %s387 = ssub.s32 %s25, 1
        %s388 = sand.u32 %s52, 1
        %s389 = scalar_lea.sflag [#allocation3], %s388
        %s390 = sand.u32 %s52, 1
        %s391 = smul.addr %s390, 64
        %s392 = scalar_lea.vmem [#allocation2], %s391
        // Predicated region
        $region49: #{tpu_custom_call.1} parent=47 // pred_check
          %p393 = pneg %p65
        $region50: #{tpu_custom_call.1} parent=47 // pred_check_branch
          %395 = sbr.rel (%p393) target = $region52
        $region51: #{tpu_custom_call.1} parent=47 // pred_region
          %396 = dma.done %s389, 1024
        $region52: #{tpu_custom_call.1} parent=47 // pred_fallthru
          _
        %s397 = sand.u32 %s30, 1
        %s398 = scalar_lea.sflag [#allocation6], %s397
        %s399 = sand.u32 %s80, 1
        %s400 = smul.addr %s399, 64
        %s401 = scalar_lea.vmem [#allocation5], %s400
        // Predicated region
        $region53: #{tpu_custom_call.1} parent=47 // pred_check
          %p402 = pneg %p93
        $region54: #{tpu_custom_call.1} parent=47 // pred_check_branch
          %404 = sbr.rel (%p402) target = $region56
        $region55: #{tpu_custom_call.1} parent=47 // pred_region
          %405 = dma.done %s398, 1024
        $region56: #{tpu_custom_call.1} parent=47 // pred_fallthru
          _
        %s406 = sand.u32 %s30, 1
        %s407 = scalar_lea.sflag [#allocation6], %s406
        %s408 = sand.u32 %s110, 1
        %s409 = smul.addr %s408, 64
        %s410 = scalar_lea.vmem [#allocation7], %s409
        // Predicated region
        $region57: #{tpu_custom_call.1} parent=47 // pred_check
          %p411 = pneg %p123
        $region58: #{tpu_custom_call.1} parent=47 // pred_check_branch
          %413 = sbr.rel (%p411) target = $region60
        $region59: #{tpu_custom_call.1} parent=47 // pred_region
          %414 = dma.done %s407, 1024
        $region60: #{tpu_custom_call.1} parent=47 // pred_fallthru
          _
        %s415 = sand.u32 %s30, 1
        %s416 = scalar_lea.sflag [#allocation9], %s415
        %s417 = sand.u32 %s136, 1
        %s418 = smul.addr %s417, 64
        %s419 = scalar_lea.vmem [#allocation8], %s418
        // Predicated region
        $region61: #{tpu_custom_call.1} parent=47 // pred_check
          %p420 = pneg %p149
        $region62: #{tpu_custom_call.1} parent=47 // pred_check_branch
          %422 = sbr.rel (%p420) target = $region64
        $region63: #{tpu_custom_call.1} parent=47 // pred_region
          %423 = dma.done %s416, 1024
        $region64: #{tpu_custom_call.1} parent=47 // pred_fallthru
          _
        // Predicated region
        $region65: #{tpu_custom_call.1} parent=47 // pred_check
          %p424 = pneg %p222
        $region66: #{tpu_custom_call.1} parent=47 // pred_check_branch
          %426 = sbr.rel (%p424) target = $region68
        $region67: #{tpu_custom_call.1} parent=47 // pred_region
          %427 = dma.done [#allocation9], 2048
        $region68: #{tpu_custom_call.1} parent=47 // pred_fallthru
          _
        %s428 = sand.u32 %s52, 1
        %s429 = scalar_lea.sflag [#allocation3], %s428
        %s430 = sand.u32 %s52, 1
        %s431 = smul.addr %s430, 64
        %s432 = scalar_lea.vmem [#allocation2], %s431
        %p433 = pneg %p65
        %p434 = pneg %p62
        %s435 = sand.u32 %s30, 1
        %s436 = scalar_lea.sflag [#allocation6], %s435
        %s437 = sand.u32 %s80, 1
        %s438 = smul.addr %s437, 64
        %s439 = scalar_lea.vmem [#allocation5], %s438
        %p440 = pneg %p93
        %p441 = pneg %p90
        %s442 = sand.u32 %s30, 1
        %s443 = scalar_lea.sflag [#allocation6], %s442
        %s444 = sand.u32 %s110, 1
        %s445 = smul.addr %s444, 64
        %s446 = scalar_lea.vmem [#allocation7], %s445
        %p447 = pneg %p123
        %p448 = pneg %p120
        %s449 = sand.u32 %s30, 1
        %s450 = scalar_lea.sflag [#allocation9], %s449
        %s451 = sand.u32 %s136, 1
        %s452 = smul.addr %s451, 64
        %s453 = scalar_lea.vmem [#allocation8], %s452
        %p454 = pneg %p149
        %p455 = pneg %p146
        %p456 = scmp.lt.s32.totalorder %s35, 1
        %s457 = scalar_select %p456, %s35, 1
        %s458 = scalar_lea.vmem %s4, %s457
        %p459 = pneg %p175
        %p460 = pneg %p172
        %p461 = scmp.lt.s32.totalorder %s35, 1
        %s462 = scalar_select %p461, %s35, 1
        %s463 = scalar_lea.vmem %s5, %s462
        %p464 = pneg %p201
        %p465 = pneg %p198
        %p466 = pneg %p222
        %p467 = pneg %p219
        %p468 = pneg %p250
        %p469 = pneg %p247
        %s470 = sand.u32 %s237, 1
        %s471 = scalar_lea.sflag [#allocation4], %s470
        %s472 = sand.u32 %s237, 1
        %s473 = smul.addr %s472, 64
        %s474 = scalar_lea.vmem [#allocation11], %s473
        %s475 = sadd.s32 %s35, 2
        %p476 = scmp.lt.s32.totalorder %s35, 1
        %s477 = scalar_select %p476, %s35, 1
        %s478 = scalar_lea.vmem %s4, %s477
        %p479 = scmp.lt.s32.totalorder %s35, 1
        %s480 = scalar_select %p479, %s35, 1
        %s481 = scalar_lea.vmem %s5, %s480
        %v484 = vld [vmem:[#allocation10] sm:$0xff]
        %v485 = vld [vmem:[#allocation10 + $0x8] sm:$0xff]
        %v486 = vld [vmem:[#allocation10 + $0x10] sm:$0xff]
        %v487 = vld [vmem:[#allocation10 + $0x18] sm:$0xff]
        %v488 = vld [vmem:[#allocation10 + $0x20] sm:$0xff]
        %v489 = vld [vmem:[#allocation10 + $0x28] sm:$0xff]
        %v490 = vld [vmem:[#allocation10 + $0x30] sm:$0xff]
        %v491 = vld [vmem:[#allocation10 + $0x38] sm:$0xff]
        %v492 = vld [vmem:[#allocation10 + $0x40] sm:$0xff]
        %v493 = vld [vmem:[#allocation10 + $0x48] sm:$0xff]
        %v494 = vld [vmem:[#allocation10 + $0x50] sm:$0xff]
        %v495 = vld [vmem:[#allocation10 + $0x58] sm:$0xff]
        %v496 = vld [vmem:[#allocation10 + $0x60] sm:$0xff]
        %v497 = vld [vmem:[#allocation10 + $0x68] sm:$0xff]
        %v498 = vld [vmem:[#allocation10 + $0x70] sm:$0xff]
        %v499 = vld [vmem:[#allocation10 + $0x78] sm:$0xff]
        %v500 = vld [vmem:[%s392] sm:$0xf]
        %v501 = vld [vmem:[%s392 + $0x4] sm:$0xf]
        %v502 = vld [vmem:[%s392 + $0x8] sm:$0xf]
        %v503 = vld [vmem:[%s392 + $0xc] sm:$0xf]
        %v504 = vld [vmem:[%s392 + $0x10] sm:$0xf]
        %v505 = vld [vmem:[%s392 + $0x14] sm:$0xf]
        %v506 = vld [vmem:[%s392 + $0x18] sm:$0xf]
        %v507 = vld [vmem:[%s392 + $0x1c] sm:$0xf]
        %v508 = vld [vmem:[%s392 + $0x20] sm:$0xf]
        %v509 = vld [vmem:[%s392 + $0x24] sm:$0xf]
        %v510 = vld [vmem:[%s392 + $0x28] sm:$0xf]
        %v511 = vld [vmem:[%s392 + $0x2c] sm:$0xf]
        %v512 = vld [vmem:[%s392 + $0x30] sm:$0xf]
        %v513 = vld [vmem:[%s392 + $0x34] sm:$0xf]
        %v514 = vld [vmem:[%s392 + $0x38] sm:$0xf]
        %v515 = vld [vmem:[%s392 + $0x3c] sm:$0xf]
        %v516 = vld [vmem:[%s401] sm:$0xf]
        %v517 = vld [vmem:[%s401 + $0x4] sm:$0xf]
        %v518 = vld [vmem:[%s401 + $0x8] sm:$0xf]
        %v519 = vld [vmem:[%s401 + $0xc] sm:$0xf]
        %v520 = vld [vmem:[%s401 + $0x10] sm:$0xf]
        %v521 = vld [vmem:[%s401 + $0x14] sm:$0xf]
        %v522 = vld [vmem:[%s401 + $0x18] sm:$0xf]
        %v523 = vld [vmem:[%s401 + $0x1c] sm:$0xf]
        %v524 = vld [vmem:[%s401 + $0x20] sm:$0xf]
        %v525 = vld [vmem:[%s401 + $0x24] sm:$0xf]
        %v526 = vld [vmem:[%s401 + $0x28] sm:$0xf]
        %v527 = vld [vmem:[%s401 + $0x2c] sm:$0xf]
        %v528 = vld [vmem:[%s401 + $0x30] sm:$0xf]
        %v529 = vld [vmem:[%s401 + $0x34] sm:$0xf]
        %v530 = vld [vmem:[%s401 + $0x38] sm:$0xf]
        %v531 = vld [vmem:[%s401 + $0x3c] sm:$0xf]
        %v532 = vld [vmem:[%s410] sm:$0xf]
        %v533 = vld [vmem:[%s410 + $0x4] sm:$0xf]
        %v534 = vld [vmem:[%s410 + $0x8] sm:$0xf]
        %v535 = vld [vmem:[%s410 + $0xc] sm:$0xf]
        %v536 = vld [vmem:[%s410 + $0x10] sm:$0xf]
        %v537 = vld [vmem:[%s410 + $0x14] sm:$0xf]
        %v538 = vld [vmem:[%s410 + $0x18] sm:$0xf]
        %v539 = vld [vmem:[%s410 + $0x1c] sm:$0xf]
        %v540 = vld [vmem:[%s410 + $0x20] sm:$0xf]
        %v541 = vld [vmem:[%s410 + $0x24] sm:$0xf]
        %v542 = vld [vmem:[%s410 + $0x28] sm:$0xf]
        %v543 = vld [vmem:[%s410 + $0x2c] sm:$0xf]
        %v544 = vld [vmem:[%s410 + $0x30] sm:$0xf]
        %v545 = vld [vmem:[%s410 + $0x34] sm:$0xf]
        %v546 = vld [vmem:[%s410 + $0x38] sm:$0xf]
        %v547 = vld [vmem:[%s410 + $0x3c] sm:$0xf]
        %v548 = vld [vmem:[%s419] sm:$0xf]
        %v549 = vld [vmem:[%s419 + $0x4] sm:$0xf]
        %v550 = vld [vmem:[%s419 + $0x8] sm:$0xf]
        %v551 = vld [vmem:[%s419 + $0xc] sm:$0xf]
        %v552 = vld [vmem:[%s419 + $0x10] sm:$0xf]
        %v553 = vld [vmem:[%s419 + $0x14] sm:$0xf]
        %v554 = vld [vmem:[%s419 + $0x18] sm:$0xf]
        %v555 = vld [vmem:[%s419 + $0x1c] sm:$0xf]
        %v556 = vld [vmem:[%s419 + $0x20] sm:$0xf]
        %v557 = vld [vmem:[%s419 + $0x24] sm:$0xf]
        %v558 = vld [vmem:[%s419 + $0x28] sm:$0xf]
        %v559 = vld [vmem:[%s419 + $0x2c] sm:$0xf]
        %v560 = vld [vmem:[%s419 + $0x30] sm:$0xf]
        %v561 = vld [vmem:[%s419 + $0x34] sm:$0xf]
        %v562 = vld [vmem:[%s419 + $0x38] sm:$0xf]
        %v563 = vld [vmem:[%s419 + $0x3c] sm:$0xf]
        %v564 = vld [vmem:[%s478] sm:$0x1]
        %v566 = vpack.i.b16 %v564, %v564
        %v568 = vlaneseq
        %v569 = vshrl.u32 %v568, 7
        %v570 = vsub.s32 0, %v569
        %v571 = vrot.slane %v566, %v570
        %v573 = vunpack.c.l.b16 %v571
        %v574 = vpack.c.b16 %v573, %v573
        %v576 = vadd.bf16 %v500, %v574
        %v577 = vadd.bf16 %v501, %v574
        %v578 = vadd.bf16 %v502, %v574
        %v579 = vadd.bf16 %v503, %v574
        %v580 = vadd.bf16 %v504, %v574
        %v581 = vadd.bf16 %v505, %v574
        %v582 = vadd.bf16 %v506, %v574
        %v583 = vadd.bf16 %v507, %v574
        %v584 = vadd.bf16 %v508, %v574
        %v585 = vadd.bf16 %v509, %v574
        %v586 = vadd.bf16 %v510, %v574
        %v587 = vadd.bf16 %v511, %v574
        %v588 = vadd.bf16 %v512, %v574
        %v589 = vadd.bf16 %v513, %v574
        %v590 = vadd.bf16 %v514, %v574
        %v591 = vadd.bf16 %v515, %v574
        %v592 = vmul.bf16 %v576, 1035287989
        %v593 = vmul.bf16 %v577, 1035287989
        %v594 = vmul.bf16 %v578, 1035287989
        %v595 = vmul.bf16 %v579, 1035287989
        %v596 = vmul.bf16 %v580, 1035287989
        %v597 = vmul.bf16 %v581, 1035287989
        %v598 = vmul.bf16 %v582, 1035287989
        %v599 = vmul.bf16 %v583, 1035287989
        %v600 = vmul.bf16 %v584, 1035287989
        %v601 = vmul.bf16 %v585, 1035287989
        %v602 = vmul.bf16 %v586, 1035287989
        %v603 = vmul.bf16 %v587, 1035287989
        %v604 = vmul.bf16 %v588, 1035287989
        %v605 = vmul.bf16 %v589, 1035287989
        %v606 = vmul.bf16 %v590, 1035287989
        %v607 = vmul.bf16 %v591, 1035287989
        %v608 = vld [vmem:[%s481] sm:$0x1]
        %v610 = vpack.i.b16 %v608, %v608
        %v612 = vlaneseq
        %v613 = vshrl.u32 %v612, 7
        %v614 = vsub.s32 0, %v613
        %v615 = vrot.slane %v610, %v614
        %v617 = vunpack.c.l.b16 %v615
        %v618 = vpack.c.b16 %v617, %v617
        %v620 = vadd.bf16 %v500, %v618
        %v621 = vadd.bf16 %v501, %v618
        %v622 = vadd.bf16 %v502, %v618
        %v623 = vadd.bf16 %v503, %v618
        %v624 = vadd.bf16 %v504, %v618
        %v625 = vadd.bf16 %v505, %v618
        %v626 = vadd.bf16 %v506, %v618
        %v627 = vadd.bf16 %v507, %v618
        %v628 = vadd.bf16 %v508, %v618
        %v629 = vadd.bf16 %v509, %v618
        %v630 = vadd.bf16 %v510, %v618
        %v631 = vadd.bf16 %v511, %v618
        %v632 = vadd.bf16 %v512, %v618
        %v633 = vadd.bf16 %v513, %v618
        %v634 = vadd.bf16 %v514, %v618
        %v635 = vadd.bf16 %v515, %v618
        %v636 = vmul.bf16 %v620, 1035287989
        %v637 = vmul.bf16 %v621, 1035287989
        %v638 = vmul.bf16 %v622, 1035287989
        %v639 = vmul.bf16 %v623, 1035287989
        %v640 = vmul.bf16 %v624, 1035287989
        %v641 = vmul.bf16 %v625, 1035287989
        %v642 = vmul.bf16 %v626, 1035287989
        %v643 = vmul.bf16 %v627, 1035287989
        %v644 = vmul.bf16 %v628, 1035287989
        %v645 = vmul.bf16 %v629, 1035287989
        %v646 = vmul.bf16 %v630, 1035287989
        %v647 = vmul.bf16 %v631, 1035287989
        %v648 = vmul.bf16 %v632, 1035287989
        %v649 = vmul.bf16 %v633, 1035287989
        %v650 = vmul.bf16 %v634, 1035287989
        %v651 = vmul.bf16 %v635, 1035287989
        %v668 = vunpack.c.l.b16 %v636
        %v669 = vunpack.c.l.b16 %v637
        %v670 = vunpack.c.l.b16 %v638
        %v671 = vunpack.c.l.b16 %v639
        %v672 = vunpack.c.l.b16 %v640
        %v673 = vunpack.c.l.b16 %v641
        %v674 = vunpack.c.l.b16 %v642
        %v675 = vunpack.c.l.b16 %v643
        %v676 = vunpack.c.l.b16 %v644
        %v677 = vunpack.c.l.b16 %v645
        %v678 = vunpack.c.l.b16 %v646
        %v679 = vunpack.c.l.b16 %v647
        %v680 = vunpack.c.l.b16 %v648
        %v681 = vunpack.c.l.b16 %v649
        %v682 = vunpack.c.l.b16 %v650
        %v683 = vunpack.c.l.b16 %v651
        %v684 = vpack.c.b16 %v669, %v668
        %v685 = vpack.c.b16 %v671, %v670
        %v686 = vpack.c.b16 %v673, %v672
        %v687 = vpack.c.b16 %v675, %v674
        %v688 = vpack.c.b16 %v677, %v676
        %v689 = vpack.c.b16 %v679, %v678
        %v690 = vpack.c.b16 %v681, %v680
        %v691 = vpack.c.b16 %v683, %v682
        %v716 = vunpack.c.l.b16 %v548
        %v717 = vunpack.c.l.b16 %v549
        %v718 = vunpack.c.l.b16 %v550
        %v719 = vunpack.c.l.b16 %v551
        %v720 = vunpack.c.l.b16 %v552
        %v721 = vunpack.c.l.b16 %v553
        %v722 = vunpack.c.l.b16 %v554
        %v723 = vunpack.c.l.b16 %v555
        %v724 = vunpack.c.l.b16 %v556
        %v725 = vunpack.c.l.b16 %v557
        %v726 = vunpack.c.l.b16 %v558
        %v727 = vunpack.c.l.b16 %v559
        %v728 = vunpack.c.l.b16 %v560
        %v729 = vunpack.c.l.b16 %v561
        %v730 = vunpack.c.l.b16 %v562
        %v731 = vunpack.c.l.b16 %v563
        %v732 = vpack.c.b16 %v717, %v716
        %v733 = vpack.c.b16 %v719, %v718
        %v734 = vpack.c.b16 %v721, %v720
        %v735 = vpack.c.b16 %v723, %v722
        %v736 = vpack.c.b16 %v725, %v724
        %v737 = vpack.c.b16 %v727, %v726
        %v738 = vpack.c.b16 %v729, %v728
        %v739 = vpack.c.b16 %v731, %v730
        %748 = vmatprep.subr.bf16.mxu0 0
        %749 = vmatpush1.bf16.xpose.msra.mxu0 %v739
        %750 = vmatprep.subr.bf16.mxu0 0
        %751 = vmatpush1.bf16.xpose.msra.mxu0 %v738
        %752 = vmatprep.subr.bf16.mxu0 0
        %753 = vmatpush1.bf16.xpose.msra.mxu0 %v737
        %754 = vmatprep.subr.bf16.mxu0 0
        %755 = vmatpush1.bf16.xpose.msra.mxu0 %v736
        %756 = vmatprep.subr.bf16.mxu0 0
        %757 = vmatpush1.bf16.xpose.msra.mxu0 %v735
        %758 = vmatprep.subr.bf16.mxu0 0
        %759 = vmatpush1.bf16.xpose.msra.mxu0 %v734
        %760 = vmatprep.subr.bf16.mxu0 0
        %761 = vmatpush1.bf16.xpose.msra.mxu0 %v733
        %762 = vmatprep.subr.bf16.mxu0 0
        %763 = vmatpush1.bf16.xpose.msra.mxu0 %v732
        %764 = vmatprep.subr.bf16.mxu0 0
        %765 = vmatpush2.bf16.xpose.msra.mxu0 0
        %766 = vmatprep.subr.bf16.mxu0 0
        %767 = vmatpush2.bf16.xpose.msra.mxu0 0
        %768 = vmatprep.subr.bf16.mxu0 0
        %769 = vmatpush2.bf16.xpose.msra.mxu0 0
        %770 = vmatprep.subr.bf16.mxu0 0
        %771 = vmatpush2.bf16.xpose.msra.mxu0 0
        %772 = vmatprep.subr.bf16.mxu0 0
        %773 = vmatpush2.bf16.xpose.msra.mxu0 0
        %774 = vmatprep.subr.bf16.mxu0 0
        %775 = vmatpush2.bf16.xpose.msra.mxu0 0
        %776 = vmatprep.subr.bf16.mxu0 0
        %777 = vmatpush2.bf16.xpose.msra.mxu0 0
        %778 = vmatprep.subr.bf16.mxu0 0
        %779 = vmatpush2.bf16.xpose.msra.mxu0 0
        %780 = vmatprep.mubr.bf16.mxu0 0
        %781 = vmatmul.mubr.bf16.gmra.mxu0 %v684
        %v782 = vpop.f32.mrf.mxu0
        %v783 = vadd.f32 0.0, %v782
        %v784 = vpop.f32.mrf.mxu0
        %v785 = vpop.f32.mrf.mxu0
        %v786 = vadd.f32 0.0, %v785
        %v787 = vpop.f32.mrf.mxu0
        %788 = vmatprep.mubr.bf16.mxu0 0
        %789 = vmatmul.mubr.bf16.gmra.mxu0 %v685
        %v790 = vpop.f32.mrf.mxu0
        %v791 = vadd.f32 0.0, %v790
        %v792 = vpop.f32.mrf.mxu0
        %v793 = vpop.f32.mrf.mxu0
        %v794 = vadd.f32 0.0, %v793
        %v795 = vpop.f32.mrf.mxu0
        %796 = vmatprep.mubr.bf16.mxu0 0
        %797 = vmatmul.mubr.bf16.gmra.mxu0 %v686
        %v798 = vpop.f32.mrf.mxu0
        %v799 = vadd.f32 0.0, %v798
        %v800 = vpop.f32.mrf.mxu0
        %v801 = vpop.f32.mrf.mxu0
        %v802 = vadd.f32 0.0, %v801
        %v803 = vpop.f32.mrf.mxu0
        %804 = vmatprep.mubr.bf16.mxu0 0
        %805 = vmatmul.mubr.bf16.gmra.mxu0 %v687
        %v806 = vpop.f32.mrf.mxu0
        %v807 = vadd.f32 0.0, %v806
        %v808 = vpop.f32.mrf.mxu0
        %v809 = vpop.f32.mrf.mxu0
        %v810 = vadd.f32 0.0, %v809
        %v811 = vpop.f32.mrf.mxu0
        %812 = vmatprep.mubr.bf16.mxu0 0
        %813 = vmatmul.mubr.bf16.gmra.mxu0 %v688
        %v814 = vpop.f32.mrf.mxu0
        %v815 = vadd.f32 0.0, %v814
        %v816 = vpop.f32.mrf.mxu0
        %v817 = vpop.f32.mrf.mxu0
        %v818 = vadd.f32 0.0, %v817
        %v819 = vpop.f32.mrf.mxu0
        %820 = vmatprep.mubr.bf16.mxu0 0
        %821 = vmatmul.mubr.bf16.gmra.mxu0 %v689
        %v822 = vpop.f32.mrf.mxu0
        %v823 = vadd.f32 0.0, %v822
        %v824 = vpop.f32.mrf.mxu0
        %v825 = vpop.f32.mrf.mxu0
        %v826 = vadd.f32 0.0, %v825
        %v827 = vpop.f32.mrf.mxu0
        %828 = vmatprep.mubr.bf16.mxu0 0
        %829 = vmatmul.mubr.bf16.gmra.mxu0 %v690
        %v830 = vpop.f32.mrf.mxu0
        %v831 = vadd.f32 0.0, %v830
        %v832 = vpop.f32.mrf.mxu0
        %v833 = vpop.f32.mrf.mxu0
        %v834 = vadd.f32 0.0, %v833
        %v835 = vpop.f32.mrf.mxu0
        %836 = vmatprep.mubr.bf16.mxu0 0
        %837 = vmatmul.mubr.bf16.gmra.mxu0 %v691
        %v838 = vpop.f32.mrf.mxu0
        %v839 = vadd.f32 0.0, %v838
        %v840 = vpop.f32.mrf.mxu0
        %v841 = vpop.f32.mrf.mxu0
        %v842 = vadd.f32 0.0, %v841
        %v843 = vpop.f32.mrf.mxu0
        %844 = vdwg.mxu0
        %v845 = vlaneseq
        %v846 = vshrl.u32 %v845, 7
        %v847 = vadd.s32 %v846, 8
        %v848 = vadd.s32 %v846, 16
        %v849 = vadd.s32 %v846, 24
        %v850 = vadd.s32 %v846, 32
        %v851 = vadd.s32 %v846, 40
        %v852 = vadd.s32 %v846, 48
        %v853 = vadd.s32 %v846, 56
        %v854 = vadd.s32 %v846, 64
        %v855 = vadd.s32 %v846, 72
        %v856 = vadd.s32 %v846, 80
        %v857 = vadd.s32 %v846, 88
        %v858 = vadd.s32 %v846, 96
        %v859 = vadd.s32 %v846, 104
        %v860 = vadd.s32 %v846, 112
        %v861 = vadd.s32 %v846, 120
        %v862 = vadd.s32 %v846, 1
        %v863 = vadd.s32 %v847, 1
        %v864 = vadd.s32 %v848, 1
        %v865 = vadd.s32 %v849, 1
        %v866 = vadd.s32 %v850, 1
        %v867 = vadd.s32 %v851, 1
        %v868 = vadd.s32 %v852, 1
        %v869 = vadd.s32 %v853, 1
        %v870 = vadd.s32 %v854, 1
        %v871 = vadd.s32 %v855, 1
        %v872 = vadd.s32 %v856, 1
        %v873 = vadd.s32 %v857, 1
        %v874 = vadd.s32 %v858, 1
        %v875 = vadd.s32 %v859, 1
        %v876 = vadd.s32 %v860, 1
        %v877 = vadd.s32 %v861, 1
        %vm878 = vcmp.lt.s32.totalorder %v862, 0
        %v879 = vsub.s32 0, %v862
        %v880 = vsel %vm878, %v879, %v862
        %v881 = vshrl.u32 %v880, 7
        %v882 = vand.u32 %v880, 127
        %v883 = vsub.s32 0, %v882
        %v884 = vsel %vm878, %v883, %v882
        %vm885 = vcmp.lt.s32.totalorder %v863, 0
        %v886 = vsub.s32 0, %v863
        %v887 = vsel %vm885, %v886, %v863
        %v888 = vshrl.u32 %v887, 7
        %v889 = vand.u32 %v887, 127
        %v890 = vsub.s32 0, %v889
        %v891 = vsel %vm885, %v890, %v889
        %vm892 = vcmp.lt.s32.totalorder %v864, 0
        %v893 = vsub.s32 0, %v864
        %v894 = vsel %vm892, %v893, %v864
        %v895 = vshrl.u32 %v894, 7
        %v896 = vand.u32 %v894, 127
        %v897 = vsub.s32 0, %v896
        %v898 = vsel %vm892, %v897, %v896
        %vm899 = vcmp.lt.s32.totalorder %v865, 0
        %v900 = vsub.s32 0, %v865
        %v901 = vsel %vm899, %v900, %v865
        %v902 = vshrl.u32 %v901, 7
        %v903 = vand.u32 %v901, 127
        %v904 = vsub.s32 0, %v903
        %v905 = vsel %vm899, %v904, %v903
        %vm906 = vcmp.lt.s32.totalorder %v866, 0
        %v907 = vsub.s32 0, %v866
        %v908 = vsel %vm906, %v907, %v866
        %v909 = vshrl.u32 %v908, 7
        %v910 = vand.u32 %v908, 127
        %v911 = vsub.s32 0, %v910
        %v912 = vsel %vm906, %v911, %v910
        %vm913 = vcmp.lt.s32.totalorder %v867, 0
        %v914 = vsub.s32 0, %v867
        %v915 = vsel %vm913, %v914, %v867
        %v916 = vshrl.u32 %v915, 7
        %v917 = vand.u32 %v915, 127
        %v918 = vsub.s32 0, %v917
        %v919 = vsel %vm913, %v918, %v917
        %vm920 = vcmp.lt.s32.totalorder %v868, 0
        %v921 = vsub.s32 0, %v868
        %v922 = vsel %vm920, %v921, %v868
        %v923 = vshrl.u32 %v922, 7
        %v924 = vand.u32 %v922, 127
        %v925 = vsub.s32 0, %v924
        %v926 = vsel %vm920, %v925, %v924
        %vm927 = vcmp.lt.s32.totalorder %v869, 0
        %v928 = vsub.s32 0, %v869
        %v929 = vsel %vm927, %v928, %v869
        %v930 = vshrl.u32 %v929, 7
        %v931 = vand.u32 %v929, 127
        %v932 = vsub.s32 0, %v931
        %v933 = vsel %vm927, %v932, %v931
        %vm934 = vcmp.lt.s32.totalorder %v870, 0
        %v935 = vsub.s32 0, %v870
        %v936 = vsel %vm934, %v935, %v870
        %v937 = vshrl.u32 %v936, 7
        %v938 = vand.u32 %v936, 127
        %v939 = vsub.s32 0, %v938
        %v940 = vsel %vm934, %v939, %v938
        %vm941 = vcmp.lt.s32.totalorder %v871, 0
        %v942 = vsub.s32 0, %v871
        %v943 = vsel %vm941, %v942, %v871
        %v944 = vshrl.u32 %v943, 7
        %v945 = vand.u32 %v943, 127
        %v946 = vsub.s32 0, %v945
        %v947 = vsel %vm941, %v946, %v945
        %vm948 = vcmp.lt.s32.totalorder %v872, 0
        %v949 = vsub.s32 0, %v872
        %v950 = vsel %vm948, %v949, %v872
        %v951 = vshrl.u32 %v950, 7
        %v952 = vand.u32 %v950, 127
        %v953 = vsub.s32 0, %v952
        %v954 = vsel %vm948, %v953, %v952
        %vm955 = vcmp.lt.s32.totalorder %v873, 0
        %v956 = vsub.s32 0, %v873
        %v957 = vsel %vm955, %v956, %v873
        %v958 = vshrl.u32 %v957, 7
        %v959 = vand.u32 %v957, 127
        %v960 = vsub.s32 0, %v959
        %v961 = vsel %vm955, %v960, %v959
        %vm962 = vcmp.lt.s32.totalorder %v874, 0
        %v963 = vsub.s32 0, %v874
        %v964 = vsel %vm962, %v963, %v874
        %v965 = vshrl.u32 %v964, 7
        %v966 = vand.u32 %v964, 127
        %v967 = vsub.s32 0, %v966
        %v968 = vsel %vm962, %v967, %v966
        %vm969 = vcmp.lt.s32.totalorder %v875, 0
        %v970 = vsub.s32 0, %v875
        %v971 = vsel %vm969, %v970, %v875
        %v972 = vshrl.u32 %v971, 7
        %v973 = vand.u32 %v971, 127
        %v974 = vsub.s32 0, %v973
        %v975 = vsel %vm969, %v974, %v973
        %vm976 = vcmp.lt.s32.totalorder %v876, 0
        %v977 = vsub.s32 0, %v876
        %v978 = vsel %vm976, %v977, %v876
        %v979 = vshrl.u32 %v978, 7
        %v980 = vand.u32 %v978, 127
        %v981 = vsub.s32 0, %v980
        %v982 = vsel %vm976, %v981, %v980
        %vm983 = vcmp.lt.s32.totalorder %v877, 0
        %v984 = vsub.s32 0, %v877
        %v985 = vsel %vm983, %v984, %v877
        %v986 = vshrl.u32 %v985, 7
        %v987 = vand.u32 %v985, 127
        %v988 = vsub.s32 0, %v987
        %v989 = vsel %vm983, %v988, %v987
        %vm990 = vcmp.ne.s32.totalorder %v884, 0
        %vm991 = vcmp.ne.s32.totalorder %v891, 0
        %vm992 = vcmp.ne.s32.totalorder %v898, 0
        %vm993 = vcmp.ne.s32.totalorder %v905, 0
        %vm994 = vcmp.ne.s32.totalorder %v912, 0
        %vm995 = vcmp.ne.s32.totalorder %v919, 0
        %vm996 = vcmp.ne.s32.totalorder %v926, 0
        %vm997 = vcmp.ne.s32.totalorder %v933, 0
        %vm998 = vcmp.ne.s32.totalorder %v940, 0
        %vm999 = vcmp.ne.s32.totalorder %v947, 0
        %vm1000 = vcmp.ne.s32.totalorder %v954, 0
        %vm1001 = vcmp.ne.s32.totalorder %v961, 0
        %vm1002 = vcmp.ne.s32.totalorder %v968, 0
        %vm1003 = vcmp.ne.s32.totalorder %v975, 0
        %vm1004 = vcmp.ne.s32.totalorder %v982, 0
        %vm1005 = vcmp.ne.s32.totalorder %v989, 0
        %vm1006 = vcmp.lt.s32.totalorder %v884, 0
        %vm1007 = vcmp.lt.s32.totalorder %v891, 0
        %vm1008 = vcmp.lt.s32.totalorder %v898, 0
        %vm1009 = vcmp.lt.s32.totalorder %v905, 0
        %vm1010 = vcmp.lt.s32.totalorder %v912, 0
        %vm1011 = vcmp.lt.s32.totalorder %v919, 0
        %vm1012 = vcmp.lt.s32.totalorder %v926, 0
        %vm1013 = vcmp.lt.s32.totalorder %v933, 0
        %vm1014 = vcmp.lt.s32.totalorder %v940, 0
        %vm1015 = vcmp.lt.s32.totalorder %v947, 0
        %vm1016 = vcmp.lt.s32.totalorder %v954, 0
        %vm1017 = vcmp.lt.s32.totalorder %v961, 0
        %vm1018 = vcmp.lt.s32.totalorder %v968, 0
        %vm1019 = vcmp.lt.s32.totalorder %v975, 0
        %vm1020 = vcmp.lt.s32.totalorder %v982, 0
        %vm1021 = vcmp.lt.s32.totalorder %v989, 0
        %vm1022 = vmand %vm1006, %vm990
        %vm1023 = vmand %vm1007, %vm991
        %vm1024 = vmand %vm1008, %vm992
        %vm1025 = vmand %vm1009, %vm993
        %vm1026 = vmand %vm1010, %vm994
        %vm1027 = vmand %vm1011, %vm995
        %vm1028 = vmand %vm1012, %vm996
        %vm1029 = vmand %vm1013, %vm997
        %vm1030 = vmand %vm1014, %vm998
        %vm1031 = vmand %vm1015, %vm999
        %vm1032 = vmand %vm1016, %vm1000
        %vm1033 = vmand %vm1017, %vm1001
        %vm1034 = vmand %vm1018, %vm1002
        %vm1035 = vmand %vm1019, %vm1003
        %vm1036 = vmand %vm1020, %vm1004
        %vm1037 = vmand %vm1021, %vm1005
        %v1038 = vadd.s32 %v884, 128
        %v1039 = vadd.s32 %v891, 128
        %v1040 = vadd.s32 %v898, 128
        %v1041 = vadd.s32 %v905, 128
        %v1042 = vadd.s32 %v912, 128
        %v1043 = vadd.s32 %v919, 128
        %v1044 = vadd.s32 %v926, 128
        %v1045 = vadd.s32 %v933, 128
        %v1046 = vadd.s32 %v940, 128
        %v1047 = vadd.s32 %v947, 128
        %v1048 = vadd.s32 %v954, 128
        %v1049 = vadd.s32 %v961, 128
        %v1050 = vadd.s32 %v968, 128
        %v1051 = vadd.s32 %v975, 128
        %v1052 = vadd.s32 %v982, 128
        %v1053 = vadd.s32 %v989, 128
        %v1054 = vsel %vm1022, %v1038, %v884
        %v1055 = vsel %vm1023, %v1039, %v891
        %v1056 = vsel %vm1024, %v1040, %v898
        %v1057 = vsel %vm1025, %v1041, %v905
        %v1058 = vsel %vm1026, %v1042, %v912
        %v1059 = vsel %vm1027, %v1043, %v919
        %v1060 = vsel %vm1028, %v1044, %v926
        %v1061 = vsel %vm1029, %v1045, %v933
        %v1062 = vsel %vm1030, %v1046, %v940
        %v1063 = vsel %vm1031, %v1047, %v947
        %v1064 = vsel %vm1032, %v1048, %v954
        %v1065 = vsel %vm1033, %v1049, %v961
        %v1066 = vsel %vm1034, %v1050, %v968
        %v1067 = vsel %vm1035, %v1051, %v975
        %v1068 = vsel %vm1036, %v1052, %v982
        %v1069 = vsel %vm1037, %v1053, %v989
        %1086 = vrot.lane.b32.xlu0 %v783, 1
        %v1087 = vpop.permute.xlu0 %1086
        %1088 = vrot.lane.b32.xlu0 %v786, 1
        %v1089 = vpop.permute.xlu0 %1088
        %1090 = vrot.lane.b32.xlu0 %v791, 1
        %v1091 = vpop.permute.xlu0 %1090
        %1092 = vrot.lane.b32.xlu0 %v794, 1
        %v1093 = vpop.permute.xlu0 %1092
        %1094 = vrot.lane.b32.xlu0 %v799, 1
        %v1095 = vpop.permute.xlu0 %1094
        %1096 = vrot.lane.b32.xlu0 %v802, 1
        %v1097 = vpop.permute.xlu0 %1096
        %1098 = vrot.lane.b32.xlu0 %v807, 1
        %v1099 = vpop.permute.xlu0 %1098
        %1100 = vrot.lane.b32.xlu0 %v810, 1
        %v1101 = vpop.permute.xlu0 %1100
        %1102 = vrot.lane.b32.xlu0 %v815, 1
        %v1103 = vpop.permute.xlu0 %1102
        %1104 = vrot.lane.b32.xlu0 %v818, 1
        %v1105 = vpop.permute.xlu0 %1104
        %1106 = vrot.lane.b32.xlu0 %v823, 1
        %v1107 = vpop.permute.xlu0 %1106
        %1108 = vrot.lane.b32.xlu0 %v826, 1
        %v1109 = vpop.permute.xlu0 %1108
        %1110 = vrot.lane.b32.xlu0 %v831, 1
        %v1111 = vpop.permute.xlu0 %1110
        %1112 = vrot.lane.b32.xlu0 %v834, 1
        %v1113 = vpop.permute.xlu0 %1112
        %1114 = vrot.lane.b32.xlu0 %v839, 1
        %v1115 = vpop.permute.xlu0 %1114
        %1116 = vrot.lane.b32.xlu0 %v842, 1
        %v1117 = vpop.permute.xlu0 %1116
        %v1134 = vand.u32 %v1054, 1
        %v1135 = vand.u32 %v1055, 1
        %v1136 = vand.u32 %v1056, 1
        %v1137 = vand.u32 %v1057, 1
        %v1138 = vand.u32 %v1058, 1
        %v1139 = vand.u32 %v1059, 1
        %v1140 = vand.u32 %v1060, 1
        %v1141 = vand.u32 %v1061, 1
        %v1142 = vand.u32 %v1062, 1
        %v1143 = vand.u32 %v1063, 1
        %v1144 = vand.u32 %v1064, 1
        %v1145 = vand.u32 %v1065, 1
        %v1146 = vand.u32 %v1066, 1
        %v1147 = vand.u32 %v1067, 1
        %v1148 = vand.u32 %v1068, 1
        %v1149 = vand.u32 %v1069, 1
        %vm1150 = vcmp.eq.s32.totalorder %v1134, 1
        %vm1151 = vcmp.eq.s32.totalorder %v1135, 1
        %vm1152 = vcmp.eq.s32.totalorder %v1136, 1
        %vm1153 = vcmp.eq.s32.totalorder %v1137, 1
        %vm1154 = vcmp.eq.s32.totalorder %v1138, 1
        %vm1155 = vcmp.eq.s32.totalorder %v1139, 1
        %vm1156 = vcmp.eq.s32.totalorder %v1140, 1
        %vm1157 = vcmp.eq.s32.totalorder %v1141, 1
        %vm1158 = vcmp.eq.s32.totalorder %v1142, 1
        %vm1159 = vcmp.eq.s32.totalorder %v1143, 1
        %vm1160 = vcmp.eq.s32.totalorder %v1144, 1
        %vm1161 = vcmp.eq.s32.totalorder %v1145, 1
        %vm1162 = vcmp.eq.s32.totalorder %v1146, 1
        %vm1163 = vcmp.eq.s32.totalorder %v1147, 1
        %vm1164 = vcmp.eq.s32.totalorder %v1148, 1
        %vm1165 = vcmp.eq.s32.totalorder %v1149, 1
        %v1166 = vsel %vm1150, 1, 0
        %v1167 = vsel %vm1151, 1, 0
        %v1168 = vsel %vm1152, 1, 0
        %v1169 = vsel %vm1153, 1, 0
        %v1170 = vsel %vm1154, 1, 0
        %v1171 = vsel %vm1155, 1, 0
        %v1172 = vsel %vm1156, 1, 0
        %v1173 = vsel %vm1157, 1, 0
        %v1174 = vsel %vm1158, 1, 0
        %v1175 = vsel %vm1159, 1, 0
        %v1176 = vsel %vm1160, 1, 0
        %v1177 = vsel %vm1161, 1, 0
        %v1178 = vsel %vm1162, 1, 0
        %v1179 = vsel %vm1163, 1, 0
        %v1180 = vsel %vm1164, 1, 0
        %v1181 = vsel %vm1165, 1, 0
        %vm1182 = vcmp.eq.s32.totalorder %v1166, 1
        %vm1183 = vcmp.eq.s32.totalorder %v1167, 1
        %vm1184 = vcmp.eq.s32.totalorder %v1168, 1
        %vm1185 = vcmp.eq.s32.totalorder %v1169, 1
        %vm1186 = vcmp.eq.s32.totalorder %v1170, 1
        %vm1187 = vcmp.eq.s32.totalorder %v1171, 1
        %vm1188 = vcmp.eq.s32.totalorder %v1172, 1
        %vm1189 = vcmp.eq.s32.totalorder %v1173, 1
        %vm1190 = vcmp.eq.s32.totalorder %v1174, 1
        %vm1191 = vcmp.eq.s32.totalorder %v1175, 1
        %vm1192 = vcmp.eq.s32.totalorder %v1176, 1
        %vm1193 = vcmp.eq.s32.totalorder %v1177, 1
        %vm1194 = vcmp.eq.s32.totalorder %v1178, 1
        %vm1195 = vcmp.eq.s32.totalorder %v1179, 1
        %vm1196 = vcmp.eq.s32.totalorder %v1180, 1
        %vm1197 = vcmp.eq.s32.totalorder %v1181, 1
        %v1198 = vsel %vm1182, %v1087, %v783
        %v1199 = vsel %vm1183, %v1089, %v786
        %v1200 = vsel %vm1184, %v1091, %v791
        %v1201 = vsel %vm1185, %v1093, %v794
        %v1202 = vsel %vm1186, %v1095, %v799
        %v1203 = vsel %vm1187, %v1097, %v802
        %v1204 = vsel %vm1188, %v1099, %v807
        %v1205 = vsel %vm1189, %v1101, %v810
        %v1206 = vsel %vm1190, %v1103, %v815
        %v1207 = vsel %vm1191, %v1105, %v818
        %v1208 = vsel %vm1192, %v1107, %v823
        %v1209 = vsel %vm1193, %v1109, %v826
        %v1210 = vsel %vm1194, %v1111, %v831
        %v1211 = vsel %vm1195, %v1113, %v834
        %v1212 = vsel %vm1196, %v1115, %v839
        %v1213 = vsel %vm1197, %v1117, %v842
        %1230 = vrot.lane.b32.xlu0 %v1198, 2
        %v1231 = vpop.permute.xlu0 %1230
        %1232 = vrot.lane.b32.xlu0 %v1199, 2
        %v1233 = vpop.permute.xlu0 %1232
        %1234 = vrot.lane.b32.xlu0 %v1200, 2
        %v1235 = vpop.permute.xlu0 %1234
        %1236 = vrot.lane.b32.xlu0 %v1201, 2
        %v1237 = vpop.permute.xlu0 %1236
        %1238 = vrot.lane.b32.xlu0 %v1202, 2
        %v1239 = vpop.permute.xlu0 %1238
        %1240 = vrot.lane.b32.xlu0 %v1203, 2
        %v1241 = vpop.permute.xlu0 %1240
        %1242 = vrot.lane.b32.xlu0 %v1204, 2
        %v1243 = vpop.permute.xlu0 %1242
        %1244 = vrot.lane.b32.xlu0 %v1205, 2
        %v1245 = vpop.permute.xlu0 %1244
        %1246 = vrot.lane.b32.xlu0 %v1206, 2
        %v1247 = vpop.permute.xlu0 %1246
        %1248 = vrot.lane.b32.xlu0 %v1207, 2
        %v1249 = vpop.permute.xlu0 %1248
        %1250 = vrot.lane.b32.xlu0 %v1208, 2
        %v1251 = vpop.permute.xlu0 %1250
        %1252 = vrot.lane.b32.xlu0 %v1209, 2
        %v1253 = vpop.permute.xlu0 %1252
        %1254 = vrot.lane.b32.xlu0 %v1210, 2
        %v1255 = vpop.permute.xlu0 %1254
        %1256 = vrot.lane.b32.xlu0 %v1211, 2
        %v1257 = vpop.permute.xlu0 %1256
        %1258 = vrot.lane.b32.xlu0 %v1212, 2
        %v1259 = vpop.permute.xlu0 %1258
        %1260 = vrot.lane.b32.xlu0 %v1213, 2
        %v1261 = vpop.permute.xlu0 %1260
        %v1278 = vshra.s32 %v1054, 1
        %v1279 = vshra.s32 %v1055, 1
        %v1280 = vshra.s32 %v1056, 1
        %v1281 = vshra.s32 %v1057, 1
        %v1282 = vshra.s32 %v1058, 1
        %v1283 = vshra.s32 %v1059, 1
        %v1284 = vshra.s32 %v1060, 1
        %v1285 = vshra.s32 %v1061, 1
        %v1286 = vshra.s32 %v1062, 1
        %v1287 = vshra.s32 %v1063, 1
        %v1288 = vshra.s32 %v1064, 1
        %v1289 = vshra.s32 %v1065, 1
        %v1290 = vshra.s32 %v1066, 1
        %v1291 = vshra.s32 %v1067, 1
        %v1292 = vshra.s32 %v1068, 1
        %v1293 = vshra.s32 %v1069, 1
        %v1294 = vand.u32 %v1278, 1
        %v1295 = vand.u32 %v1279, 1
        %v1296 = vand.u32 %v1280, 1
        %v1297 = vand.u32 %v1281, 1
        %v1298 = vand.u32 %v1282, 1
        %v1299 = vand.u32 %v1283, 1
        %v1300 = vand.u32 %v1284, 1
        %v1301 = vand.u32 %v1285, 1
        %v1302 = vand.u32 %v1286, 1
        %v1303 = vand.u32 %v1287, 1
        %v1304 = vand.u32 %v1288, 1
        %v1305 = vand.u32 %v1289, 1
        %v1306 = vand.u32 %v1290, 1
        %v1307 = vand.u32 %v1291, 1
        %v1308 = vand.u32 %v1292, 1
        %v1309 = vand.u32 %v1293, 1
        %vm1310 = vcmp.eq.s32.totalorder %v1294, 1
        %vm1311 = vcmp.eq.s32.totalorder %v1295, 1
        %vm1312 = vcmp.eq.s32.totalorder %v1296, 1
        %vm1313 = vcmp.eq.s32.totalorder %v1297, 1
        %vm1314 = vcmp.eq.s32.totalorder %v1298, 1
        %vm1315 = vcmp.eq.s32.totalorder %v1299, 1
        %vm1316 = vcmp.eq.s32.totalorder %v1300, 1
        %vm1317 = vcmp.eq.s32.totalorder %v1301, 1
        %vm1318 = vcmp.eq.s32.totalorder %v1302, 1
        %vm1319 = vcmp.eq.s32.totalorder %v1303, 1
        %vm1320 = vcmp.eq.s32.totalorder %v1304, 1
        %vm1321 = vcmp.eq.s32.totalorder %v1305, 1
        %vm1322 = vcmp.eq.s32.totalorder %v1306, 1
        %vm1323 = vcmp.eq.s32.totalorder %v1307, 1
        %vm1324 = vcmp.eq.s32.totalorder %v1308, 1
        %vm1325 = vcmp.eq.s32.totalorder %v1309, 1
        %v1326 = vsel %vm1310, 1, 0
        %v1327 = vsel %vm1311, 1, 0
        %v1328 = vsel %vm1312, 1, 0
        %v1329 = vsel %vm1313, 1, 0
        %v1330 = vsel %vm1314, 1, 0
        %v1331 = vsel %vm1315, 1, 0
        %v1332 = vsel %vm1316, 1, 0
        %v1333 = vsel %vm1317, 1, 0
        %v1334 = vsel %vm1318, 1, 0
        %v1335 = vsel %vm1319, 1, 0
        %v1336 = vsel %vm1320, 1, 0
        %v1337 = vsel %vm1321, 1, 0
        %v1338 = vsel %vm1322, 1, 0
        %v1339 = vsel %vm1323, 1, 0
        %v1340 = vsel %vm1324, 1, 0
        %v1341 = vsel %vm1325, 1, 0
        %vm1342 = vcmp.eq.s32.totalorder %v1326, 1
        %vm1343 = vcmp.eq.s32.totalorder %v1327, 1
        %vm1344 = vcmp.eq.s32.totalorder %v1328, 1
        %vm1345 = vcmp.eq.s32.totalorder %v1329, 1
        %vm1346 = vcmp.eq.s32.totalorder %v1330, 1
        %vm1347 = vcmp.eq.s32.totalorder %v1331, 1
        %vm1348 = vcmp.eq.s32.totalorder %v1332, 1
        %vm1349 = vcmp.eq.s32.totalorder %v1333, 1
        %vm1350 = vcmp.eq.s32.totalorder %v1334, 1
        %vm1351 = vcmp.eq.s32.totalorder %v1335, 1
        %vm1352 = vcmp.eq.s32.totalorder %v1336, 1
        %vm1353 = vcmp.eq.s32.totalorder %v1337, 1
        %vm1354 = vcmp.eq.s32.totalorder %v1338, 1
        %vm1355 = vcmp.eq.s32.totalorder %v1339, 1
        %vm1356 = vcmp.eq.s32.totalorder %v1340, 1
        %vm1357 = vcmp.eq.s32.totalorder %v1341, 1
        %v1358 = vsel %vm1342, %v1231, %v1198
        %v1359 = vsel %vm1343, %v1233, %v1199
        %v1360 = vsel %vm1344, %v1235, %v1200
        %v1361 = vsel %vm1345, %v1237, %v1201
        %v1362 = vsel %vm1346, %v1239, %v1202
        %v1363 = vsel %vm1347, %v1241, %v1203
        %v1364 = vsel %vm1348, %v1243, %v1204
        %v1365 = vsel %vm1349, %v1245, %v1205
        %v1366 = vsel %vm1350, %v1247, %v1206
        %v1367 = vsel %vm1351, %v1249, %v1207
        %v1368 = vsel %vm1352, %v1251, %v1208
        %v1369 = vsel %vm1353, %v1253, %v1209
        %v1370 = vsel %vm1354, %v1255, %v1210
        %v1371 = vsel %vm1355, %v1257, %v1211
        %v1372 = vsel %vm1356, %v1259, %v1212
        %v1373 = vsel %vm1357, %v1261, %v1213
        %1390 = vrot.lane.b32.xlu0 %v1358, 4
        %v1391 = vpop.permute.xlu0 %1390
        %1392 = vrot.lane.b32.xlu0 %v1359, 4
        %v1393 = vpop.permute.xlu0 %1392
        %1394 = vrot.lane.b32.xlu0 %v1360, 4
        %v1395 = vpop.permute.xlu0 %1394
        %1396 = vrot.lane.b32.xlu0 %v1361, 4
        %v1397 = vpop.permute.xlu0 %1396
        %1398 = vrot.lane.b32.xlu0 %v1362, 4
        %v1399 = vpop.permute.xlu0 %1398
        %1400 = vrot.lane.b32.xlu0 %v1363, 4
        %v1401 = vpop.permute.xlu0 %1400
        %1402 = vrot.lane.b32.xlu0 %v1364, 4
        %v1403 = vpop.permute.xlu0 %1402
        %1404 = vrot.lane.b32.xlu0 %v1365, 4
        %v1405 = vpop.permute.xlu0 %1404
        %1406 = vrot.lane.b32.xlu0 %v1366, 4
        %v1407 = vpop.permute.xlu0 %1406
        %1408 = vrot.lane.b32.xlu0 %v1367, 4
        %v1409 = vpop.permute.xlu0 %1408
        %1410 = vrot.lane.b32.xlu0 %v1368, 4
        %v1411 = vpop.permute.xlu0 %1410
        %1412 = vrot.lane.b32.xlu0 %v1369, 4
        %v1413 = vpop.permute.xlu0 %1412
        %1414 = vrot.lane.b32.xlu0 %v1370, 4
        %v1415 = vpop.permute.xlu0 %1414
        %1416 = vrot.lane.b32.xlu0 %v1371, 4
        %v1417 = vpop.permute.xlu0 %1416
        %1418 = vrot.lane.b32.xlu0 %v1372, 4
        %v1419 = vpop.permute.xlu0 %1418
        %1420 = vrot.lane.b32.xlu0 %v1373, 4
        %v1421 = vpop.permute.xlu0 %1420
        %v1438 = vshra.s32 %v1054, 2
        %v1439 = vshra.s32 %v1055, 2
        %v1440 = vshra.s32 %v1056, 2
        %v1441 = vshra.s32 %v1057, 2
        %v1442 = vshra.s32 %v1058, 2
        %v1443 = vshra.s32 %v1059, 2
        %v1444 = vshra.s32 %v1060, 2
        %v1445 = vshra.s32 %v1061, 2
        %v1446 = vshra.s32 %v1062, 2
        %v1447 = vshra.s32 %v1063, 2
        %v1448 = vshra.s32 %v1064, 2
        %v1449 = vshra.s32 %v1065, 2
        %v1450 = vshra.s32 %v1066, 2
        %v1451 = vshra.s32 %v1067, 2
        %v1452 = vshra.s32 %v1068, 2
        %v1453 = vshra.s32 %v1069, 2
        %v1454 = vand.u32 %v1438, 1
        %v1455 = vand.u32 %v1439, 1
        %v1456 = vand.u32 %v1440, 1
        %v1457 = vand.u32 %v1441, 1
        %v1458 = vand.u32 %v1442, 1
        %v1459 = vand.u32 %v1443, 1
        %v1460 = vand.u32 %v1444, 1
        %v1461 = vand.u32 %v1445, 1
        %v1462 = vand.u32 %v1446, 1
        %v1463 = vand.u32 %v1447, 1
        %v1464 = vand.u32 %v1448, 1
        %v1465 = vand.u32 %v1449, 1
        %v1466 = vand.u32 %v1450, 1
        %v1467 = vand.u32 %v1451, 1
        %v1468 = vand.u32 %v1452, 1
        %v1469 = vand.u32 %v1453, 1
        %vm1470 = vcmp.eq.s32.totalorder %v1454, 1
        %vm1471 = vcmp.eq.s32.totalorder %v1455, 1
        %vm1472 = vcmp.eq.s32.totalorder %v1456, 1
        %vm1473 = vcmp.eq.s32.totalorder %v1457, 1
        %vm1474 = vcmp.eq.s32.totalorder %v1458, 1
        %vm1475 = vcmp.eq.s32.totalorder %v1459, 1
        %vm1476 = vcmp.eq.s32.totalorder %v1460, 1
        %vm1477 = vcmp.eq.s32.totalorder %v1461, 1
        %vm1478 = vcmp.eq.s32.totalorder %v1462, 1
        %vm1479 = vcmp.eq.s32.totalorder %v1463, 1
        %vm1480 = vcmp.eq.s32.totalorder %v1464, 1
        %vm1481 = vcmp.eq.s32.totalorder %v1465, 1
        %vm1482 = vcmp.eq.s32.totalorder %v1466, 1
        %vm1483 = vcmp.eq.s32.totalorder %v1467, 1
        %vm1484 = vcmp.eq.s32.totalorder %v1468, 1
        %vm1485 = vcmp.eq.s32.totalorder %v1469, 1
        %v1486 = vsel %vm1470, 1, 0
        %v1487 = vsel %vm1471, 1, 0
        %v1488 = vsel %vm1472, 1, 0
        %v1489 = vsel %vm1473, 1, 0
        %v1490 = vsel %vm1474, 1, 0
        %v1491 = vsel %vm1475, 1, 0
        %v1492 = vsel %vm1476, 1, 0
        %v1493 = vsel %vm1477, 1, 0
        %v1494 = vsel %vm1478, 1, 0
        %v1495 = vsel %vm1479, 1, 0
        %v1496 = vsel %vm1480, 1, 0
        %v1497 = vsel %vm1481, 1, 0
        %v1498 = vsel %vm1482, 1, 0
        %v1499 = vsel %vm1483, 1, 0
        %v1500 = vsel %vm1484, 1, 0
        %v1501 = vsel %vm1485, 1, 0
        %vm1502 = vcmp.eq.s32.totalorder %v1486, 1
        %vm1503 = vcmp.eq.s32.totalorder %v1487, 1
        %vm1504 = vcmp.eq.s32.totalorder %v1488, 1
        %vm1505 = vcmp.eq.s32.totalorder %v1489, 1
        %vm1506 = vcmp.eq.s32.totalorder %v1490, 1
        %vm1507 = vcmp.eq.s32.totalorder %v1491, 1
        %vm1508 = vcmp.eq.s32.totalorder %v1492, 1
        %vm1509 = vcmp.eq.s32.totalorder %v1493, 1
        %vm1510 = vcmp.eq.s32.totalorder %v1494, 1
        %vm1511 = vcmp.eq.s32.totalorder %v1495, 1
        %vm1512 = vcmp.eq.s32.totalorder %v1496, 1
        %vm1513 = vcmp.eq.s32.totalorder %v1497, 1
        %vm1514 = vcmp.eq.s32.totalorder %v1498, 1
        %vm1515 = vcmp.eq.s32.totalorder %v1499, 1
        %vm1516 = vcmp.eq.s32.totalorder %v1500, 1
        %vm1517 = vcmp.eq.s32.totalorder %v1501, 1
        %v1518 = vsel %vm1502, %v1391, %v1358
        %v1519 = vsel %vm1503, %v1393, %v1359
        %v1520 = vsel %vm1504, %v1395, %v1360
        %v1521 = vsel %vm1505, %v1397, %v1361
        %v1522 = vsel %vm1506, %v1399, %v1362
        %v1523 = vsel %vm1507, %v1401, %v1363
        %v1524 = vsel %vm1508, %v1403, %v1364
        %v1525 = vsel %vm1509, %v1405, %v1365
        %v1526 = vsel %vm1510, %v1407, %v1366
        %v1527 = vsel %vm1511, %v1409, %v1367
        %v1528 = vsel %vm1512, %v1411, %v1368
        %v1529 = vsel %vm1513, %v1413, %v1369
        %v1530 = vsel %vm1514, %v1415, %v1370
        %v1531 = vsel %vm1515, %v1417, %v1371
        %v1532 = vsel %vm1516, %v1419, %v1372
        %v1533 = vsel %vm1517, %v1421, %v1373
        %1550 = vrot.lane.b32.xlu0 %v1518, 8
        %v1551 = vpop.permute.xlu0 %1550
        %1552 = vrot.lane.b32.xlu0 %v1519, 8
        %v1553 = vpop.permute.xlu0 %1552
        %1554 = vrot.lane.b32.xlu0 %v1520, 8
        %v1555 = vpop.permute.xlu0 %1554
        %1556 = vrot.lane.b32.xlu0 %v1521, 8
        %v1557 = vpop.permute.xlu0 %1556
        %1558 = vrot.lane.b32.xlu0 %v1522, 8
        %v1559 = vpop.permute.xlu0 %1558
        %1560 = vrot.lane.b32.xlu0 %v1523, 8
        %v1561 = vpop.permute.xlu0 %1560
        %1562 = vrot.lane.b32.xlu0 %v1524, 8
        %v1563 = vpop.permute.xlu0 %1562
        %1564 = vrot.lane.b32.xlu0 %v1525, 8
        %v1565 = vpop.permute.xlu0 %1564
        %1566 = vrot.lane.b32.xlu0 %v1526, 8
        %v1567 = vpop.permute.xlu0 %1566
        %1568 = vrot.lane.b32.xlu0 %v1527, 8
        %v1569 = vpop.permute.xlu0 %1568
        %1570 = vrot.lane.b32.xlu0 %v1528, 8
        %v1571 = vpop.permute.xlu0 %1570
        %1572 = vrot.lane.b32.xlu0 %v1529, 8
        %v1573 = vpop.permute.xlu0 %1572
        %1574 = vrot.lane.b32.xlu0 %v1530, 8
        %v1575 = vpop.permute.xlu0 %1574
        %1576 = vrot.lane.b32.xlu0 %v1531, 8
        %v1577 = vpop.permute.xlu0 %1576
        %1578 = vrot.lane.b32.xlu0 %v1532, 8
        %v1579 = vpop.permute.xlu0 %1578
        %1580 = vrot.lane.b32.xlu0 %v1533, 8
        %v1581 = vpop.permute.xlu0 %1580
        %v1598 = vshra.s32 %v1054, 3
        %v1599 = vshra.s32 %v1055, 3
        %v1600 = vshra.s32 %v1056, 3
        %v1601 = vshra.s32 %v1057, 3
        %v1602 = vshra.s32 %v1058, 3
        %v1603 = vshra.s32 %v1059, 3
        %v1604 = vshra.s32 %v1060, 3
        %v1605 = vshra.s32 %v1061, 3
        %v1606 = vshra.s32 %v1062, 3
        %v1607 = vshra.s32 %v1063, 3
        %v1608 = vshra.s32 %v1064, 3
        %v1609 = vshra.s32 %v1065, 3
        %v1610 = vshra.s32 %v1066, 3
        %v1611 = vshra.s32 %v1067, 3
        %v1612 = vshra.s32 %v1068, 3
        %v1613 = vshra.s32 %v1069, 3
        %v1614 = vand.u32 %v1598, 1
        %v1615 = vand.u32 %v1599, 1
        %v1616 = vand.u32 %v1600, 1
        %v1617 = vand.u32 %v1601, 1
        %v1618 = vand.u32 %v1602, 1
        %v1619 = vand.u32 %v1603, 1
        %v1620 = vand.u32 %v1604, 1
        %v1621 = vand.u32 %v1605, 1
        %v1622 = vand.u32 %v1606, 1
        %v1623 = vand.u32 %v1607, 1
        %v1624 = vand.u32 %v1608, 1
        %v1625 = vand.u32 %v1609, 1
        %v1626 = vand.u32 %v1610, 1
        %v1627 = vand.u32 %v1611, 1
        %v1628 = vand.u32 %v1612, 1
        %v1629 = vand.u32 %v1613, 1
        %vm1630 = vcmp.eq.s32.totalorder %v1614, 1
        %vm1631 = vcmp.eq.s32.totalorder %v1615, 1
        %vm1632 = vcmp.eq.s32.totalorder %v1616, 1
        %vm1633 = vcmp.eq.s32.totalorder %v1617, 1
        %vm1634 = vcmp.eq.s32.totalorder %v1618, 1
        %vm1635 = vcmp.eq.s32.totalorder %v1619, 1
        %vm1636 = vcmp.eq.s32.totalorder %v1620, 1
        %vm1637 = vcmp.eq.s32.totalorder %v1621, 1
        %vm1638 = vcmp.eq.s32.totalorder %v1622, 1
        %vm1639 = vcmp.eq.s32.totalorder %v1623, 1
        %vm1640 = vcmp.eq.s32.totalorder %v1624, 1
        %vm1641 = vcmp.eq.s32.totalorder %v1625, 1
        %vm1642 = vcmp.eq.s32.totalorder %v1626, 1
        %vm1643 = vcmp.eq.s32.totalorder %v1627, 1
        %vm1644 = vcmp.eq.s32.totalorder %v1628, 1
        %vm1645 = vcmp.eq.s32.totalorder %v1629, 1
        %v1646 = vsel %vm1630, 1, 0
        %v1647 = vsel %vm1631, 1, 0
        %v1648 = vsel %vm1632, 1, 0
        %v1649 = vsel %vm1633, 1, 0
        %v1650 = vsel %vm1634, 1, 0
        %v1651 = vsel %vm1635, 1, 0
        %v1652 = vsel %vm1636, 1, 0
        %v1653 = vsel %vm1637, 1, 0
        %v1654 = vsel %vm1638, 1, 0
        %v1655 = vsel %vm1639, 1, 0
        %v1656 = vsel %vm1640, 1, 0
        %v1657 = vsel %vm1641, 1, 0
        %v1658 = vsel %vm1642, 1, 0
        %v1659 = vsel %vm1643, 1, 0
        %v1660 = vsel %vm1644, 1, 0
        %v1661 = vsel %vm1645, 1, 0
        %vm1662 = vcmp.eq.s32.totalorder %v1646, 1
        %vm1663 = vcmp.eq.s32.totalorder %v1647, 1
        %vm1664 = vcmp.eq.s32.totalorder %v1648, 1
        %vm1665 = vcmp.eq.s32.totalorder %v1649, 1
        %vm1666 = vcmp.eq.s32.totalorder %v1650, 1
        %vm1667 = vcmp.eq.s32.totalorder %v1651, 1
        %vm1668 = vcmp.eq.s32.totalorder %v1652, 1
        %vm1669 = vcmp.eq.s32.totalorder %v1653, 1
        %vm1670 = vcmp.eq.s32.totalorder %v1654, 1
        %vm1671 = vcmp.eq.s32.totalorder %v1655, 1
        %vm1672 = vcmp.eq.s32.totalorder %v1656, 1
        %vm1673 = vcmp.eq.s32.totalorder %v1657, 1
        %vm1674 = vcmp.eq.s32.totalorder %v1658, 1
        %vm1675 = vcmp.eq.s32.totalorder %v1659, 1
        %vm1676 = vcmp.eq.s32.totalorder %v1660, 1
        %vm1677 = vcmp.eq.s32.totalorder %v1661, 1
        %v1678 = vsel %vm1662, %v1551, %v1518
        %v1679 = vsel %vm1663, %v1553, %v1519
        %v1680 = vsel %vm1664, %v1555, %v1520
        %v1681 = vsel %vm1665, %v1557, %v1521
        %v1682 = vsel %vm1666, %v1559, %v1522
        %v1683 = vsel %vm1667, %v1561, %v1523
        %v1684 = vsel %vm1668, %v1563, %v1524
        %v1685 = vsel %vm1669, %v1565, %v1525
        %v1686 = vsel %vm1670, %v1567, %v1526
        %v1687 = vsel %vm1671, %v1569, %v1527
        %v1688 = vsel %vm1672, %v1571, %v1528
        %v1689 = vsel %vm1673, %v1573, %v1529
        %v1690 = vsel %vm1674, %v1575, %v1530
        %v1691 = vsel %vm1675, %v1577, %v1531
        %v1692 = vsel %vm1676, %v1579, %v1532
        %v1693 = vsel %vm1677, %v1581, %v1533
        %1710 = vrot.lane.b32.xlu0 %v1678, 16
        %v1711 = vpop.permute.xlu0 %1710
        %1712 = vrot.lane.b32.xlu0 %v1679, 16
        %v1713 = vpop.permute.xlu0 %1712
        %1714 = vrot.lane.b32.xlu0 %v1680, 16
        %v1715 = vpop.permute.xlu0 %1714
        %1716 = vrot.lane.b32.xlu0 %v1681, 16
        %v1717 = vpop.permute.xlu0 %1716
        %1718 = vrot.lane.b32.xlu0 %v1682, 16
        %v1719 = vpop.permute.xlu0 %1718
        %1720 = vrot.lane.b32.xlu0 %v1683, 16
        %v1721 = vpop.permute.xlu0 %1720
        %1722 = vrot.lane.b32.xlu0 %v1684, 16
        %v1723 = vpop.permute.xlu0 %1722
        %1724 = vrot.lane.b32.xlu0 %v1685, 16
        %v1725 = vpop.permute.xlu0 %1724
        %1726 = vrot.lane.b32.xlu0 %v1686, 16
        %v1727 = vpop.permute.xlu0 %1726
        %1728 = vrot.lane.b32.xlu0 %v1687, 16
        %v1729 = vpop.permute.xlu0 %1728
        %1730 = vrot.lane.b32.xlu0 %v1688, 16
        %v1731 = vpop.permute.xlu0 %1730
        %1732 = vrot.lane.b32.xlu0 %v1689, 16
        %v1733 = vpop.permute.xlu0 %1732
        %1734 = vrot.lane.b32.xlu0 %v1690, 16
        %v1735 = vpop.permute.xlu0 %1734
        %1736 = vrot.lane.b32.xlu0 %v1691, 16
        %v1737 = vpop.permute.xlu0 %1736
        %1738 = vrot.lane.b32.xlu0 %v1692, 16
        %v1739 = vpop.permute.xlu0 %1738
        %1740 = vrot.lane.b32.xlu0 %v1693, 16
        %v1741 = vpop.permute.xlu0 %1740
        %v1758 = vshra.s32 %v1054, 4
        %v1759 = vshra.s32 %v1055, 4
        %v1760 = vshra.s32 %v1056, 4
        %v1761 = vshra.s32 %v1057, 4
        %v1762 = vshra.s32 %v1058, 4
        %v1763 = vshra.s32 %v1059, 4
        %v1764 = vshra.s32 %v1060, 4
        %v1765 = vshra.s32 %v1061, 4
        %v1766 = vshra.s32 %v1062, 4
        %v1767 = vshra.s32 %v1063, 4
        %v1768 = vshra.s32 %v1064, 4
        %v1769 = vshra.s32 %v1065, 4
        %v1770 = vshra.s32 %v1066, 4
        %v1771 = vshra.s32 %v1067, 4
        %v1772 = vshra.s32 %v1068, 4
        %v1773 = vshra.s32 %v1069, 4
        %v1774 = vand.u32 %v1758, 1
        %v1775 = vand.u32 %v1759, 1
        %v1776 = vand.u32 %v1760, 1
        %v1777 = vand.u32 %v1761, 1
        %v1778 = vand.u32 %v1762, 1
        %v1779 = vand.u32 %v1763, 1
        %v1780 = vand.u32 %v1764, 1
        %v1781 = vand.u32 %v1765, 1
        %v1782 = vand.u32 %v1766, 1
        %v1783 = vand.u32 %v1767, 1
        %v1784 = vand.u32 %v1768, 1
        %v1785 = vand.u32 %v1769, 1
        %v1786 = vand.u32 %v1770, 1
        %v1787 = vand.u32 %v1771, 1
        %v1788 = vand.u32 %v1772, 1
        %v1789 = vand.u32 %v1773, 1
        %vm1790 = vcmp.eq.s32.totalorder %v1774, 1
        %vm1791 = vcmp.eq.s32.totalorder %v1775, 1
        %vm1792 = vcmp.eq.s32.totalorder %v1776, 1
        %vm1793 = vcmp.eq.s32.totalorder %v1777, 1
        %vm1794 = vcmp.eq.s32.totalorder %v1778, 1
        %vm1795 = vcmp.eq.s32.totalorder %v1779, 1
        %vm1796 = vcmp.eq.s32.totalorder %v1780, 1
        %vm1797 = vcmp.eq.s32.totalorder %v1781, 1
        %vm1798 = vcmp.eq.s32.totalorder %v1782, 1
        %vm1799 = vcmp.eq.s32.totalorder %v1783, 1
        %vm1800 = vcmp.eq.s32.totalorder %v1784, 1
        %vm1801 = vcmp.eq.s32.totalorder %v1785, 1
        %vm1802 = vcmp.eq.s32.totalorder %v1786, 1
        %vm1803 = vcmp.eq.s32.totalorder %v1787, 1
        %vm1804 = vcmp.eq.s32.totalorder %v1788, 1
        %vm1805 = vcmp.eq.s32.totalorder %v1789, 1
        %v1806 = vsel %vm1790, 1, 0
        %v1807 = vsel %vm1791, 1, 0
        %v1808 = vsel %vm1792, 1, 0
        %v1809 = vsel %vm1793, 1, 0
        %v1810 = vsel %vm1794, 1, 0
        %v1811 = vsel %vm1795, 1, 0
        %v1812 = vsel %vm1796, 1, 0
        %v1813 = vsel %vm1797, 1, 0
        %v1814 = vsel %vm1798, 1, 0
        %v1815 = vsel %vm1799, 1, 0
        %v1816 = vsel %vm1800, 1, 0
        %v1817 = vsel %vm1801, 1, 0
        %v1818 = vsel %vm1802, 1, 0
        %v1819 = vsel %vm1803, 1, 0
        %v1820 = vsel %vm1804, 1, 0
        %v1821 = vsel %vm1805, 1, 0
        %vm1822 = vcmp.eq.s32.totalorder %v1806, 1
        %vm1823 = vcmp.eq.s32.totalorder %v1807, 1
        %vm1824 = vcmp.eq.s32.totalorder %v1808, 1
        %vm1825 = vcmp.eq.s32.totalorder %v1809, 1
        %vm1826 = vcmp.eq.s32.totalorder %v1810, 1
        %vm1827 = vcmp.eq.s32.totalorder %v1811, 1
        %vm1828 = vcmp.eq.s32.totalorder %v1812, 1
        %vm1829 = vcmp.eq.s32.totalorder %v1813, 1
        %vm1830 = vcmp.eq.s32.totalorder %v1814, 1
        %vm1831 = vcmp.eq.s32.totalorder %v1815, 1
        %vm1832 = vcmp.eq.s32.totalorder %v1816, 1
        %vm1833 = vcmp.eq.s32.totalorder %v1817, 1
        %vm1834 = vcmp.eq.s32.totalorder %v1818, 1
        %vm1835 = vcmp.eq.s32.totalorder %v1819, 1
        %vm1836 = vcmp.eq.s32.totalorder %v1820, 1
        %vm1837 = vcmp.eq.s32.totalorder %v1821, 1
        %v1838 = vsel %vm1822, %v1711, %v1678
        %v1839 = vsel %vm1823, %v1713, %v1679
        %v1840 = vsel %vm1824, %v1715, %v1680
        %v1841 = vsel %vm1825, %v1717, %v1681
        %v1842 = vsel %vm1826, %v1719, %v1682
        %v1843 = vsel %vm1827, %v1721, %v1683
        %v1844 = vsel %vm1828, %v1723, %v1684
        %v1845 = vsel %vm1829, %v1725, %v1685
        %v1846 = vsel %vm1830, %v1727, %v1686
        %v1847 = vsel %vm1831, %v1729, %v1687
        %v1848 = vsel %vm1832, %v1731, %v1688
        %v1849 = vsel %vm1833, %v1733, %v1689
        %v1850 = vsel %vm1834, %v1735, %v1690
        %v1851 = vsel %vm1835, %v1737, %v1691
        %v1852 = vsel %vm1836, %v1739, %v1692
        %v1853 = vsel %vm1837, %v1741, %v1693
        %1870 = vrot.lane.b32.xlu0 %v1838, 32
        %v1871 = vpop.permute.xlu0 %1870
        %1872 = vrot.lane.b32.xlu0 %v1839, 32
        %v1873 = vpop.permute.xlu0 %1872
        %1874 = vrot.lane.b32.xlu0 %v1840, 32
        %v1875 = vpop.permute.xlu0 %1874
        %1876 = vrot.lane.b32.xlu0 %v1841, 32
        %v1877 = vpop.permute.xlu0 %1876
        %1878 = vrot.lane.b32.xlu0 %v1842, 32
        %v1879 = vpop.permute.xlu0 %1878
        %1880 = vrot.lane.b32.xlu0 %v1843, 32
        %v1881 = vpop.permute.xlu0 %1880
        %1882 = vrot.lane.b32.xlu0 %v1844, 32
        %v1883 = vpop.permute.xlu0 %1882
        %1884 = vrot.lane.b32.xlu0 %v1845, 32
        %v1885 = vpop.permute.xlu0 %1884
        %1886 = vrot.lane.b32.xlu0 %v1846, 32
        %v1887 = vpop.permute.xlu0 %1886
        %1888 = vrot.lane.b32.xlu0 %v1847, 32
        %v1889 = vpop.permute.xlu0 %1888
        %1890 = vrot.lane.b32.xlu0 %v1848, 32
        %v1891 = vpop.permute.xlu0 %1890
        %1892 = vrot.lane.b32.xlu0 %v1849, 32
        %v1893 = vpop.permute.xlu0 %1892
        %1894 = vrot.lane.b32.xlu0 %v1850, 32
        %v1895 = vpop.permute.xlu0 %1894
        %1896 = vrot.lane.b32.xlu0 %v1851, 32
        %v1897 = vpop.permute.xlu0 %1896
        %1898 = vrot.lane.b32.xlu0 %v1852, 32
        %v1899 = vpop.permute.xlu0 %1898
        %1900 = vrot.lane.b32.xlu0 %v1853, 32
        %v1901 = vpop.permute.xlu0 %1900
        %v1918 = vshra.s32 %v1054, 5
        %v1919 = vshra.s32 %v1055, 5
        %v1920 = vshra.s32 %v1056, 5
        %v1921 = vshra.s32 %v1057, 5
        %v1922 = vshra.s32 %v1058, 5
        %v1923 = vshra.s32 %v1059, 5
        %v1924 = vshra.s32 %v1060, 5
        %v1925 = vshra.s32 %v1061, 5
        %v1926 = vshra.s32 %v1062, 5
        %v1927 = vshra.s32 %v1063, 5
        %v1928 = vshra.s32 %v1064, 5
        %v1929 = vshra.s32 %v1065, 5
        %v1930 = vshra.s32 %v1066, 5
        %v1931 = vshra.s32 %v1067, 5
        %v1932 = vshra.s32 %v1068, 5
        %v1933 = vshra.s32 %v1069, 5
        %v1934 = vand.u32 %v1918, 1
        %v1935 = vand.u32 %v1919, 1
        %v1936 = vand.u32 %v1920, 1
        %v1937 = vand.u32 %v1921, 1
        %v1938 = vand.u32 %v1922, 1
        %v1939 = vand.u32 %v1923, 1
        %v1940 = vand.u32 %v1924, 1
        %v1941 = vand.u32 %v1925, 1
        %v1942 = vand.u32 %v1926, 1
        %v1943 = vand.u32 %v1927, 1
        %v1944 = vand.u32 %v1928, 1
        %v1945 = vand.u32 %v1929, 1
        %v1946 = vand.u32 %v1930, 1
        %v1947 = vand.u32 %v1931, 1
        %v1948 = vand.u32 %v1932, 1
        %v1949 = vand.u32 %v1933, 1
        %vm1950 = vcmp.eq.s32.totalorder %v1934, 1
        %vm1951 = vcmp.eq.s32.totalorder %v1935, 1
        %vm1952 = vcmp.eq.s32.totalorder %v1936, 1
        %vm1953 = vcmp.eq.s32.totalorder %v1937, 1
        %vm1954 = vcmp.eq.s32.totalorder %v1938, 1
        %vm1955 = vcmp.eq.s32.totalorder %v1939, 1
        %vm1956 = vcmp.eq.s32.totalorder %v1940, 1
        %vm1957 = vcmp.eq.s32.totalorder %v1941, 1
        %vm1958 = vcmp.eq.s32.totalorder %v1942, 1
        %vm1959 = vcmp.eq.s32.totalorder %v1943, 1
        %vm1960 = vcmp.eq.s32.totalorder %v1944, 1
        %vm1961 = vcmp.eq.s32.totalorder %v1945, 1
        %vm1962 = vcmp.eq.s32.totalorder %v1946, 1
        %vm1963 = vcmp.eq.s32.totalorder %v1947, 1
        %vm1964 = vcmp.eq.s32.totalorder %v1948, 1
        %vm1965 = vcmp.eq.s32.totalorder %v1949, 1
        %v1966 = vsel %vm1950, 1, 0
        %v1967 = vsel %vm1951, 1, 0
        %v1968 = vsel %vm1952, 1, 0
        %v1969 = vsel %vm1953, 1, 0
        %v1970 = vsel %vm1954, 1, 0
        %v1971 = vsel %vm1955, 1, 0
        %v1972 = vsel %vm1956, 1, 0
        %v1973 = vsel %vm1957, 1, 0
        %v1974 = vsel %vm1958, 1, 0
        %v1975 = vsel %vm1959, 1, 0
        %v1976 = vsel %vm1960, 1, 0
        %v1977 = vsel %vm1961, 1, 0
        %v1978 = vsel %vm1962, 1, 0
        %v1979 = vsel %vm1963, 1, 0
        %v1980 = vsel %vm1964, 1, 0
        %v1981 = vsel %vm1965, 1, 0
        %vm1982 = vcmp.eq.s32.totalorder %v1966, 1
        %vm1983 = vcmp.eq.s32.totalorder %v1967, 1
        %vm1984 = vcmp.eq.s32.totalorder %v1968, 1
        %vm1985 = vcmp.eq.s32.totalorder %v1969, 1
        %vm1986 = vcmp.eq.s32.totalorder %v1970, 1
        %vm1987 = vcmp.eq.s32.totalorder %v1971, 1
        %vm1988 = vcmp.eq.s32.totalorder %v1972, 1
        %vm1989 = vcmp.eq.s32.totalorder %v1973, 1
        %vm1990 = vcmp.eq.s32.totalorder %v1974, 1
        %vm1991 = vcmp.eq.s32.totalorder %v1975, 1
        %vm1992 = vcmp.eq.s32.totalorder %v1976, 1
        %vm1993 = vcmp.eq.s32.totalorder %v1977, 1
        %vm1994 = vcmp.eq.s32.totalorder %v1978, 1
        %vm1995 = vcmp.eq.s32.totalorder %v1979, 1
        %vm1996 = vcmp.eq.s32.totalorder %v1980, 1
        %vm1997 = vcmp.eq.s32.totalorder %v1981, 1
        %v1998 = vsel %vm1982, %v1871, %v1838
        %v1999 = vsel %vm1983, %v1873, %v1839
        %v2000 = vsel %vm1984, %v1875, %v1840
        %v2001 = vsel %vm1985, %v1877, %v1841
        %v2002 = vsel %vm1986, %v1879, %v1842
        %v2003 = vsel %vm1987, %v1881, %v1843
        %v2004 = vsel %vm1988, %v1883, %v1844
        %v2005 = vsel %vm1989, %v1885, %v1845
        %v2006 = vsel %vm1990, %v1887, %v1846
        %v2007 = vsel %vm1991, %v1889, %v1847
        %v2008 = vsel %vm1992, %v1891, %v1848
        %v2009 = vsel %vm1993, %v1893, %v1849
        %v2010 = vsel %vm1994, %v1895, %v1850
        %v2011 = vsel %vm1995, %v1897, %v1851
        %v2012 = vsel %vm1996, %v1899, %v1852
        %v2013 = vsel %vm1997, %v1901, %v1853
        %2030 = vrot.lane.b32.xlu0 %v1998, 64
        %v2031 = vpop.permute.xlu0 %2030
        %2032 = vrot.lane.b32.xlu0 %v1999, 64
        %v2033 = vpop.permute.xlu0 %2032
        %2034 = vrot.lane.b32.xlu0 %v2000, 64
        %v2035 = vpop.permute.xlu0 %2034
        %2036 = vrot.lane.b32.xlu0 %v2001, 64
        %v2037 = vpop.permute.xlu0 %2036
        %2038 = vrot.lane.b32.xlu0 %v2002, 64
        %v2039 = vpop.permute.xlu0 %2038
        %2040 = vrot.lane.b32.xlu0 %v2003, 64
        %v2041 = vpop.permute.xlu0 %2040
        %2042 = vrot.lane.b32.xlu0 %v2004, 64
        %v2043 = vpop.permute.xlu0 %2042
        %2044 = vrot.lane.b32.xlu0 %v2005, 64
        %v2045 = vpop.permute.xlu0 %2044
        %2046 = vrot.lane.b32.xlu0 %v2006, 64
        %v2047 = vpop.permute.xlu0 %2046
        %2048 = vrot.lane.b32.xlu0 %v2007, 64
        %v2049 = vpop.permute.xlu0 %2048
        %2050 = vrot.lane.b32.xlu0 %v2008, 64
        %v2051 = vpop.permute.xlu0 %2050
        %2052 = vrot.lane.b32.xlu0 %v2009, 64
        %v2053 = vpop.permute.xlu0 %2052
        %2054 = vrot.lane.b32.xlu0 %v2010, 64
        %v2055 = vpop.permute.xlu0 %2054
        %2056 = vrot.lane.b32.xlu0 %v2011, 64
        %v2057 = vpop.permute.xlu0 %2056
        %2058 = vrot.lane.b32.xlu0 %v2012, 64
        %v2059 = vpop.permute.xlu0 %2058
        %2060 = vrot.lane.b32.xlu0 %v2013, 64
        %v2061 = vpop.permute.xlu0 %2060
        %v2078 = vshra.s32 %v1054, 6
        %v2079 = vshra.s32 %v1055, 6
        %v2080 = vshra.s32 %v1056, 6
        %v2081 = vshra.s32 %v1057, 6
        %v2082 = vshra.s32 %v1058, 6
        %v2083 = vshra.s32 %v1059, 6
        %v2084 = vshra.s32 %v1060, 6
        %v2085 = vshra.s32 %v1061, 6
        %v2086 = vshra.s32 %v1062, 6
        %v2087 = vshra.s32 %v1063, 6
        %v2088 = vshra.s32 %v1064, 6
        %v2089 = vshra.s32 %v1065, 6
        %v2090 = vshra.s32 %v1066, 6
        %v2091 = vshra.s32 %v1067, 6
        %v2092 = vshra.s32 %v1068, 6
        %v2093 = vshra.s32 %v1069, 6
        %v2094 = vand.u32 %v2078, 1
        %v2095 = vand.u32 %v2079, 1
        %v2096 = vand.u32 %v2080, 1
        %v2097 = vand.u32 %v2081, 1
        %v2098 = vand.u32 %v2082, 1
        %v2099 = vand.u32 %v2083, 1
        %v2100 = vand.u32 %v2084, 1
        %v2101 = vand.u32 %v2085, 1
        %v2102 = vand.u32 %v2086, 1
        %v2103 = vand.u32 %v2087, 1
        %v2104 = vand.u32 %v2088, 1
        %v2105 = vand.u32 %v2089, 1
        %v2106 = vand.u32 %v2090, 1
        %v2107 = vand.u32 %v2091, 1
        %v2108 = vand.u32 %v2092, 1
        %v2109 = vand.u32 %v2093, 1
        %vm2110 = vcmp.eq.s32.totalorder %v2094, 1
        %vm2111 = vcmp.eq.s32.totalorder %v2095, 1
        %vm2112 = vcmp.eq.s32.totalorder %v2096, 1
        %vm2113 = vcmp.eq.s32.totalorder %v2097, 1
        %vm2114 = vcmp.eq.s32.totalorder %v2098, 1
        %vm2115 = vcmp.eq.s32.totalorder %v2099, 1
        %vm2116 = vcmp.eq.s32.totalorder %v2100, 1
        %vm2117 = vcmp.eq.s32.totalorder %v2101, 1
        %vm2118 = vcmp.eq.s32.totalorder %v2102, 1
        %vm2119 = vcmp.eq.s32.totalorder %v2103, 1
        %vm2120 = vcmp.eq.s32.totalorder %v2104, 1
        %vm2121 = vcmp.eq.s32.totalorder %v2105, 1
        %vm2122 = vcmp.eq.s32.totalorder %v2106, 1
        %vm2123 = vcmp.eq.s32.totalorder %v2107, 1
        %vm2124 = vcmp.eq.s32.totalorder %v2108, 1
        %vm2125 = vcmp.eq.s32.totalorder %v2109, 1
        %v2126 = vsel %vm2110, 1, 0
        %v2127 = vsel %vm2111, 1, 0
        %v2128 = vsel %vm2112, 1, 0
        %v2129 = vsel %vm2113, 1, 0
        %v2130 = vsel %vm2114, 1, 0
        %v2131 = vsel %vm2115, 1, 0
        %v2132 = vsel %vm2116, 1, 0
        %v2133 = vsel %vm2117, 1, 0
        %v2134 = vsel %vm2118, 1, 0
        %v2135 = vsel %vm2119, 1, 0
        %v2136 = vsel %vm2120, 1, 0
        %v2137 = vsel %vm2121, 1, 0
        %v2138 = vsel %vm2122, 1, 0
        %v2139 = vsel %vm2123, 1, 0
        %v2140 = vsel %vm2124, 1, 0
        %v2141 = vsel %vm2125, 1, 0
        %vm2142 = vcmp.eq.s32.totalorder %v2126, 1
        %vm2143 = vcmp.eq.s32.totalorder %v2127, 1
        %vm2144 = vcmp.eq.s32.totalorder %v2128, 1
        %vm2145 = vcmp.eq.s32.totalorder %v2129, 1
        %vm2146 = vcmp.eq.s32.totalorder %v2130, 1
        %vm2147 = vcmp.eq.s32.totalorder %v2131, 1
        %vm2148 = vcmp.eq.s32.totalorder %v2132, 1
        %vm2149 = vcmp.eq.s32.totalorder %v2133, 1
        %vm2150 = vcmp.eq.s32.totalorder %v2134, 1
        %vm2151 = vcmp.eq.s32.totalorder %v2135, 1
        %vm2152 = vcmp.eq.s32.totalorder %v2136, 1
        %vm2153 = vcmp.eq.s32.totalorder %v2137, 1
        %vm2154 = vcmp.eq.s32.totalorder %v2138, 1
        %vm2155 = vcmp.eq.s32.totalorder %v2139, 1
        %vm2156 = vcmp.eq.s32.totalorder %v2140, 1
        %vm2157 = vcmp.eq.s32.totalorder %v2141, 1
        %v2158 = vsel %vm2142, %v2031, %v1998
        %v2159 = vsel %vm2143, %v2033, %v1999
        %v2160 = vsel %vm2144, %v2035, %v2000
        %v2161 = vsel %vm2145, %v2037, %v2001
        %v2162 = vsel %vm2146, %v2039, %v2002
        %v2163 = vsel %vm2147, %v2041, %v2003
        %v2164 = vsel %vm2148, %v2043, %v2004
        %v2165 = vsel %vm2149, %v2045, %v2005
        %v2166 = vsel %vm2150, %v2047, %v2006
        %v2167 = vsel %vm2151, %v2049, %v2007
        %v2168 = vsel %vm2152, %v2051, %v2008
        %v2169 = vsel %vm2153, %v2053, %v2009
        %v2170 = vsel %vm2154, %v2055, %v2010
        %v2171 = vsel %vm2155, %v2057, %v2011
        %v2172 = vsel %vm2156, %v2059, %v2012
        %v2173 = vsel %vm2157, %v2061, %v2013
        %v2190 = vunpack.c.l.b16 %v592
        %v2191 = vunpack.c.l.b16 %v593
        %v2192 = vunpack.c.l.b16 %v594
        %v2193 = vunpack.c.l.b16 %v595
        %v2194 = vunpack.c.l.b16 %v596
        %v2195 = vunpack.c.l.b16 %v597
        %v2196 = vunpack.c.l.b16 %v598
        %v2197 = vunpack.c.l.b16 %v599
        %v2198 = vunpack.c.l.b16 %v600
        %v2199 = vunpack.c.l.b16 %v601
        %v2200 = vunpack.c.l.b16 %v602
        %v2201 = vunpack.c.l.b16 %v603
        %v2202 = vunpack.c.l.b16 %v604
        %v2203 = vunpack.c.l.b16 %v605
        %v2204 = vunpack.c.l.b16 %v606
        %v2205 = vunpack.c.l.b16 %v607
        %v2206 = vpack.c.b16 %v2191, %v2190
        %v2207 = vpack.c.b16 %v2193, %v2192
        %v2208 = vpack.c.b16 %v2195, %v2194
        %v2209 = vpack.c.b16 %v2197, %v2196
        %v2210 = vpack.c.b16 %v2199, %v2198
        %v2211 = vpack.c.b16 %v2201, %v2200
        %v2212 = vpack.c.b16 %v2203, %v2202
        %v2213 = vpack.c.b16 %v2205, %v2204
        %v2238 = vunpack.c.l.b16 %v516
        %v2239 = vunpack.c.l.b16 %v517
        %v2240 = vunpack.c.l.b16 %v518
        %v2241 = vunpack.c.l.b16 %v519
        %v2242 = vunpack.c.l.b16 %v520
        %v2243 = vunpack.c.l.b16 %v521
        %v2244 = vunpack.c.l.b16 %v522
        %v2245 = vunpack.c.l.b16 %v523
        %v2246 = vunpack.c.l.b16 %v524
        %v2247 = vunpack.c.l.b16 %v525
        %v2248 = vunpack.c.l.b16 %v526
        %v2249 = vunpack.c.l.b16 %v527
        %v2250 = vunpack.c.l.b16 %v528
        %v2251 = vunpack.c.l.b16 %v529
        %v2252 = vunpack.c.l.b16 %v530
        %v2253 = vunpack.c.l.b16 %v531
        %v2254 = vpack.c.b16 %v2239, %v2238
        %v2255 = vpack.c.b16 %v2241, %v2240
        %v2256 = vpack.c.b16 %v2243, %v2242
        %v2257 = vpack.c.b16 %v2245, %v2244
        %v2258 = vpack.c.b16 %v2247, %v2246
        %v2259 = vpack.c.b16 %v2249, %v2248
        %v2260 = vpack.c.b16 %v2251, %v2250
        %v2261 = vpack.c.b16 %v2253, %v2252
        %2270 = vmatprep.subr.bf16.mxu0 0
        %2271 = vmatpush1.bf16.xpose.msra.mxu0 %v2261
        %2272 = vmatprep.subr.bf16.mxu0 0
        %2273 = vmatpush1.bf16.xpose.msra.mxu0 %v2260
        %2274 = vmatprep.subr.bf16.mxu0 0
        %2275 = vmatpush1.bf16.xpose.msra.mxu0 %v2259
        %2276 = vmatprep.subr.bf16.mxu0 0
        %2277 = vmatpush1.bf16.xpose.msra.mxu0 %v2258
        %2278 = vmatprep.subr.bf16.mxu0 0
        %2279 = vmatpush1.bf16.xpose.msra.mxu0 %v2257
        %2280 = vmatprep.subr.bf16.mxu0 0
        %2281 = vmatpush1.bf16.xpose.msra.mxu0 %v2256
        %2282 = vmatprep.subr.bf16.mxu0 0
        %2283 = vmatpush1.bf16.xpose.msra.mxu0 %v2255
        %2284 = vmatprep.subr.bf16.mxu0 0
        %2285 = vmatpush1.bf16.xpose.msra.mxu0 %v2254
        %2286 = vmatprep.subr.bf16.mxu0 0
        %2287 = vmatpush2.bf16.xpose.msra.mxu0 0
        %2288 = vmatprep.subr.bf16.mxu0 0
        %2289 = vmatpush2.bf16.xpose.msra.mxu0 0
        %2290 = vmatprep.subr.bf16.mxu0 0
        %2291 = vmatpush2.bf16.xpose.msra.mxu0 0
        %2292 = vmatprep.subr.bf16.mxu0 0
        %2293 = vmatpush2.bf16.xpose.msra.mxu0 0
        %2294 = vmatprep.subr.bf16.mxu0 0
        %2295 = vmatpush2.bf16.xpose.msra.mxu0 0
        %2296 = vmatprep.subr.bf16.mxu0 0
        %2297 = vmatpush2.bf16.xpose.msra.mxu0 0
        %2298 = vmatprep.subr.bf16.mxu0 0
        %2299 = vmatpush2.bf16.xpose.msra.mxu0 0
        %2300 = vmatprep.subr.bf16.mxu0 0
        %2301 = vmatpush2.bf16.xpose.msra.mxu0 0
        %2302 = vmatprep.mubr.bf16.mxu0 0
        %2303 = vmatmul.mubr.bf16.gmra.mxu0 %v2206
        %v2304 = vpop.f32.mrf.mxu0
        %v2305 = vadd.f32 %v2158, %v2304
        %v2306 = vpop.f32.mrf.mxu0
        %v2307 = vpop.f32.mrf.mxu0
        %v2308 = vadd.f32 %v2159, %v2307
        %v2309 = vpop.f32.mrf.mxu0
        %2310 = vmatprep.mubr.bf16.mxu0 0
        %2311 = vmatmul.mubr.bf16.gmra.mxu0 %v2207
        %v2312 = vpop.f32.mrf.mxu0
        %v2313 = vadd.f32 %v2160, %v2312
        %v2314 = vpop.f32.mrf.mxu0
        %v2315 = vpop.f32.mrf.mxu0
        %v2316 = vadd.f32 %v2161, %v2315
        %v2317 = vpop.f32.mrf.mxu0
        %2318 = vmatprep.mubr.bf16.mxu0 0
        %2319 = vmatmul.mubr.bf16.gmra.mxu0 %v2208
        %v2320 = vpop.f32.mrf.mxu0
        %v2321 = vadd.f32 %v2162, %v2320
        %v2322 = vpop.f32.mrf.mxu0
        %v2323 = vpop.f32.mrf.mxu0
        %v2324 = vadd.f32 %v2163, %v2323
        %v2325 = vpop.f32.mrf.mxu0
        %2326 = vmatprep.mubr.bf16.mxu0 0
        %2327 = vmatmul.mubr.bf16.gmra.mxu0 %v2209
        %v2328 = vpop.f32.mrf.mxu0
        %v2329 = vadd.f32 %v2164, %v2328
        %v2330 = vpop.f32.mrf.mxu0
        %v2331 = vpop.f32.mrf.mxu0
        %v2332 = vadd.f32 %v2165, %v2331
        %v2333 = vpop.f32.mrf.mxu0
        %2334 = vmatprep.mubr.bf16.mxu0 0
        %2335 = vmatmul.mubr.bf16.gmra.mxu0 %v2210
        %v2336 = vpop.f32.mrf.mxu0
        %v2337 = vadd.f32 %v2166, %v2336
        %v2338 = vpop.f32.mrf.mxu0
        %v2339 = vpop.f32.mrf.mxu0
        %v2340 = vadd.f32 %v2167, %v2339
        %v2341 = vpop.f32.mrf.mxu0
        %2342 = vmatprep.mubr.bf16.mxu0 0
        %2343 = vmatmul.mubr.bf16.gmra.mxu0 %v2211
        %v2344 = vpop.f32.mrf.mxu0
        %v2345 = vadd.f32 %v2168, %v2344
        %v2346 = vpop.f32.mrf.mxu0
        %v2347 = vpop.f32.mrf.mxu0
        %v2348 = vadd.f32 %v2169, %v2347
        %v2349 = vpop.f32.mrf.mxu0
        %2350 = vmatprep.mubr.bf16.mxu0 0
        %2351 = vmatmul.mubr.bf16.gmra.mxu0 %v2212
        %v2352 = vpop.f32.mrf.mxu0
        %v2353 = vadd.f32 %v2170, %v2352
        %v2354 = vpop.f32.mrf.mxu0
        %v2355 = vpop.f32.mrf.mxu0
        %v2356 = vadd.f32 %v2171, %v2355
        %v2357 = vpop.f32.mrf.mxu0
        %2358 = vmatprep.mubr.bf16.mxu0 0
        %2359 = vmatmul.mubr.bf16.gmra.mxu0 %v2213
        %v2360 = vpop.f32.mrf.mxu0
        %v2361 = vadd.f32 %v2172, %v2360
        %v2362 = vpop.f32.mrf.mxu0
        %v2363 = vpop.f32.mrf.mxu0
        %v2364 = vadd.f32 %v2173, %v2363
        %v2365 = vpop.f32.mrf.mxu0
        %2366 = vdwg.mxu0
        %v2367 = vadd.f32 %v2305, %v484
        %v2368 = vadd.f32 %v2308, %v485
        %v2369 = vadd.f32 %v2313, %v486
        %v2370 = vadd.f32 %v2316, %v487
        %v2371 = vadd.f32 %v2321, %v488
        %v2372 = vadd.f32 %v2324, %v489
        %v2373 = vadd.f32 %v2329, %v490
        %v2374 = vadd.f32 %v2332, %v491
        %v2375 = vadd.f32 %v2337, %v492
        %v2376 = vadd.f32 %v2340, %v493
        %v2377 = vadd.f32 %v2345, %v494
        %v2378 = vadd.f32 %v2348, %v495
        %v2379 = vadd.f32 %v2353, %v496
        %v2380 = vadd.f32 %v2356, %v497
        %v2381 = vadd.f32 %v2361, %v498
        %v2382 = vadd.f32 %v2364, %v499
        %2383 = vmax.xlane.f32.xlu0 %v2367
        %v2384 = vpop.xlane.xlu0 %2383
        %2385 = vmax.xlane.f32.xlu0 %v2368
        %v2386 = vpop.xlane.xlu0 %2385
        %2387 = vmax.xlane.f32.xlu0 %v2369
        %v2388 = vpop.xlane.xlu0 %2387
        %2389 = vmax.xlane.f32.xlu0 %v2370
        %v2390 = vpop.xlane.xlu0 %2389
        %2391 = vmax.xlane.f32.xlu0 %v2371
        %v2392 = vpop.xlane.xlu0 %2391
        %2393 = vmax.xlane.f32.xlu0 %v2372
        %v2394 = vpop.xlane.xlu0 %2393
        %2395 = vmax.xlane.f32.xlu0 %v2373
        %v2396 = vpop.xlane.xlu0 %2395
        %2397 = vmax.xlane.f32.xlu0 %v2374
        %v2398 = vpop.xlane.xlu0 %2397
        %2399 = vmax.xlane.f32.xlu0 %v2375
        %v2400 = vpop.xlane.xlu0 %2399
        %2401 = vmax.xlane.f32.xlu0 %v2376
        %v2402 = vpop.xlane.xlu0 %2401
        %2403 = vmax.xlane.f32.xlu0 %v2377
        %v2404 = vpop.xlane.xlu0 %2403
        %2405 = vmax.xlane.f32.xlu0 %v2378
        %v2406 = vpop.xlane.xlu0 %2405
        %2407 = vmax.xlane.f32.xlu0 %v2379
        %v2408 = vpop.xlane.xlu0 %2407
        %2409 = vmax.xlane.f32.xlu0 %v2380
        %v2410 = vpop.xlane.xlu0 %2409
        %2411 = vmax.xlane.f32.xlu0 %v2381
        %v2412 = vpop.xlane.xlu0 %2411
        %2413 = vmax.xlane.f32.xlu0 %v2382
        %v2414 = vpop.xlane.xlu0 %2413
        %v2415 = vsub.f32 %v2367, %v2384
        %v2416 = vsub.f32 %v2368, %v2386
        %v2417 = vsub.f32 %v2369, %v2388
        %v2418 = vsub.f32 %v2370, %v2390
        %v2419 = vsub.f32 %v2371, %v2392
        %v2420 = vsub.f32 %v2372, %v2394
        %v2421 = vsub.f32 %v2373, %v2396
        %v2422 = vsub.f32 %v2374, %v2398
        %v2423 = vsub.f32 %v2375, %v2400
        %v2424 = vsub.f32 %v2376, %v2402
        %v2425 = vsub.f32 %v2377, %v2404
        %v2426 = vsub.f32 %v2378, %v2406
        %v2427 = vsub.f32 %v2379, %v2408
        %v2428 = vsub.f32 %v2380, %v2410
        %v2429 = vsub.f32 %v2381, %v2412
        %v2430 = vsub.f32 %v2382, %v2414
        %v2431 = vmul.f32 %v2415, 1.442695
        %v2432 = vpow.pop %v2431
        %v2433 = vmul.f32 %v2416, 1.442695
        %v2434 = vpow.pop %v2433
        %v2435 = vmul.f32 %v2417, 1.442695
        %v2436 = vpow.pop %v2435
        %v2437 = vmul.f32 %v2418, 1.442695
        %v2438 = vpow.pop %v2437
        %v2439 = vmul.f32 %v2419, 1.442695
        %v2440 = vpow.pop %v2439
        %v2441 = vmul.f32 %v2420, 1.442695
        %v2442 = vpow.pop %v2441
        %v2443 = vmul.f32 %v2421, 1.442695
        %v2444 = vpow.pop %v2443
        %v2445 = vmul.f32 %v2422, 1.442695
        %v2446 = vpow.pop %v2445
        %v2447 = vmul.f32 %v2423, 1.442695
        %v2448 = vpow.pop %v2447
        %v2449 = vmul.f32 %v2424, 1.442695
        %v2450 = vpow.pop %v2449
        %v2451 = vmul.f32 %v2425, 1.442695
        %v2452 = vpow.pop %v2451
        %v2453 = vmul.f32 %v2426, 1.442695
        %v2454 = vpow.pop %v2453
        %v2455 = vmul.f32 %v2427, 1.442695
        %v2456 = vpow.pop %v2455
        %v2457 = vmul.f32 %v2428, 1.442695
        %v2458 = vpow.pop %v2457
        %v2459 = vmul.f32 %v2429, 1.442695
        %v2460 = vpow.pop %v2459
        %v2461 = vmul.f32 %v2430, 1.442695
        %v2462 = vpow.pop %v2461
        %2463 = vadd.xlane.f32.xlu0 %v2432
        %v2464 = vpop.xlane.xlu0 %2463
        %2465 = vadd.xlane.f32.xlu0 %v2434
        %v2466 = vpop.xlane.xlu0 %2465
        %2467 = vadd.xlane.f32.xlu0 %v2436
        %v2468 = vpop.xlane.xlu0 %2467
        %2469 = vadd.xlane.f32.xlu0 %v2438
        %v2470 = vpop.xlane.xlu0 %2469
        %2471 = vadd.xlane.f32.xlu0 %v2440
        %v2472 = vpop.xlane.xlu0 %2471
        %2473 = vadd.xlane.f32.xlu0 %v2442
        %v2474 = vpop.xlane.xlu0 %2473
        %2475 = vadd.xlane.f32.xlu0 %v2444
        %v2476 = vpop.xlane.xlu0 %2475
        %2477 = vadd.xlane.f32.xlu0 %v2446
        %v2478 = vpop.xlane.xlu0 %2477
        %2479 = vadd.xlane.f32.xlu0 %v2448
        %v2480 = vpop.xlane.xlu0 %2479
        %2481 = vadd.xlane.f32.xlu0 %v2450
        %v2482 = vpop.xlane.xlu0 %2481
        %2483 = vadd.xlane.f32.xlu0 %v2452
        %v2484 = vpop.xlane.xlu0 %2483
        %2485 = vadd.xlane.f32.xlu0 %v2454
        %v2486 = vpop.xlane.xlu0 %2485
        %2487 = vadd.xlane.f32.xlu0 %v2456
        %v2488 = vpop.xlane.xlu0 %2487
        %2489 = vadd.xlane.f32.xlu0 %v2458
        %v2490 = vpop.xlane.xlu0 %2489
        %2491 = vadd.xlane.f32.xlu0 %v2460
        %v2492 = vpop.xlane.xlu0 %2491
        %2493 = vadd.xlane.f32.xlu0 %v2462
        %v2494 = vpop.xlane.xlu0 %2493
        %v2495 = vrcp.pop %v2464
        %v2496 = vrcp.pop %v2466
        %v2497 = vrcp.pop %v2468
        %v2498 = vrcp.pop %v2470
        %v2499 = vrcp.pop %v2472
        %v2500 = vrcp.pop %v2474
        %v2501 = vrcp.pop %v2476
        %v2502 = vrcp.pop %v2478
        %v2503 = vrcp.pop %v2480
        %v2504 = vrcp.pop %v2482
        %v2505 = vrcp.pop %v2484
        %v2506 = vrcp.pop %v2486
        %v2507 = vrcp.pop %v2488
        %v2508 = vrcp.pop %v2490
        %v2509 = vrcp.pop %v2492
        %v2510 = vrcp.pop %v2494
        %v2511 = vmul.f32 %v2432, %v2495
        %v2512 = vmul.f32 %v2434, %v2496
        %v2513 = vmul.f32 %v2436, %v2497
        %v2514 = vmul.f32 %v2438, %v2498
        %v2515 = vmul.f32 %v2440, %v2499
        %v2516 = vmul.f32 %v2442, %v2500
        %v2517 = vmul.f32 %v2444, %v2501
        %v2518 = vmul.f32 %v2446, %v2502
        %v2519 = vmul.f32 %v2448, %v2503
        %v2520 = vmul.f32 %v2450, %v2504
        %v2521 = vmul.f32 %v2452, %v2505
        %v2522 = vmul.f32 %v2454, %v2506
        %v2523 = vmul.f32 %v2456, %v2507
        %v2524 = vmul.f32 %v2458, %v2508
        %v2525 = vmul.f32 %v2460, %v2509
        %v2526 = vmul.f32 %v2462, %v2510
        %v2527 = vpack.c.bf16 %v2512, %v2511
        %v2528 = vpack.c.bf16 %v2514, %v2513
        %v2529 = vpack.c.bf16 %v2516, %v2515
        %v2530 = vpack.c.bf16 %v2518, %v2517
        %v2531 = vpack.c.bf16 %v2520, %v2519
        %v2532 = vpack.c.bf16 %v2522, %v2521
        %v2533 = vpack.c.bf16 %v2524, %v2523
        %v2534 = vpack.c.bf16 %v2526, %v2525
        %v2551 = vunpack.c.l.b16 %v532
        %v2552 = vunpack.c.l.b16 %v533
        %v2553 = vunpack.c.l.b16 %v534
        %v2554 = vunpack.c.l.b16 %v535
        %v2555 = vunpack.c.l.b16 %v536
        %v2556 = vunpack.c.l.b16 %v537
        %v2557 = vunpack.c.l.b16 %v538
        %v2558 = vunpack.c.l.b16 %v539
        %v2559 = vunpack.c.l.b16 %v540
        %v2560 = vunpack.c.l.b16 %v541
        %v2561 = vunpack.c.l.b16 %v542
        %v2562 = vunpack.c.l.b16 %v543
        %v2563 = vunpack.c.l.b16 %v544
        %v2564 = vunpack.c.l.b16 %v545
        %v2565 = vunpack.c.l.b16 %v546
        %v2566 = vunpack.c.l.b16 %v547
        %v2567 = vpack.c.b16 %v2552, %v2551
        %v2568 = vpack.c.b16 %v2554, %v2553
        %v2569 = vpack.c.b16 %v2556, %v2555
        %v2570 = vpack.c.b16 %v2558, %v2557
        %v2571 = vpack.c.b16 %v2560, %v2559
        %v2572 = vpack.c.b16 %v2562, %v2561
        %v2573 = vpack.c.b16 %v2564, %v2563
        %v2574 = vpack.c.b16 %v2566, %v2565
        %2583 = vmatprep.subr.bf16.mxu0 0
        %2584 = vmatpush1.bf16.msra.mxu0 %v2574
        %2585 = vmatprep.subr.bf16.mxu0 0
        %2586 = vmatpush1.bf16.msra.mxu0 %v2573
        %2587 = vmatprep.subr.bf16.mxu0 0
        %2588 = vmatpush1.bf16.msra.mxu0 %v2572
        %2589 = vmatprep.subr.bf16.mxu0 0
        %2590 = vmatpush1.bf16.msra.mxu0 %v2571
        %2591 = vmatprep.subr.bf16.mxu0 0
        %2592 = vmatpush1.bf16.msra.mxu0 %v2570
        %2593 = vmatprep.subr.bf16.mxu0 0
        %2594 = vmatpush1.bf16.msra.mxu0 %v2569
        %2595 = vmatprep.subr.bf16.mxu0 0
        %2596 = vmatpush1.bf16.msra.mxu0 %v2568
        %2597 = vmatprep.subr.bf16.mxu0 0
        %2598 = vmatpush1.bf16.msra.mxu0 %v2567
        %2599 = vmatprep.subr.bf16.mxu0 0
        %2600 = vmatpush2.bf16.msra.mxu0 0
        %2601 = vmatprep.subr.bf16.mxu0 0
        %2602 = vmatpush2.bf16.msra.mxu0 0
        %2603 = vmatprep.subr.bf16.mxu0 0
        %2604 = vmatpush2.bf16.msra.mxu0 0
        %2605 = vmatprep.subr.bf16.mxu0 0
        %2606 = vmatpush2.bf16.msra.mxu0 0
        %2607 = vmatprep.subr.bf16.mxu0 0
        %2608 = vmatpush2.bf16.msra.mxu0 0
        %2609 = vmatprep.subr.bf16.mxu0 0
        %2610 = vmatpush2.bf16.msra.mxu0 0
        %2611 = vmatprep.subr.bf16.mxu0 0
        %2612 = vmatpush2.bf16.msra.mxu0 0
        %2613 = vmatprep.subr.bf16.mxu0 0
        %2614 = vmatpush2.bf16.msra.mxu0 0
        %2615 = vmatprep.mubr.bf16.mxu0 0
        %2616 = vmatmul.mubr.bf16.gmra.mxu0 %v2527
        %v2617 = vpop.f32.mrf.mxu0
        %v2618 = vadd.f32 0.0, %v2617
        %v2619 = vpop.f32.mrf.mxu0
        %v2620 = vpop.f32.mrf.mxu0
        %v2621 = vadd.f32 0.0, %v2620
        %v2622 = vpop.f32.mrf.mxu0
        %2623 = vmatprep.mubr.bf16.mxu0 0
        %2624 = vmatmul.mubr.bf16.gmra.mxu0 %v2528
        %v2625 = vpop.f32.mrf.mxu0
        %v2626 = vadd.f32 0.0, %v2625
        %v2627 = vpop.f32.mrf.mxu0
        %v2628 = vpop.f32.mrf.mxu0
        %v2629 = vadd.f32 0.0, %v2628
        %v2630 = vpop.f32.mrf.mxu0
        %2631 = vmatprep.mubr.bf16.mxu0 0
        %2632 = vmatmul.mubr.bf16.gmra.mxu0 %v2529
        %v2633 = vpop.f32.mrf.mxu0
        %v2634 = vadd.f32 0.0, %v2633
        %v2635 = vpop.f32.mrf.mxu0
        %v2636 = vpop.f32.mrf.mxu0
        %v2637 = vadd.f32 0.0, %v2636
        %v2638 = vpop.f32.mrf.mxu0
        %2639 = vmatprep.mubr.bf16.mxu0 0
        %2640 = vmatmul.mubr.bf16.gmra.mxu0 %v2530
        %v2641 = vpop.f32.mrf.mxu0
        %v2642 = vadd.f32 0.0, %v2641
        %v2643 = vpop.f32.mrf.mxu0
        %v2644 = vpop.f32.mrf.mxu0
        %v2645 = vadd.f32 0.0, %v2644
        %v2646 = vpop.f32.mrf.mxu0
        %2647 = vmatprep.mubr.bf16.mxu0 0
        %2648 = vmatmul.mubr.bf16.gmra.mxu0 %v2531
        %v2649 = vpop.f32.mrf.mxu0
        %v2650 = vadd.f32 0.0, %v2649
        %v2651 = vpop.f32.mrf.mxu0
        %v2652 = vpop.f32.mrf.mxu0
        %v2653 = vadd.f32 0.0, %v2652
        %v2654 = vpop.f32.mrf.mxu0
        %2655 = vmatprep.mubr.bf16.mxu0 0
        %2656 = vmatmul.mubr.bf16.gmra.mxu0 %v2532
        %v2657 = vpop.f32.mrf.mxu0
        %v2658 = vadd.f32 0.0, %v2657
        %v2659 = vpop.f32.mrf.mxu0
        %v2660 = vpop.f32.mrf.mxu0
        %v2661 = vadd.f32 0.0, %v2660
        %v2662 = vpop.f32.mrf.mxu0
        %2663 = vmatprep.mubr.bf16.mxu0 0
        %2664 = vmatmul.mubr.bf16.gmra.mxu0 %v2533
        %v2665 = vpop.f32.mrf.mxu0
        %v2666 = vadd.f32 0.0, %v2665
        %v2667 = vpop.f32.mrf.mxu0
        %v2668 = vpop.f32.mrf.mxu0
        %v2669 = vadd.f32 0.0, %v2668
        %v2670 = vpop.f32.mrf.mxu0
        %2671 = vmatprep.mubr.bf16.mxu0 0
        %2672 = vmatmul.mubr.bf16.gmra.mxu0 %v2534
        %v2673 = vpop.f32.mrf.mxu0
        %v2674 = vadd.f32 0.0, %v2673
        %v2675 = vpop.f32.mrf.mxu0
        %v2676 = vpop.f32.mrf.mxu0
        %v2677 = vadd.f32 0.0, %v2676
        %v2678 = vpop.f32.mrf.mxu0
        %2679 = vdwg.mxu0
        %v2680 = vpack.c.bf16 %v2621, %v2618
        %v2681 = vpack.c.bf16 %v2629, %v2626
        %v2682 = vpack.c.bf16 %v2637, %v2634
        %v2683 = vpack.c.bf16 %v2645, %v2642
        %v2684 = vpack.c.bf16 %v2653, %v2650
        %v2685 = vpack.c.bf16 %v2661, %v2658
        %v2686 = vpack.c.bf16 %v2669, %v2666
        %v2687 = vpack.c.bf16 %v2677, %v2674
        %v2696 = vunpack.c.l.b16 %v2680
        %v2697 = vunpack.c.h.b16 %v2680
        %v2698 = vunpack.c.l.b16 %v2681
        %v2699 = vunpack.c.h.b16 %v2681
        %v2700 = vunpack.c.l.b16 %v2682
        %v2701 = vunpack.c.h.b16 %v2682
        %v2702 = vunpack.c.l.b16 %v2683
        %v2703 = vunpack.c.h.b16 %v2683
        %v2704 = vunpack.c.l.b16 %v2684
        %v2705 = vunpack.c.h.b16 %v2684
        %v2706 = vunpack.c.l.b16 %v2685
        %v2707 = vunpack.c.h.b16 %v2685
        %v2708 = vunpack.c.l.b16 %v2686
        %v2709 = vunpack.c.h.b16 %v2686
        %v2710 = vunpack.c.l.b16 %v2687
        %v2711 = vunpack.c.h.b16 %v2687
        %v2712 = vpack.c.b16 %v2696, %v2696
        %v2713 = vpack.c.b16 %v2697, %v2697
        %v2714 = vpack.c.b16 %v2698, %v2698
        %v2715 = vpack.c.b16 %v2699, %v2699
        %v2716 = vpack.c.b16 %v2700, %v2700
        %v2717 = vpack.c.b16 %v2701, %v2701
        %v2718 = vpack.c.b16 %v2702, %v2702
        %v2719 = vpack.c.b16 %v2703, %v2703
        %v2720 = vpack.c.b16 %v2704, %v2704
        %v2721 = vpack.c.b16 %v2705, %v2705
        %v2722 = vpack.c.b16 %v2706, %v2706
        %v2723 = vpack.c.b16 %v2707, %v2707
        %v2724 = vpack.c.b16 %v2708, %v2708
        %v2725 = vpack.c.b16 %v2709, %v2709
        %v2726 = vpack.c.b16 %v2710, %v2710
        %v2727 = vpack.c.b16 %v2711, %v2711
        %2744 = vst [vmem:[%s474] sm:$0xf] %v2712
        %2745 = vst [vmem:[%s474 + $0x4] sm:$0xf] %v2713
        %2746 = vst [vmem:[%s474 + $0x8] sm:$0xf] %v2714
        %2747 = vst [vmem:[%s474 + $0xc] sm:$0xf] %v2715
        %2748 = vst [vmem:[%s474 + $0x10] sm:$0xf] %v2716
        %2749 = vst [vmem:[%s474 + $0x14] sm:$0xf] %v2717
        %2750 = vst [vmem:[%s474 + $0x18] sm:$0xf] %v2718
        %2751 = vst [vmem:[%s474 + $0x1c] sm:$0xf] %v2719
        %2752 = vst [vmem:[%s474 + $0x20] sm:$0xf] %v2720
        %2753 = vst [vmem:[%s474 + $0x24] sm:$0xf] %v2721
        %2754 = vst [vmem:[%s474 + $0x28] sm:$0xf] %v2722
        %2755 = vst [vmem:[%s474 + $0x2c] sm:$0xf] %v2723
        %2756 = vst [vmem:[%s474 + $0x30] sm:$0xf] %v2724
        %2757 = vst [vmem:[%s474 + $0x34] sm:$0xf] %v2725
        %2758 = vst [vmem:[%s474 + $0x38] sm:$0xf] %v2726
        %2759 = vst [vmem:[%s474 + $0x3c] sm:$0xf] %v2727
        %s2760 = sand.u32 %s237, 1
        %s2761 = scalar_lea.sflag [#allocation4], %s2760
        %s2762 = sand.u32 %s237, 1
        %s2763 = smul.addr %s2762, 64
        %s2764 = scalar_lea.vmem [#allocation11], %s2763
        // Predicated region
        $region69: #{tpu_custom_call.1} parent=47 // pred_check
          %p2765 = pneg %p247
        $region70: #{tpu_custom_call.1} parent=47 // pred_check_branch
          %2767 = sbr.rel (%p2765) target = $region72
        $region71: #{tpu_custom_call.1} parent=47 // pred_region
          %s2769 = ssub.s32 1024, 1024
          %2770 = vsyncadd %s2761, %s2769
          %s2771 = smul.addr %s34, 32
          %s2772 = sadd.s32 %s35, %s2771
          %s2773 = smul.addr %s2772, 64
          %s2774 = scalar_lea.hbm %s7, %s2773
          %s2775 = sshll.u32 %s2764, 4
          %s2776 = int_to_ptr.vmem [resolvable:$true] %s2775
          %2781 = dma.vmem_to_hbm [thread:$0]  %s2776, 1024, %s2774, %s2761, 64, 128, 4
        $region72: #{tpu_custom_call.1} parent=47 // pred_fallthru
          _
      $region48: #{tpu_custom_call.1} parent=5 // pred_fallthru
        _
      %p2782 = scmp.le.s32.totalorder 2, %s25
      // Predicated region
      $region73: #{tpu_custom_call.1} parent=5 // pred_check
        %p2783 = pneg %p2782
      $region74: #{tpu_custom_call.1} parent=5 // pred_check_branch
        %2785 = sbr.rel (%p2783) target = $region76
      $region75: #{tpu_custom_call.1} parent=5 // pred_region
        %s2786 = ssub.s32 %s25, 2
        // Predicated region
        $region77: #{tpu_custom_call.1} parent=75 // pred_check
          %p2787 = pneg %p253
        $region78: #{tpu_custom_call.1} parent=75 // pred_check_branch
          %2789 = sbr.rel (%p2787) target = $region80
        $region79: #{tpu_custom_call.1} parent=75 // pred_region
          %s2790 = sand.u32 %s238, 1
          %s2791 = scalar_lea.sflag [#allocation4], %s2790
          %s2792 = sand.u32 %s238, 1
          %s2793 = smul.addr %s2792, 64
          %s2794 = scalar_lea.vmem [#allocation11], %s2793
          %2795 = dma.done %s2791, 1024
        $region80: #{tpu_custom_call.1} parent=75 // pred_fallthru
          _
      $region76: #{tpu_custom_call.1} parent=5 // pred_fallthru
        _
    $region6: #{tpu_custom_call.1} parent=1 // loop_footer
      %s29 = sadd.s32 1, %s25
    $region7: #{tpu_custom_call.1} parent=1 // loop_footer_branch
      %24 = sbr.rel target = $region3
    $region8: #{tpu_custom_call.1} parent=1 // loop_exit
      _
    %2796 = vsyncpa [#allocation3], 1
    %s2797 = scalar_lea.sflag [#allocation3], 1
    %2798 = vsyncpa %s2797, 1
    %2799 = vsyncpa [#allocation6], 1
    %s2800 = scalar_lea.sflag [#allocation6], 1
    %2801 = vsyncpa %s2800, 1
    %2802 = vsyncpa [#allocation9], 1
    %s2803 = scalar_lea.sflag [#allocation9], 1
    %2804 = vsyncpa %s2803, 1
    %2805 = vsyncpa [#allocation4], 1
    %s2806 = scalar_lea.sflag [#allocation4], 1
    %2807 = vsyncpa %s2806, 1

</llo_original>
